<compile_context>
chip_gen: v6e
topology: v6e:2x2x1
jax: 0.10.0
libtpu: 0.0.40
codegen_flags: <defaults>
</compile_context>

<pallas_src>
import functools

import jax
import jax.numpy as jnp
from jax.experimental import pallas as pl
from jax.experimental.pallas import tpu as pltpu


def _round_up(v, m):
    return ((v + m - 1) // m) * m


# ----------------------------------------------------------------------------
# Fused kernel: conv1+ReLU -> conv2+ReLU -> (flatten) -> fc1+ReLU -> fc2
# One grid step == one image.  Layout: channels on sublanes, flat grid on lanes.
# ----------------------------------------------------------------------------
def _fused_forward_kernel(x_ref, w1_ref, b1_ref, mask_ref, w2_ref, b2_ref,
                          w1fc_ref, b1fc_ref, w2fc_ref, b2fc_ref,
                          o_ref, h1_ref, *, wp):
    f32 = jnp.float32
    c1 = w1_ref.shape[1]          # conv1 out channels
    c2 = w2_ref.shape[1]          # conv2 out channels
    w1c = h1_ref.shape[1]         # conv1 working width (lane dim, mult of 128)
    w2c = w1fc_ref.shape[1]       # conv2 / fc1 working width (mult of 128)
    nh = w1fc_ref.shape[2]        # fc1 hidden size

    # ---- conv1: 3x3 / stride 1 / pad 1, as 9 shifted (C1,Cin)x(Cin,W) dots
    acc1 = jnp.zeros((c1, w1c), f32)
    for ki in range(3):
        for kj in range(3):
            d = ki * wp + kj                              # flat-grid shift
            xs = x_ref[0, :, d:d + w1c]                   # (Cin, w1c)
            acc1 = acc1 + jnp.dot(w1_ref[ki * 3 + kj], xs,
                                  preferred_element_type=f32)
    # bias + ReLU; zero the padding frame (and tail) so h1 doubles as conv2's
    # zero-padded input on the same flattened grid.
    h1 = jnp.maximum(acc1 + b1_ref[...], 0.0) * mask_ref[...]
    h1_ref[...] = h1                                      # full unmasked store

    # ---- conv2: 3x3 / stride 2 / pad 1, computed densely at stride 1;
    #      stride-2 + Flatten selection is folded into the fc1 weight.
    acc2 = jnp.zeros((c2, w2c), f32)
    for ki in range(3):
        for kj in range(3):
            d = ki * wp + kj
            hs = h1_ref[:, d:d + w2c]                     # (C1, w2c)
            acc2 = acc2 + jnp.dot(w2_ref[ki * 3 + kj], hs,
                                  preferred_element_type=f32)
    h2 = jnp.maximum(acc2 + b2_ref[...], 0.0)             # (C2, w2c)

    # ---- fc1 + ReLU: per conv2 channel, (1, w2c) x (w2c, nh) dot
    acc3 = jnp.zeros((1, nh), f32)
    for c in range(c2):
        acc3 = acc3 + jnp.dot(h2[c:c + 1, :], w1fc_ref[c],
                              preferred_element_type=f32)
    h3 = jnp.maximum(acc3 + b1fc_ref[...], 0.0)           # (1, nh)

    # ---- fc2
    out = jnp.dot(h3, w2fc_ref[...], preferred_element_type=f32) + b2fc_ref[...]
    o_ref[0] = out.astype(o_ref.dtype)                    # (1, n_out)


# ----------------------------------------------------------------------------
# Wrapper: boundary layout conversion + weight pre-arrangement + pallas_call
# ----------------------------------------------------------------------------
def onnx_converter_forward(x, params):
    """x: (N, Cin, H, W) float32 (NCHW) -> (N, 10)."""
    n, cin, h, w = x.shape
    c1 = params["conv1_w"].shape[0]
    c2 = params["conv2_w"].shape[0]
    nh = params["fc1_w"].shape[1]
    nout = params["fc2_w"].shape[1]

    hp, wp = h + 2, w + 2              # padded grid (pad=1 for both convs)
    g = hp * wp                        # flattened padded-grid size (324)
    shift = 2 * wp + 2                 # max 3x3 tap shift on the flat grid
    lead = wp + 1                      # leading margin so conv1 shifts are >= 0
    ho2 = (h + 2 - 3) // 2 + 1         # conv2 output spatial (stride 2)
    wo2 = (w + 2 - 3) // 2 + 1

    w2c = _round_up(g, 128)            # conv2 / fc1 working width   (384)
    w1c = _round_up(w2c + shift, 128)  # conv1 working width         (512)
    xw = _round_up(w1c + shift, 128)   # padded-image buffer width   (640)

    f32 = jnp.float32

    # --- input: NCHW -> channels-first flattened padded grid with a leading
    #     zero margin so all 9 conv1 tap shifts are plain static lane windows.
    xp = jnp.pad(x.astype(f32), ((0, 0), (0, 0), (1, 1), (1, 1)))   # (n,Cin,hp,wp)
    xflat = xp.reshape(n, cin, g)
    x_buf = jnp.pad(xflat, ((0, 0), (0, 0), (lead, xw - lead - g)))  # (n,Cin,xw)

    # --- conv weights: (Cout, Cin, 3, 3) -> tap-major (9, Cout, Cin)
    w1 = params["conv1_w"].astype(f32).transpose(2, 3, 0, 1).reshape(9, c1, cin)
    w2 = params["conv2_w"].astype(f32).transpose(2, 3, 0, 1).reshape(9, c2, c1)
    b1 = params["conv1_b"].astype(f32).reshape(c1, 1)
    b2 = params["conv2_b"].astype(f32).reshape(c2, 1)

    # --- interior mask: 1 inside the original HxW, 0 on the padding frame /
    #     buffer tail (makes h1 directly usable as conv2's zero-padded input).
    ii = jnp.arange(hp)[:, None]
    jj = jnp.arange(wp)[None, :]
    interior = ((ii >= 1) & (ii <= h) & (jj >= 1) & (jj <= w)).reshape(g)
    mask = jnp.zeros((1, w1c), f32).at[0, :g].set(interior.astype(f32))

    # --- fc1 weight: zero-expand onto the dense stride-1 conv2 output grid
    #     (folds the stride-2 selection + NCHW Flatten order).
    fc1_w = params["fc1_w"].astype(f32).reshape(c2, ho2 * wo2, nh)
    r_idx = (2 * jnp.arange(ho2)[:, None] * wp
             + 2 * jnp.arange(wo2)[None, :]).reshape(-1)             # (ho2*wo2,)
    w1fc = jnp.zeros((c2, w2c, nh), f32).at[:, r_idx, :].set(fc1_w)  # (c2,w2c,nh)
    b1fc = params["fc1_b"].astype(f32).reshape(1, nh)

    w2fc = params["fc2_w"].astype(f32)                               # (nh, nout)
    b2fc = params["fc2_b"].astype(f32).reshape(1, nout)

    kernel = functools.partial(_fused_forward_kernel, wp=wp)

    out = pl.pallas_call(
        kernel,
        out_shape=jax.ShapeDtypeStruct((n, 1, nout), f32),
        grid_spec=pltpu.PrefetchScalarGridSpec(
            num_scalar_prefetch=0,
            grid=(n,),
            in_specs=[
                pl.BlockSpec((1, cin, xw), lambda b: (b, 0, 0)),     # image b
                pl.BlockSpec((9, c1, cin), lambda b: (0, 0, 0)),     # conv1 w
                pl.BlockSpec((c1, 1), lambda b: (0, 0)),             # conv1 b
                pl.BlockSpec((1, w1c), lambda b: (0, 0)),            # frame mask
                pl.BlockSpec((9, c2, c1), lambda b: (0, 0, 0)),      # conv2 w
                pl.BlockSpec((c2, 1), lambda b: (0, 0)),             # conv2 b
                pl.BlockSpec((c2, w2c, nh), lambda b: (0, 0, 0)),    # fc1 w (exp)
                pl.BlockSpec((1, nh), lambda b: (0, 0)),             # fc1 b
                pl.BlockSpec((nh, nout), lambda b: (0, 0)),          # fc2 w
                pl.BlockSpec((1, nout), lambda b: (0, 0)),           # fc2 b
            ],
            out_specs=pl.BlockSpec((1, 1, nout), lambda b: (b, 0, 0)),
            scratch_shapes=[pltpu.VMEM((c1, w1c), f32)],
        ),
        compiler_params=pltpu.CompilerParams(
            dimension_semantics=("parallel",),
        ),
    )(x_buf, w1, b1, mask, w2, b2, w1fc, b1fc, w2fc, b2fc)

    return out.reshape(n, nout)


# ----------------------------------------------------------------------------
# Pure-JAX reference (for correctness check)
# ----------------------------------------------------------------------------
def _reference_forward(x, params):
    def conv(x, w, b, stride, pad):
        y = jax.lax.conv_general_dilated(
            x, w, window_strides=(stride, stride),
            padding=[(pad, pad), (pad, pad)],
            dimension_numbers=("NCHW", "OIHW", "NCHW"))
        return y + b[None, :, None, None]

    h = jnp.maximum(conv(x, params["conv1_w"], params["conv1_b"], 1, 1), 0.0)
    h = jnp.maximum(conv(h, params["conv2_w"], params["conv2_b"], 2, 1), 0.0)
    h = h.reshape(h.shape[0], -1)
    h = jnp.maximum(h @ params["fc1_w"] + params["fc1_b"], 0.0)
    return h @ params["fc2_w"] + params["fc2_b"]


# ----------------------------------------------------------------------------
# Deterministic parameter construction (synthetic "unpacked ONNX weights")
# ----------------------------------------------------------------------------
def make_params(key):
    ks = jax.random.split(key, 8)
    scale = 0.1
    return {
        "conv1_w": scale * jax.random.normal(ks[0], (8, 4, 3, 3), jnp.float32),
        "conv1_b": scale * jax.random.normal(ks[1], (8,), jnp.float32),
        "conv2_w": scale * jax.random.normal(ks[2], (8, 8, 3, 3), jnp.float32),
        "conv2_b": scale * jax.random.normal(ks[3], (8,), jnp.float32),
        "fc1_w":   scale * jax.random.normal(ks[4], (8 * 8 * 8, 32), jnp.float32),
        "fc1_b":   scale * jax.random.normal(ks[5], (32,), jnp.float32),
        "fc2_w":   scale * jax.random.normal(ks[6], (32, 10), jnp.float32),
        "fc2_b":   scale * jax.random.normal(ks[7], (10,), jnp.float32),
    }


if __name__ == "__main__":
    key = jax.random.PRNGKey(0)
    k_x, k_p = jax.random.split(key)
    x = jax.random.normal(k_x, (2, 4, 16, 16), jnp.float32)  # NCHW
    params = make_params(k_p)

    out = jax.jit(onnx_converter_forward)(x, params)
    out = jax.block_until_ready(out)

    ref = _reference_forward(x, params)
    assert out.shape == (2, 10)
    assert jnp.allclose(out, ref, atol=2e-4, rtol=2e-4), "mismatch vs reference"

    print("KERNEL_OK")
</pallas_src>

<mosaic_0001>
module attributes {stable_mosaic.version = 11 : i64} {
  func.func @_fused_forward_kernel(%arg0: i32, %arg1: memref<1x4x640xf32, #tpu.memory_space<vmem>>, %arg2: memref<9x8x4xf32, #tpu.memory_space<vmem>>, %arg3: memref<8x1xf32, #tpu.memory_space<vmem>>, %arg4: memref<1x512xf32, #tpu.memory_space<vmem>>, %arg5: memref<9x8x8xf32, #tpu.memory_space<vmem>>, %arg6: memref<8x1xf32, #tpu.memory_space<vmem>>, %arg7: memref<8x384x32xf32, #tpu.memory_space<vmem>>, %arg8: memref<1x32xf32, #tpu.memory_space<vmem>>, %arg9: memref<32x10xf32, #tpu.memory_space<vmem>>, %arg10: memref<1x10xf32, #tpu.memory_space<vmem>>, %arg11: memref<1x1x10xf32, #tpu.memory_space<vmem>>, %arg12: memref<8x512xf32, #tpu.memory_space<vmem>>) attributes {dimension_semantics = [#tpu.dimension_semantics<parallel>], iteration_bounds = array<i64: 2>, scalar_prefetch = 0 : i64, scratch_operands = 1 : i64, tpu.core_type = #tpu.core_type<tc>, window_params = [{transform_indices = @transform_0, window_bounds = array<i64: 1, 4, 640>}, {pipeline_mode = #tpu.pipeline_mode<synchronous>, transform_indices = @transform_1, window_bounds = array<i64: 9, 8, 4>}, {pipeline_mode = #tpu.pipeline_mode<synchronous>, transform_indices = @transform_2, window_bounds = array<i64: 8, 1>}, {pipeline_mode = #tpu.pipeline_mode<synchronous>, transform_indices = @transform_3, window_bounds = array<i64: 1, 512>}, {pipeline_mode = #tpu.pipeline_mode<synchronous>, transform_indices = @transform_4, window_bounds = array<i64: 9, 8, 8>}, {pipeline_mode = #tpu.pipeline_mode<synchronous>, transform_indices = @transform_5, window_bounds = array<i64: 8, 1>}, {pipeline_mode = #tpu.pipeline_mode<synchronous>, transform_indices = @transform_6, window_bounds = array<i64: 8, 384, 32>}, {pipeline_mode = #tpu.pipeline_mode<synchronous>, transform_indices = @transform_7, window_bounds = array<i64: 1, 32>}, {pipeline_mode = #tpu.pipeline_mode<synchronous>, transform_indices = @transform_8, window_bounds = array<i64: 32, 10>}, {pipeline_mode = #tpu.pipeline_mode<synchronous>, transform_indices = @transform_9, window_bounds = array<i64: 1, 10>}, {transform_indices = @transform_10, window_bounds = array<i64: 1, 1, 10>}]} {
    %cst = arith.constant 0.000000e+00 : f32
    %0 = vector.broadcast %cst : f32 to vector<8x512xf32>
    %c0 = arith.constant 0 : index
    %c0_0 = arith.constant 0 : index
    %c0_1 = arith.constant 0 : index
    %1 = vector.load %arg1[%c0, %c0_0, %c0_1] : memref<1x4x640xf32, #tpu.memory_space<vmem>>, vector<1x4x512xf32>
    %2 = vector.shape_cast %1 : vector<1x4x512xf32> to vector<4x512xf32>
    %c0_2 = arith.constant 0 : index
    %c0_3 = arith.constant 0 : index
    %c0_4 = arith.constant 0 : index
    %3 = vector.load %arg2[%c0_2, %c0_3, %c0_4] : memref<9x8x4xf32, #tpu.memory_space<vmem>>, vector<1x8x4xf32>
    %4 = vector.shape_cast %3 : vector<1x8x4xf32> to vector<8x4xf32>
    %cst_5 = arith.constant dense<0.000000e+00> : vector<8x512xf32>
    %5 = tpu.matmul %4, %2, %cst_5 {dimension_numbers = #tpu.dot_dimension_numbers<[1], [0], [0], [1], [0, 0, 1, 1], [], []>} : vector<8x4xf32>, vector<4x512xf32>, vector<8x512xf32> -> vector<8x512xf32>
    %6 = arith.addf %0, %5 : vector<8x512xf32>
    %c0_6 = arith.constant 0 : index
    %c0_7 = arith.constant 0 : index
    %c1 = arith.constant 1 : index
    %7 = vector.load %arg1[%c0_6, %c0_7, %c1] : memref<1x4x640xf32, #tpu.memory_space<vmem>>, vector<1x4x512xf32>
    %8 = vector.shape_cast %7 : vector<1x4x512xf32> to vector<4x512xf32>
    %c1_8 = arith.constant 1 : index
    %c0_9 = arith.constant 0 : index
    %c0_10 = arith.constant 0 : index
    %9 = vector.load %arg2[%c1_8, %c0_9, %c0_10] : memref<9x8x4xf32, #tpu.memory_space<vmem>>, vector<1x8x4xf32>
    %10 = vector.shape_cast %9 : vector<1x8x4xf32> to vector<8x4xf32>
    %cst_11 = arith.constant dense<0.000000e+00> : vector<8x512xf32>
    %11 = tpu.matmul %10, %8, %cst_11 {dimension_numbers = #tpu.dot_dimension_numbers<[1], [0], [0], [1], [0, 0, 1, 1], [], []>} : vector<8x4xf32>, vector<4x512xf32>, vector<8x512xf32> -> vector<8x512xf32>
    %12 = arith.addf %6, %11 : vector<8x512xf32>
    %c0_12 = arith.constant 0 : index
    %c0_13 = arith.constant 0 : index
    %c2 = arith.constant 2 : index
    %13 = vector.load %arg1[%c0_12, %c0_13, %c2] : memref<1x4x640xf32, #tpu.memory_space<vmem>>, vector<1x4x512xf32>
    %14 = vector.shape_cast %13 : vector<1x4x512xf32> to vector<4x512xf32>
    %c2_14 = arith.constant 2 : index
    %c0_15 = arith.constant 0 : index
    %c0_16 = arith.constant 0 : index
    %15 = vector.load %arg2[%c2_14, %c0_15, %c0_16] : memref<9x8x4xf32, #tpu.memory_space<vmem>>, vector<1x8x4xf32>
    %16 = vector.shape_cast %15 : vector<1x8x4xf32> to vector<8x4xf32>
    %cst_17 = arith.constant dense<0.000000e+00> : vector<8x512xf32>
    %17 = tpu.matmul %16, %14, %cst_17 {dimension_numbers = #tpu.dot_dimension_numbers<[1], [0], [0], [1], [0, 0, 1, 1], [], []>} : vector<8x4xf32>, vector<4x512xf32>, vector<8x512xf32> -> vector<8x512xf32>
    %18 = arith.addf %12, %17 : vector<8x512xf32>
    %c0_18 = arith.constant 0 : index
    %c0_19 = arith.constant 0 : index
    %c18 = arith.constant 18 : index
    %19 = vector.load %arg1[%c0_18, %c0_19, %c18] : memref<1x4x640xf32, #tpu.memory_space<vmem>>, vector<1x4x512xf32>
    %20 = vector.shape_cast %19 : vector<1x4x512xf32> to vector<4x512xf32>
    %c3 = arith.constant 3 : index
    %c0_20 = arith.constant 0 : index
    %c0_21 = arith.constant 0 : index
    %21 = vector.load %arg2[%c3, %c0_20, %c0_21] : memref<9x8x4xf32, #tpu.memory_space<vmem>>, vector<1x8x4xf32>
    %22 = vector.shape_cast %21 : vector<1x8x4xf32> to vector<8x4xf32>
    %cst_22 = arith.constant dense<0.000000e+00> : vector<8x512xf32>
    %23 = tpu.matmul %22, %20, %cst_22 {dimension_numbers = #tpu.dot_dimension_numbers<[1], [0], [0], [1], [0, 0, 1, 1], [], []>} : vector<8x4xf32>, vector<4x512xf32>, vector<8x512xf32> -> vector<8x512xf32>
    %24 = arith.addf %18, %23 : vector<8x512xf32>
    %c0_23 = arith.constant 0 : index
    %c0_24 = arith.constant 0 : index
    %c19 = arith.constant 19 : index
    %25 = vector.load %arg1[%c0_23, %c0_24, %c19] : memref<1x4x640xf32, #tpu.memory_space<vmem>>, vector<1x4x512xf32>
    %26 = vector.shape_cast %25 : vector<1x4x512xf32> to vector<4x512xf32>
    %c4 = arith.constant 4 : index
    %c0_25 = arith.constant 0 : index
    %c0_26 = arith.constant 0 : index
    %27 = vector.load %arg2[%c4, %c0_25, %c0_26] : memref<9x8x4xf32, #tpu.memory_space<vmem>>, vector<1x8x4xf32>
    %28 = vector.shape_cast %27 : vector<1x8x4xf32> to vector<8x4xf32>
    %cst_27 = arith.constant dense<0.000000e+00> : vector<8x512xf32>
    %29 = tpu.matmul %28, %26, %cst_27 {dimension_numbers = #tpu.dot_dimension_numbers<[1], [0], [0], [1], [0, 0, 1, 1], [], []>} : vector<8x4xf32>, vector<4x512xf32>, vector<8x512xf32> -> vector<8x512xf32>
    %30 = arith.addf %24, %29 : vector<8x512xf32>
    %c0_28 = arith.constant 0 : index
    %c0_29 = arith.constant 0 : index
    %c20 = arith.constant 20 : index
    %31 = vector.load %arg1[%c0_28, %c0_29, %c20] : memref<1x4x640xf32, #tpu.memory_space<vmem>>, vector<1x4x512xf32>
    %32 = vector.shape_cast %31 : vector<1x4x512xf32> to vector<4x512xf32>
    %c5 = arith.constant 5 : index
    %c0_30 = arith.constant 0 : index
    %c0_31 = arith.constant 0 : index
    %33 = vector.load %arg2[%c5, %c0_30, %c0_31] : memref<9x8x4xf32, #tpu.memory_space<vmem>>, vector<1x8x4xf32>
    %34 = vector.shape_cast %33 : vector<1x8x4xf32> to vector<8x4xf32>
    %cst_32 = arith.constant dense<0.000000e+00> : vector<8x512xf32>
    %35 = tpu.matmul %34, %32, %cst_32 {dimension_numbers = #tpu.dot_dimension_numbers<[1], [0], [0], [1], [0, 0, 1, 1], [], []>} : vector<8x4xf32>, vector<4x512xf32>, vector<8x512xf32> -> vector<8x512xf32>
    %36 = arith.addf %30, %35 : vector<8x512xf32>
    %c0_33 = arith.constant 0 : index
    %c0_34 = arith.constant 0 : index
    %c36 = arith.constant 36 : index
    %37 = vector.load %arg1[%c0_33, %c0_34, %c36] : memref<1x4x640xf32, #tpu.memory_space<vmem>>, vector<1x4x512xf32>
    %38 = vector.shape_cast %37 : vector<1x4x512xf32> to vector<4x512xf32>
    %c6 = arith.constant 6 : index
    %c0_35 = arith.constant 0 : index
    %c0_36 = arith.constant 0 : index
    %39 = vector.load %arg2[%c6, %c0_35, %c0_36] : memref<9x8x4xf32, #tpu.memory_space<vmem>>, vector<1x8x4xf32>
    %40 = vector.shape_cast %39 : vector<1x8x4xf32> to vector<8x4xf32>
    %cst_37 = arith.constant dense<0.000000e+00> : vector<8x512xf32>
    %41 = tpu.matmul %40, %38, %cst_37 {dimension_numbers = #tpu.dot_dimension_numbers<[1], [0], [0], [1], [0, 0, 1, 1], [], []>} : vector<8x4xf32>, vector<4x512xf32>, vector<8x512xf32> -> vector<8x512xf32>
    %42 = arith.addf %36, %41 : vector<8x512xf32>
    %c0_38 = arith.constant 0 : index
    %c0_39 = arith.constant 0 : index
    %c37 = arith.constant 37 : index
    %43 = vector.load %arg1[%c0_38, %c0_39, %c37] : memref<1x4x640xf32, #tpu.memory_space<vmem>>, vector<1x4x512xf32>
    %44 = vector.shape_cast %43 : vector<1x4x512xf32> to vector<4x512xf32>
    %c7 = arith.constant 7 : index
    %c0_40 = arith.constant 0 : index
    %c0_41 = arith.constant 0 : index
    %45 = vector.load %arg2[%c7, %c0_40, %c0_41] : memref<9x8x4xf32, #tpu.memory_space<vmem>>, vector<1x8x4xf32>
    %46 = vector.shape_cast %45 : vector<1x8x4xf32> to vector<8x4xf32>
    %cst_42 = arith.constant dense<0.000000e+00> : vector<8x512xf32>
    %47 = tpu.matmul %46, %44, %cst_42 {dimension_numbers = #tpu.dot_dimension_numbers<[1], [0], [0], [1], [0, 0, 1, 1], [], []>} : vector<8x4xf32>, vector<4x512xf32>, vector<8x512xf32> -> vector<8x512xf32>
    %48 = arith.addf %42, %47 : vector<8x512xf32>
    %c0_43 = arith.constant 0 : index
    %c0_44 = arith.constant 0 : index
    %c38 = arith.constant 38 : index
    %49 = vector.load %arg1[%c0_43, %c0_44, %c38] : memref<1x4x640xf32, #tpu.memory_space<vmem>>, vector<1x4x512xf32>
    %50 = vector.shape_cast %49 : vector<1x4x512xf32> to vector<4x512xf32>
    %c8 = arith.constant 8 : index
    %c0_45 = arith.constant 0 : index
    %c0_46 = arith.constant 0 : index
    %51 = vector.load %arg2[%c8, %c0_45, %c0_46] : memref<9x8x4xf32, #tpu.memory_space<vmem>>, vector<1x8x4xf32>
    %52 = vector.shape_cast %51 : vector<1x8x4xf32> to vector<8x4xf32>
    %cst_47 = arith.constant dense<0.000000e+00> : vector<8x512xf32>
    %53 = tpu.matmul %52, %50, %cst_47 {dimension_numbers = #tpu.dot_dimension_numbers<[1], [0], [0], [1], [0, 0, 1, 1], [], []>} : vector<8x4xf32>, vector<4x512xf32>, vector<8x512xf32> -> vector<8x512xf32>
    %54 = arith.addf %48, %53 : vector<8x512xf32>
    %c0_48 = arith.constant 0 : index
    %c0_49 = arith.constant 0 : index
    %55 = vector.load %arg3[%c0_48, %c0_49] : memref<8x1xf32, #tpu.memory_space<vmem>>, vector<8x1xf32>
    %56 = vector.broadcast %55 : vector<8x1xf32> to vector<8x512xf32>
    %57 = arith.addf %54, %56 : vector<8x512xf32>
    %cst_50 = arith.constant 0.000000e+00 : f32
    %58 = vector.broadcast %cst_50 : f32 to vector<8x512xf32>
    %59 = arith.maximumf %57, %58 : vector<8x512xf32>
    %c0_51 = arith.constant 0 : index
    %c0_52 = arith.constant 0 : index
    %60 = vector.load %arg4[%c0_51, %c0_52] : memref<1x512xf32, #tpu.memory_space<vmem>>, vector<1x512xf32>
    %61 = vector.broadcast %60 : vector<1x512xf32> to vector<8x512xf32>
    %62 = arith.mulf %59, %61 : vector<8x512xf32>
    %c0_53 = arith.constant 0 : index
    %c0_54 = arith.constant 0 : index
    %63 = vector.load %arg12[%c0_53, %c0_54] : memref<8x512xf32, #tpu.memory_space<vmem>>, vector<8x512xf32>
    tpu.vector_store %arg12[%c0_53, %c0_54], %62 {strides = array<i32>} : memref<8x512xf32, #tpu.memory_space<vmem>>, vector<8x512xf32>,
    %cst_55 = arith.constant 0.000000e+00 : f32
    %64 = vector.broadcast %cst_55 : f32 to vector<8x384xf32>
    %c0_56 = arith.constant 0 : index
    %c0_57 = arith.constant 0 : index
    %65 = vector.load %arg12[%c0_56, %c0_57] : memref<8x512xf32, #tpu.memory_space<vmem>>, vector<8x384xf32>
    %c0_58 = arith.constant 0 : index
    %c0_59 = arith.constant 0 : index
    %c0_60 = arith.constant 0 : index
    %66 = vector.load %arg5[%c0_58, %c0_59, %c0_60] : memref<9x8x8xf32, #tpu.memory_space<vmem>>, vector<1x8x8xf32>
    %67 = vector.shape_cast %66 : vector<1x8x8xf32> to vector<8x8xf32>
    %cst_61 = arith.constant dense<0.000000e+00> : vector<8x384xf32>
    %68 = tpu.matmul %67, %65, %cst_61 {dimension_numbers = #tpu.dot_dimension_numbers<[1], [0], [0], [1], [0, 0, 1, 1], [], []>} : vector<8x8xf32>, vector<8x384xf32>, vector<8x384xf32> -> vector<8x384xf32>
    %69 = arith.addf %64, %68 : vector<8x384xf32>
    %c0_62 = arith.constant 0 : index
    %c1_63 = arith.constant 1 : index
    %70 = vector.load %arg12[%c0_62, %c1_63] : memref<8x512xf32, #tpu.memory_space<vmem>>, vector<8x384xf32>
    %c1_64 = arith.constant 1 : index
    %c0_65 = arith.constant 0 : index
    %c0_66 = arith.constant 0 : index
    %71 = vector.load %arg5[%c1_64, %c0_65, %c0_66] : memref<9x8x8xf32, #tpu.memory_space<vmem>>, vector<1x8x8xf32>
    %72 = vector.shape_cast %71 : vector<1x8x8xf32> to vector<8x8xf32>
    %cst_67 = arith.constant dense<0.000000e+00> : vector<8x384xf32>
    %73 = tpu.matmul %72, %70, %cst_67 {dimension_numbers = #tpu.dot_dimension_numbers<[1], [0], [0], [1], [0, 0, 1, 1], [], []>} : vector<8x8xf32>, vector<8x384xf32>, vector<8x384xf32> -> vector<8x384xf32>
    %74 = arith.addf %69, %73 : vector<8x384xf32>
    %c0_68 = arith.constant 0 : index
    %c2_69 = arith.constant 2 : index
    %75 = vector.load %arg12[%c0_68, %c2_69] : memref<8x512xf32, #tpu.memory_space<vmem>>, vector<8x384xf32>
    %c2_70 = arith.constant 2 : index
    %c0_71 = arith.constant 0 : index
    %c0_72 = arith.constant 0 : index
    %76 = vector.load %arg5[%c2_70, %c0_71, %c0_72] : memref<9x8x8xf32, #tpu.memory_space<vmem>>, vector<1x8x8xf32>
    %77 = vector.shape_cast %76 : vector<1x8x8xf32> to vector<8x8xf32>
    %cst_73 = arith.constant dense<0.000000e+00> : vector<8x384xf32>
    %78 = tpu.matmul %77, %75, %cst_73 {dimension_numbers = #tpu.dot_dimension_numbers<[1], [0], [0], [1], [0, 0, 1, 1], [], []>} : vector<8x8xf32>, vector<8x384xf32>, vector<8x384xf32> -> vector<8x384xf32>
    %79 = arith.addf %74, %78 : vector<8x384xf32>
    %c0_74 = arith.constant 0 : index
    %c18_75 = arith.constant 18 : index
    %80 = vector.load %arg12[%c0_74, %c18_75] : memref<8x512xf32, #tpu.memory_space<vmem>>, vector<8x384xf32>
    %c3_76 = arith.constant 3 : index
    %c0_77 = arith.constant 0 : index
    %c0_78 = arith.constant 0 : index
    %81 = vector.load %arg5[%c3_76, %c0_77, %c0_78] : memref<9x8x8xf32, #tpu.memory_space<vmem>>, vector<1x8x8xf32>
    %82 = vector.shape_cast %81 : vector<1x8x8xf32> to vector<8x8xf32>
    %cst_79 = arith.constant dense<0.000000e+00> : vector<8x384xf32>
    %83 = tpu.matmul %82, %80, %cst_79 {dimension_numbers = #tpu.dot_dimension_numbers<[1], [0], [0], [1], [0, 0, 1, 1], [], []>} : vector<8x8xf32>, vector<8x384xf32>, vector<8x384xf32> -> vector<8x384xf32>
    %84 = arith.addf %79, %83 : vector<8x384xf32>
    %c0_80 = arith.constant 0 : index
    %c19_81 = arith.constant 19 : index
    %85 = vector.load %arg12[%c0_80, %c19_81] : memref<8x512xf32, #tpu.memory_space<vmem>>, vector<8x384xf32>
    %c4_82 = arith.constant 4 : index
    %c0_83 = arith.constant 0 : index
    %c0_84 = arith.constant 0 : index
    %86 = vector.load %arg5[%c4_82, %c0_83, %c0_84] : memref<9x8x8xf32, #tpu.memory_space<vmem>>, vector<1x8x8xf32>
    %87 = vector.shape_cast %86 : vector<1x8x8xf32> to vector<8x8xf32>
    %cst_85 = arith.constant dense<0.000000e+00> : vector<8x384xf32>
    %88 = tpu.matmul %87, %85, %cst_85 {dimension_numbers = #tpu.dot_dimension_numbers<[1], [0], [0], [1], [0, 0, 1, 1], [], []>} : vector<8x8xf32>, vector<8x384xf32>, vector<8x384xf32> -> vector<8x384xf32>
    %89 = arith.addf %84, %88 : vector<8x384xf32>
    %c0_86 = arith.constant 0 : index
    %c20_87 = arith.constant 20 : index
    %90 = vector.load %arg12[%c0_86, %c20_87] : memref<8x512xf32, #tpu.memory_space<vmem>>, vector<8x384xf32>
    %c5_88 = arith.constant 5 : index
    %c0_89 = arith.constant 0 : index
    %c0_90 = arith.constant 0 : index
    %91 = vector.load %arg5[%c5_88, %c0_89, %c0_90] : memref<9x8x8xf32, #tpu.memory_space<vmem>>, vector<1x8x8xf32>
    %92 = vector.shape_cast %91 : vector<1x8x8xf32> to vector<8x8xf32>
    %cst_91 = arith.constant dense<0.000000e+00> : vector<8x384xf32>
    %93 = tpu.matmul %92, %90, %cst_91 {dimension_numbers = #tpu.dot_dimension_numbers<[1], [0], [0], [1], [0, 0, 1, 1], [], []>} : vector<8x8xf32>, vector<8x384xf32>, vector<8x384xf32> -> vector<8x384xf32>
    %94 = arith.addf %89, %93 : vector<8x384xf32>
    %c0_92 = arith.constant 0 : index
    %c36_93 = arith.constant 36 : index
    %95 = vector.load %arg12[%c0_92, %c36_93] : memref<8x512xf32, #tpu.memory_space<vmem>>, vector<8x384xf32>
    %c6_94 = arith.constant 6 : index
    %c0_95 = arith.constant 0 : index
    %c0_96 = arith.constant 0 : index
    %96 = vector.load %arg5[%c6_94, %c0_95, %c0_96] : memref<9x8x8xf32, #tpu.memory_space<vmem>>, vector<1x8x8xf32>
    %97 = vector.shape_cast %96 : vector<1x8x8xf32> to vector<8x8xf32>
    %cst_97 = arith.constant dense<0.000000e+00> : vector<8x384xf32>
    %98 = tpu.matmul %97, %95, %cst_97 {dimension_numbers = #tpu.dot_dimension_numbers<[1], [0], [0], [1], [0, 0, 1, 1], [], []>} : vector<8x8xf32>, vector<8x384xf32>, vector<8x384xf32> -> vector<8x384xf32>
    %99 = arith.addf %94, %98 : vector<8x384xf32>
    %c0_98 = arith.constant 0 : index
    %c37_99 = arith.constant 37 : index
    %100 = vector.load %arg12[%c0_98, %c37_99] : memref<8x512xf32, #tpu.memory_space<vmem>>, vector<8x384xf32>
    %c7_100 = arith.constant 7 : index
    %c0_101 = arith.constant 0 : index
    %c0_102 = arith.constant 0 : index
    %101 = vector.load %arg5[%c7_100, %c0_101, %c0_102] : memref<9x8x8xf32, #tpu.memory_space<vmem>>, vector<1x8x8xf32>
    %102 = vector.shape_cast %101 : vector<1x8x8xf32> to vector<8x8xf32>
    %cst_103 = arith.constant dense<0.000000e+00> : vector<8x384xf32>
    %103 = tpu.matmul %102, %100, %cst_103 {dimension_numbers = #tpu.dot_dimension_numbers<[1], [0], [0], [1], [0, 0, 1, 1], [], []>} : vector<8x8xf32>, vector<8x384xf32>, vector<8x384xf32> -> vector<8x384xf32>
    %104 = arith.addf %99, %103 : vector<8x384xf32>
    %c0_104 = arith.constant 0 : index
    %c38_105 = arith.constant 38 : index
    %105 = vector.load %arg12[%c0_104, %c38_105] : memref<8x512xf32, #tpu.memory_space<vmem>>, vector<8x384xf32>
    %c8_106 = arith.constant 8 : index
    %c0_107 = arith.constant 0 : index
    %c0_108 = arith.constant 0 : index
    %106 = vector.load %arg5[%c8_106, %c0_107, %c0_108] : memref<9x8x8xf32, #tpu.memory_space<vmem>>, vector<1x8x8xf32>
    %107 = vector.shape_cast %106 : vector<1x8x8xf32> to vector<8x8xf32>
    %cst_109 = arith.constant dense<0.000000e+00> : vector<8x384xf32>
    %108 = tpu.matmul %107, %105, %cst_109 {dimension_numbers = #tpu.dot_dimension_numbers<[1], [0], [0], [1], [0, 0, 1, 1], [], []>} : vector<8x8xf32>, vector<8x384xf32>, vector<8x384xf32> -> vector<8x384xf32>
    %109 = arith.addf %104, %108 : vector<8x384xf32>
    %c0_110 = arith.constant 0 : index
    %c0_111 = arith.constant 0 : index
    %110 = vector.load %arg6[%c0_110, %c0_111] : memref<8x1xf32, #tpu.memory_space<vmem>>, vector<8x1xf32>
    %111 = vector.broadcast %110 : vector<8x1xf32> to vector<8x384xf32>
    %112 = arith.addf %109, %111 : vector<8x384xf32>
    %cst_112 = arith.constant 0.000000e+00 : f32
    %113 = vector.broadcast %cst_112 : f32 to vector<8x384xf32>
    %114 = arith.maximumf %112, %113 : vector<8x384xf32>
    %cst_113 = arith.constant 0.000000e+00 : f32
    %115 = vector.broadcast %cst_113 : f32 to vector<1x32xf32>
    %116 = vector.extract_strided_slice %114 {offsets = [0, 0], sizes = [1, 384], strides = [1, 1]} : vector<8x384xf32> to vector<1x384xf32>
    %c0_114 = arith.constant 0 : index
    %c0_115 = arith.constant 0 : index
    %c0_116 = arith.constant 0 : index
    %117 = vector.load %arg7[%c0_114, %c0_115, %c0_116] : memref<8x384x32xf32, #tpu.memory_space<vmem>>, vector<1x384x32xf32>
    %118 = vector.shape_cast %117 : vector<1x384x32xf32> to vector<384x32xf32>
    %cst_117 = arith.constant dense<0.000000e+00> : vector<1x32xf32>
    %119 = tpu.matmul %116, %118, %cst_117 {dimension_numbers = #tpu.dot_dimension_numbers<[1], [0], [0], [1], [0, 0, 1, 1], [], []>} : vector<1x384xf32>, vector<384x32xf32>, vector<1x32xf32> -> vector<1x32xf32>
    %120 = arith.addf %115, %119 : vector<1x32xf32>
    %121 = vector.extract_strided_slice %114 {offsets = [1, 0], sizes = [1, 384], strides = [1, 1]} : vector<8x384xf32> to vector<1x384xf32>
    %c1_118 = arith.constant 1 : index
    %c0_119 = arith.constant 0 : index
    %c0_120 = arith.constant 0 : index
    %122 = vector.load %arg7[%c1_118, %c0_119, %c0_120] : memref<8x384x32xf32, #tpu.memory_space<vmem>>, vector<1x384x32xf32>
    %123 = vector.shape_cast %122 : vector<1x384x32xf32> to vector<384x32xf32>
    %cst_121 = arith.constant dense<0.000000e+00> : vector<1x32xf32>
    %124 = tpu.matmul %121, %123, %cst_121 {dimension_numbers = #tpu.dot_dimension_numbers<[1], [0], [0], [1], [0, 0, 1, 1], [], []>} : vector<1x384xf32>, vector<384x32xf32>, vector<1x32xf32> -> vector<1x32xf32>
    %125 = arith.addf %120, %124 : vector<1x32xf32>
    %126 = vector.extract_strided_slice %114 {offsets = [2, 0], sizes = [1, 384], strides = [1, 1]} : vector<8x384xf32> to vector<1x384xf32>
    %c2_122 = arith.constant 2 : index
    %c0_123 = arith.constant 0 : index
    %c0_124 = arith.constant 0 : index
    %127 = vector.load %arg7[%c2_122, %c0_123, %c0_124] : memref<8x384x32xf32, #tpu.memory_space<vmem>>, vector<1x384x32xf32>
    %128 = vector.shape_cast %127 : vector<1x384x32xf32> to vector<384x32xf32>
    %cst_125 = arith.constant dense<0.000000e+00> : vector<1x32xf32>
    %129 = tpu.matmul %126, %128, %cst_125 {dimension_numbers = #tpu.dot_dimension_numbers<[1], [0], [0], [1], [0, 0, 1, 1], [], []>} : vector<1x384xf32>, vector<384x32xf32>, vector<1x32xf32> -> vector<1x32xf32>
    %130 = arith.addf %125, %129 : vector<1x32xf32>
    %131 = vector.extract_strided_slice %114 {offsets = [3, 0], sizes = [1, 384], strides = [1, 1]} : vector<8x384xf32> to vector<1x384xf32>
    %c3_126 = arith.constant 3 : index
    %c0_127 = arith.constant 0 : index
    %c0_128 = arith.constant 0 : index
    %132 = vector.load %arg7[%c3_126, %c0_127, %c0_128] : memref<8x384x32xf32, #tpu.memory_space<vmem>>, vector<1x384x32xf32>
    %133 = vector.shape_cast %132 : vector<1x384x32xf32> to vector<384x32xf32>
    %cst_129 = arith.constant dense<0.000000e+00> : vector<1x32xf32>
    %134 = tpu.matmul %131, %133, %cst_129 {dimension_numbers = #tpu.dot_dimension_numbers<[1], [0], [0], [1], [0, 0, 1, 1], [], []>} : vector<1x384xf32>, vector<384x32xf32>, vector<1x32xf32> -> vector<1x32xf32>
    %135 = arith.addf %130, %134 : vector<1x32xf32>
    %136 = vector.extract_strided_slice %114 {offsets = [4, 0], sizes = [1, 384], strides = [1, 1]} : vector<8x384xf32> to vector<1x384xf32>
    %c4_130 = arith.constant 4 : index
    %c0_131 = arith.constant 0 : index
    %c0_132 = arith.constant 0 : index
    %137 = vector.load %arg7[%c4_130, %c0_131, %c0_132] : memref<8x384x32xf32, #tpu.memory_space<vmem>>, vector<1x384x32xf32>
    %138 = vector.shape_cast %137 : vector<1x384x32xf32> to vector<384x32xf32>
    %cst_133 = arith.constant dense<0.000000e+00> : vector<1x32xf32>
    %139 = tpu.matmul %136, %138, %cst_133 {dimension_numbers = #tpu.dot_dimension_numbers<[1], [0], [0], [1], [0, 0, 1, 1], [], []>} : vector<1x384xf32>, vector<384x32xf32>, vector<1x32xf32> -> vector<1x32xf32>
    %140 = arith.addf %135, %139 : vector<1x32xf32>
    %141 = vector.extract_strided_slice %114 {offsets = [5, 0], sizes = [1, 384], strides = [1, 1]} : vector<8x384xf32> to vector<1x384xf32>
    %c5_134 = arith.constant 5 : index
    %c0_135 = arith.constant 0 : index
    %c0_136 = arith.constant 0 : index
    %142 = vector.load %arg7[%c5_134, %c0_135, %c0_136] : memref<8x384x32xf32, #tpu.memory_space<vmem>>, vector<1x384x32xf32>
    %143 = vector.shape_cast %142 : vector<1x384x32xf32> to vector<384x32xf32>
    %cst_137 = arith.constant dense<0.000000e+00> : vector<1x32xf32>
    %144 = tpu.matmul %141, %143, %cst_137 {dimension_numbers = #tpu.dot_dimension_numbers<[1], [0], [0], [1], [0, 0, 1, 1], [], []>} : vector<1x384xf32>, vector<384x32xf32>, vector<1x32xf32> -> vector<1x32xf32>
    %145 = arith.addf %140, %144 : vector<1x32xf32>
    %146 = vector.extract_strided_slice %114 {offsets = [6, 0], sizes = [1, 384], strides = [1, 1]} : vector<8x384xf32> to vector<1x384xf32>
    %c6_138 = arith.constant 6 : index
    %c0_139 = arith.constant 0 : index
    %c0_140 = arith.constant 0 : index
    %147 = vector.load %arg7[%c6_138, %c0_139, %c0_140] : memref<8x384x32xf32, #tpu.memory_space<vmem>>, vector<1x384x32xf32>
    %148 = vector.shape_cast %147 : vector<1x384x32xf32> to vector<384x32xf32>
    %cst_141 = arith.constant dense<0.000000e+00> : vector<1x32xf32>
    %149 = tpu.matmul %146, %148, %cst_141 {dimension_numbers = #tpu.dot_dimension_numbers<[1], [0], [0], [1], [0, 0, 1, 1], [], []>} : vector<1x384xf32>, vector<384x32xf32>, vector<1x32xf32> -> vector<1x32xf32>
    %150 = arith.addf %145, %149 : vector<1x32xf32>
    %151 = vector.extract_strided_slice %114 {offsets = [7, 0], sizes = [1, 384], strides = [1, 1]} : vector<8x384xf32> to vector<1x384xf32>
    %c7_142 = arith.constant 7 : index
    %c0_143 = arith.constant 0 : index
    %c0_144 = arith.constant 0 : index
    %152 = vector.load %arg7[%c7_142, %c0_143, %c0_144] : memref<8x384x32xf32, #tpu.memory_space<vmem>>, vector<1x384x32xf32>
    %153 = vector.shape_cast %152 : vector<1x384x32xf32> to vector<384x32xf32>
    %cst_145 = arith.constant dense<0.000000e+00> : vector<1x32xf32>
    %154 = tpu.matmul %151, %153, %cst_145 {dimension_numbers = #tpu.dot_dimension_numbers<[1], [0], [0], [1], [0, 0, 1, 1], [], []>} : vector<1x384xf32>, vector<384x32xf32>, vector<1x32xf32> -> vector<1x32xf32>
    %155 = arith.addf %150, %154 : vector<1x32xf32>
    %c0_146 = arith.constant 0 : index
    %c0_147 = arith.constant 0 : index
    %156 = vector.load %arg8[%c0_146, %c0_147] : memref<1x32xf32, #tpu.memory_space<vmem>>, vector<1x32xf32>
    %157 = arith.addf %155, %156 : vector<1x32xf32>
    %cst_148 = arith.constant 0.000000e+00 : f32
    %158 = vector.broadcast %cst_148 : f32 to vector<1x32xf32>
    %159 = arith.maximumf %157, %158 : vector<1x32xf32>
    %c0_149 = arith.constant 0 : index
    %c0_150 = arith.constant 0 : index
    %160 = vector.load %arg9[%c0_149, %c0_150] : memref<32x10xf32, #tpu.memory_space<vmem>>, vector<32x10xf32>
    %cst_151 = arith.constant dense<0.000000e+00> : vector<1x10xf32>
    %161 = tpu.matmul %159, %160, %cst_151 {dimension_numbers = #tpu.dot_dimension_numbers<[1], [0], [0], [1], [0, 0, 1, 1], [], []>} : vector<1x32xf32>, vector<32x10xf32>, vector<1x10xf32> -> vector<1x10xf32>
    %c0_152 = arith.constant 0 : index
    %c0_153 = arith.constant 0 : index
    %162 = vector.load %arg10[%c0_152, %c0_153] : memref<1x10xf32, #tpu.memory_space<vmem>>, vector<1x10xf32>
    %163 = arith.addf %161, %162 : vector<1x10xf32>
    %c0_154 = arith.constant 0 : index
    %c0_155 = arith.constant 0 : index
    %c0_156 = arith.constant 0 : index
    %164 = vector.load %arg11[%c0_154, %c0_155, %c0_156] : memref<1x1x10xf32, #tpu.memory_space<vmem>>, vector<1x1x10xf32>
    %165 = vector.shape_cast %164 : vector<1x1x10xf32> to vector<1x10xf32>
    %166 = vector.shape_cast %163 : vector<1x10xf32> to vector<1x1x10xf32>
    tpu.vector_store %arg11[%c0_154, %c0_155, %c0_156], %166 {strides = array<i32>} : memref<1x1x10xf32, #tpu.memory_space<vmem>>, vector<1x1x10xf32>,
    return
  }
  func.func @transform_0(%arg0: i32) -> (i32, i32, i32) {
    %c0_i32 = arith.constant 0 : i32
    %c0_i32_0 = arith.constant 0 : i32
    %c0_i32_1 = arith.constant 0 : i32
    return %arg0, %c0_i32, %c0_i32_0 : i32, i32, i32
  }
  func.func @transform_1(%arg0: i32) -> (i32, i32, i32) {
    %c0_i32 = arith.constant 0 : i32
    %c0_i32_0 = arith.constant 0 : i32
    %c0_i32_1 = arith.constant 0 : i32
    %c0_i32_2 = arith.constant 0 : i32
    return %c0_i32, %c0_i32_0, %c0_i32_1 : i32, i32, i32
  }
  func.func @transform_2(%arg0: i32) -> (i32, i32) {
    %c0_i32 = arith.constant 0 : i32
    %c0_i32_0 = arith.constant 0 : i32
    %c0_i32_1 = arith.constant 0 : i32
    return %c0_i32, %c0_i32_0 : i32, i32
  }
  func.func @transform_3(%arg0: i32) -> (i32, i32) {
    %c0_i32 = arith.constant 0 : i32
    %c0_i32_0 = arith.constant 0 : i32
    %c0_i32_1 = arith.constant 0 : i32
    return %c0_i32, %c0_i32_0 : i32, i32
  }
  func.func @transform_4(%arg0: i32) -> (i32, i32, i32) {
    %c0_i32 = arith.constant 0 : i32
    %c0_i32_0 = arith.constant 0 : i32
    %c0_i32_1 = arith.constant 0 : i32
    %c0_i32_2 = arith.constant 0 : i32
    return %c0_i32, %c0_i32_0, %c0_i32_1 : i32, i32, i32
  }
  func.func @transform_5(%arg0: i32) -> (i32, i32) {
    %c0_i32 = arith.constant 0 : i32
    %c0_i32_0 = arith.constant 0 : i32
    %c0_i32_1 = arith.constant 0 : i32
    return %c0_i32, %c0_i32_0 : i32, i32
  }
  func.func @transform_6(%arg0: i32) -> (i32, i32, i32) {
    %c0_i32 = arith.constant 0 : i32
    %c0_i32_0 = arith.constant 0 : i32
    %c0_i32_1 = arith.constant 0 : i32
    %c0_i32_2 = arith.constant 0 : i32
    return %c0_i32, %c0_i32_0, %c0_i32_1 : i32, i32, i32
  }
  func.func @transform_7(%arg0: i32) -> (i32, i32) {
    %c0_i32 = arith.constant 0 : i32
    %c0_i32_0 = arith.constant 0 : i32
    %c0_i32_1 = arith.constant 0 : i32
    return %c0_i32, %c0_i32_0 : i32, i32
  }
  func.func @transform_8(%arg0: i32) -> (i32, i32) {
    %c0_i32 = arith.constant 0 : i32
    %c0_i32_0 = arith.constant 0 : i32
    %c0_i32_1 = arith.constant 0 : i32
    return %c0_i32, %c0_i32_0 : i32, i32
  }
  func.func @transform_9(%arg0: i32) -> (i32, i32) {
    %c0_i32 = arith.constant 0 : i32
    %c0_i32_0 = arith.constant 0 : i32
    %c0_i32_1 = arith.constant 0 : i32
    return %c0_i32, %c0_i32_0 : i32, i32
  }
  func.func @transform_10(%arg0: i32) -> (i32, i32, i32) {
    %c0_i32 = arith.constant 0 : i32
    %c0_i32_0 = arith.constant 0 : i32
    %c0_i32_1 = arith.constant 0 : i32
    return %arg0, %c0_i32, %c0_i32_0 : i32, i32, i32
  }
}

</mosaic_0001>

<llo_original>
// kernel: onnx_converter_forward.1
$region0: #{onnx_converter_forward.1}
  #allocation0 [shape = 'u32[]', space=smem, size = 0x4, offset = 0x4, fixed_abs, tag = 'smem constant byte address 0x4 - core index']
  #allocation1 [shape = 'u32[144,128]{1,0:T(1,128)}', space=vmem, size = 0x12000, scoped, tag = 'internal scratch']
  #allocation2 [shape = 'f32[8,512]{1,0:T(8,128)}', space=vmem, size = 0x4000, scoped, tag = 'scratch operand']
  %s0 = inlined_call_operand.vmem [shape: f32[2,4,640], index: 0, kind: input, shape index: {}]
  %s1 = inlined_call_operand.vmem [shape: f32[9,8,4], index: 1, kind: input, shape index: {}]
  %s2 = inlined_call_operand.vmem [shape: f32[8,1], index: 2, kind: input, shape index: {}]
  %s3 = inlined_call_operand.vmem [shape: f32[1,512], index: 3, kind: input, shape index: {}]
  %s4 = inlined_call_operand.vmem [shape: f32[9,8,8], index: 4, kind: input, shape index: {}]
  %s5 = inlined_call_operand.vmem [shape: f32[8,1], index: 5, kind: input, shape index: {}]
  %s6 = inlined_call_operand.vmem [shape: f32[8,384,32], index: 6, kind: input, shape index: {}]
  %s7 = inlined_call_operand.vmem [shape: f32[1,32], index: 7, kind: input, shape index: {}]
  %s8 = inlined_call_operand.vmem [shape: f32[32,10], index: 8, kind: input, shape index: {}]
  %s9 = inlined_call_operand.vmem [shape: f32[1,10], index: 9, kind: input, shape index: {}]
  %s10 = inlined_call_operand.hbm [shape: f32[2,1,10], index: 10, kind: output, shape index: {}]
  %s11 = sld [smem:[#allocation0]]
  $region73: #{onnx_converter_forward.1} parent=0
    _
  %s13 = ssub.s32 1, %s11
  %s14 = scalar_select 0, %s13, %s11
  $region1: #{onnx_converter_forward.1} parent=0
    #allocation3 [shape = 'u8[1024]{0}', space=vmem, size = 0x400, scoped, tag = 'output window, operand 0']
    #allocation4 [shape = 's32[2]{0}', space=sflag, size = 0x8, scoped, tag = 'scoped memory for onnx_converter_forward.1']
    %15 = vsyncpa [#allocation4], 0
    %s16 = scalar_lea.sflag [#allocation4], 1
    %17 = vsyncpa %s16, 0
    loop: start=0, step=1, limit=4
    $region2: #{onnx_converter_forward.1} parent=1 // loop_pre_header
      _
    $region3: #{onnx_converter_forward.1} parent=1 // loop_header
      %s19 = sphi 0, %s23
      %p20 = scmp.ge.s32.totalorder %s19, 4
      %s29 = sphi 0, %s31
      %s32 = sphi 0, %s29
      %s33 = sphi 0, %s32
      %s49 = sphi 0, %s33
      %s53 = sphi 0, %s53
      %s55 = sphi 0, %s53
      %s56 = sphi 0, %s55
      %s70 = sphi 0, %s56
      %s74 = sphi 0, %s74
      %s76 = sphi 0, %s74
      %s77 = sphi 0, %s76
      %s91 = sphi 0, %s77
      %s95 = sphi 0, %s95
      %s97 = sphi 0, %s95
      %s98 = sphi 0, %s97
      %s112 = sphi 0, %s98
      %s116 = sphi 0, %s116
      %s118 = sphi 0, %s116
      %s119 = sphi 0, %s118
      %s133 = sphi 0, %s119
      %s137 = sphi 0, %s137
      %s139 = sphi 0, %s137
      %s140 = sphi 0, %s139
      %s154 = sphi 0, %s140
      %s158 = sphi 0, %s158
      %s160 = sphi 0, %s158
      %s161 = sphi 0, %s160
      %s175 = sphi 0, %s161
      %s179 = sphi 0, %s179
      %s181 = sphi 0, %s179
      %s182 = sphi 0, %s181
      %s196 = sphi 0, %s182
      %s200 = sphi 0, %s200
      %s202 = sphi 0, %s200
      %s203 = sphi 0, %s202
      %s217 = sphi 0, %s203
      %s221 = sphi 0, %s221
      %s223 = sphi 0, %s221
      %s224 = sphi 0, %s223
      %s238 = sphi 0, %s224
      %s244 = sphi 0, %s246
      %s247 = sphi 0, %s244
      %s248 = sphi 0, %s247
      %s264 = sphi 0, %s248
    $region4: #{onnx_converter_forward.1} parent=1 // loop_header_branch
      %22 = sbr.rel (%p20) target = $region8
    $region5: #{onnx_converter_forward.1} parent=1 // loop_body
      %s24 = ssub.s32 %s19, 1
      %s25 = ssub.s32 %s19, 2
      %s26 = sadd.s32 %s19, 1
      %s27 = ssub.s32 %s19, %s26
      %p28 = scmp.eq.s32.totalorder %s27, 0
      %s30 = sadd.s32 %s29, 1
      %s31 = scalar_select %p28, %s29, %s30
      %p34 = pneg %p28
      %p35 = scmp.eq.s32.totalorder %s19, 1
      %p36 = por %p34, %p35
      %p37 = scmp.ne.s32.totalorder %s29, %s32
      %p38 = scmp.eq.s32.totalorder %s19, 0
      %p39 = por %p37, %p38
      %p40 = scmp.ne.s32.totalorder %s29, %s32
      %p41 = scmp.eq.s32.totalorder %s24, 1
      %p42 = por %p40, %p41
      %p43 = scmp.ne.s32.totalorder %s32, %s33
      %p44 = scmp.eq.s32.totalorder %s24, 0
      %p45 = por %p43, %p44
      %p46 = scmp.ne.s32.totalorder %s32, %s33
      %p47 = scmp.eq.s32.totalorder %s25, 1
      %p48 = por %p46, %p47
      %p50 = scmp.ne.s32.totalorder %s33, %s49
      %p51 = scmp.eq.s32.totalorder %s25, 0
      %p52 = por %p50, %p51
      %s54 = sadd.s32 %s53, 1
      %p57 = scmp.eq.s32.totalorder %s19, 1
      %p58 = scmp.ne.s32.totalorder %s53, %s55
      %p59 = scmp.eq.s32.totalorder %s19, 0
      %p60 = por %p58, %p59
      %p61 = scmp.ne.s32.totalorder %s53, %s55
      %p62 = scmp.eq.s32.totalorder %s24, 1
      %p63 = por %p61, %p62
      %p64 = scmp.ne.s32.totalorder %s55, %s56
      %p65 = scmp.eq.s32.totalorder %s24, 0
      %p66 = por %p64, %p65
      %p67 = scmp.ne.s32.totalorder %s55, %s56
      %p68 = scmp.eq.s32.totalorder %s25, 1
      %p69 = por %p67, %p68
      %p71 = scmp.ne.s32.totalorder %s56, %s70
      %p72 = scmp.eq.s32.totalorder %s25, 0
      %p73 = por %p71, %p72
      %s75 = sadd.s32 %s74, 1
      %p78 = scmp.eq.s32.totalorder %s19, 1
      %p79 = scmp.ne.s32.totalorder %s74, %s76
      %p80 = scmp.eq.s32.totalorder %s19, 0
      %p81 = por %p79, %p80
      %p82 = scmp.ne.s32.totalorder %s74, %s76
      %p83 = scmp.eq.s32.totalorder %s24, 1
      %p84 = por %p82, %p83
      %p85 = scmp.ne.s32.totalorder %s76, %s77
      %p86 = scmp.eq.s32.totalorder %s24, 0
      %p87 = por %p85, %p86
      %p88 = scmp.ne.s32.totalorder %s76, %s77
      %p89 = scmp.eq.s32.totalorder %s25, 1
      %p90 = por %p88, %p89
      %p92 = scmp.ne.s32.totalorder %s77, %s91
      %p93 = scmp.eq.s32.totalorder %s25, 0
      %p94 = por %p92, %p93
      %s96 = sadd.s32 %s95, 1
      %p99 = scmp.eq.s32.totalorder %s19, 1
      %p100 = scmp.ne.s32.totalorder %s95, %s97
      %p101 = scmp.eq.s32.totalorder %s19, 0
      %p102 = por %p100, %p101
      %p103 = scmp.ne.s32.totalorder %s95, %s97
      %p104 = scmp.eq.s32.totalorder %s24, 1
      %p105 = por %p103, %p104
      %p106 = scmp.ne.s32.totalorder %s97, %s98
      %p107 = scmp.eq.s32.totalorder %s24, 0
      %p108 = por %p106, %p107
      %p109 = scmp.ne.s32.totalorder %s97, %s98
      %p110 = scmp.eq.s32.totalorder %s25, 1
      %p111 = por %p109, %p110
      %p113 = scmp.ne.s32.totalorder %s98, %s112
      %p114 = scmp.eq.s32.totalorder %s25, 0
      %p115 = por %p113, %p114
      %s117 = sadd.s32 %s116, 1
      %p120 = scmp.eq.s32.totalorder %s19, 1
      %p121 = scmp.ne.s32.totalorder %s116, %s118
      %p122 = scmp.eq.s32.totalorder %s19, 0
      %p123 = por %p121, %p122
      %p124 = scmp.ne.s32.totalorder %s116, %s118
      %p125 = scmp.eq.s32.totalorder %s24, 1
      %p126 = por %p124, %p125
      %p127 = scmp.ne.s32.totalorder %s118, %s119
      %p128 = scmp.eq.s32.totalorder %s24, 0
      %p129 = por %p127, %p128
      %p130 = scmp.ne.s32.totalorder %s118, %s119
      %p131 = scmp.eq.s32.totalorder %s25, 1
      %p132 = por %p130, %p131
      %p134 = scmp.ne.s32.totalorder %s119, %s133
      %p135 = scmp.eq.s32.totalorder %s25, 0
      %p136 = por %p134, %p135
      %s138 = sadd.s32 %s137, 1
      %p141 = scmp.eq.s32.totalorder %s19, 1
      %p142 = scmp.ne.s32.totalorder %s137, %s139
      %p143 = scmp.eq.s32.totalorder %s19, 0
      %p144 = por %p142, %p143
      %p145 = scmp.ne.s32.totalorder %s137, %s139
      %p146 = scmp.eq.s32.totalorder %s24, 1
      %p147 = por %p145, %p146
      %p148 = scmp.ne.s32.totalorder %s139, %s140
      %p149 = scmp.eq.s32.totalorder %s24, 0
      %p150 = por %p148, %p149
      %p151 = scmp.ne.s32.totalorder %s139, %s140
      %p152 = scmp.eq.s32.totalorder %s25, 1
      %p153 = por %p151, %p152
      %p155 = scmp.ne.s32.totalorder %s140, %s154
      %p156 = scmp.eq.s32.totalorder %s25, 0
      %p157 = por %p155, %p156
      %s159 = sadd.s32 %s158, 1
      %p162 = scmp.eq.s32.totalorder %s19, 1
      %p163 = scmp.ne.s32.totalorder %s158, %s160
      %p164 = scmp.eq.s32.totalorder %s19, 0
      %p165 = por %p163, %p164
      %p166 = scmp.ne.s32.totalorder %s158, %s160
      %p167 = scmp.eq.s32.totalorder %s24, 1
      %p168 = por %p166, %p167
      %p169 = scmp.ne.s32.totalorder %s160, %s161
      %p170 = scmp.eq.s32.totalorder %s24, 0
      %p171 = por %p169, %p170
      %p172 = scmp.ne.s32.totalorder %s160, %s161
      %p173 = scmp.eq.s32.totalorder %s25, 1
      %p174 = por %p172, %p173
      %p176 = scmp.ne.s32.totalorder %s161, %s175
      %p177 = scmp.eq.s32.totalorder %s25, 0
      %p178 = por %p176, %p177
      %s180 = sadd.s32 %s179, 1
      %p183 = scmp.eq.s32.totalorder %s19, 1
      %p184 = scmp.ne.s32.totalorder %s179, %s181
      %p185 = scmp.eq.s32.totalorder %s19, 0
      %p186 = por %p184, %p185
      %p187 = scmp.ne.s32.totalorder %s179, %s181
      %p188 = scmp.eq.s32.totalorder %s24, 1
      %p189 = por %p187, %p188
      %p190 = scmp.ne.s32.totalorder %s181, %s182
      %p191 = scmp.eq.s32.totalorder %s24, 0
      %p192 = por %p190, %p191
      %p193 = scmp.ne.s32.totalorder %s181, %s182
      %p194 = scmp.eq.s32.totalorder %s25, 1
      %p195 = por %p193, %p194
      %p197 = scmp.ne.s32.totalorder %s182, %s196
      %p198 = scmp.eq.s32.totalorder %s25, 0
      %p199 = por %p197, %p198
      %s201 = sadd.s32 %s200, 1
      %p204 = scmp.eq.s32.totalorder %s19, 1
      %p205 = scmp.ne.s32.totalorder %s200, %s202
      %p206 = scmp.eq.s32.totalorder %s19, 0
      %p207 = por %p205, %p206
      %p208 = scmp.ne.s32.totalorder %s200, %s202
      %p209 = scmp.eq.s32.totalorder %s24, 1
      %p210 = por %p208, %p209
      %p211 = scmp.ne.s32.totalorder %s202, %s203
      %p212 = scmp.eq.s32.totalorder %s24, 0
      %p213 = por %p211, %p212
      %p214 = scmp.ne.s32.totalorder %s202, %s203
      %p215 = scmp.eq.s32.totalorder %s25, 1
      %p216 = por %p214, %p215
      %p218 = scmp.ne.s32.totalorder %s203, %s217
      %p219 = scmp.eq.s32.totalorder %s25, 0
      %p220 = por %p218, %p219
      %s222 = sadd.s32 %s221, 1
      %p225 = scmp.eq.s32.totalorder %s19, 1
      %p226 = scmp.ne.s32.totalorder %s221, %s223
      %p227 = scmp.eq.s32.totalorder %s19, 0
      %p228 = por %p226, %p227
      %p229 = scmp.ne.s32.totalorder %s221, %s223
      %p230 = scmp.eq.s32.totalorder %s24, 1
      %p231 = por %p229, %p230
      %p232 = scmp.ne.s32.totalorder %s223, %s224
      %p233 = scmp.eq.s32.totalorder %s24, 0
      %p234 = por %p232, %p233
      %p235 = scmp.ne.s32.totalorder %s223, %s224
      %p236 = scmp.eq.s32.totalorder %s25, 1
      %p237 = por %p235, %p236
      %p239 = scmp.ne.s32.totalorder %s224, %s238
      %p240 = scmp.eq.s32.totalorder %s25, 0
      %p241 = por %p239, %p240
      %s242 = ssub.s32 %s19, %s26
      %p243 = scmp.eq.s32.totalorder %s242, 0
      %s245 = sadd.s32 %s244, 1
      %s246 = scalar_select %p243, %s244, %s245
      %p249 = pneg %p243
      %p250 = scmp.eq.s32.totalorder %s19, 1
      %p251 = por %p249, %p250
      %p252 = scmp.ne.s32.totalorder %s244, %s247
      %p253 = scmp.eq.s32.totalorder %s19, 0
      %p254 = por %p252, %p253
      %p255 = scmp.ne.s32.totalorder %s244, %s247
      %p256 = scmp.eq.s32.totalorder %s24, 1
      %p257 = por %p255, %p256
      %p258 = scmp.ne.s32.totalorder %s247, %s248
      %p259 = scmp.eq.s32.totalorder %s24, 0
      %p260 = por %p258, %p259
      %p261 = scmp.ne.s32.totalorder %s247, %s248
      %p262 = scmp.eq.s32.totalorder %s25, 1
      %p263 = por %p261, %p262
      %p265 = scmp.ne.s32.totalorder %s248, %s264
      %p266 = scmp.eq.s32.totalorder %s25, 0
      %p267 = por %p265, %p266
      %p268 = scmp.le.s32.totalorder 1, %s19
      %p269 = scmp.lt.s32.totalorder %s19, 3
      %p270 = pnand %p268, %p269
      %p271 = pneg %p270
      // Predicated region
      $region9: #{onnx_converter_forward.1} parent=5 // pred_check
        _
      $region10: #{onnx_converter_forward.1} parent=5 // pred_check_branch
        %273 = sbr.rel (%p270) target = $region12
      $region11: #{onnx_converter_forward.1} parent=5 // pred_region
        %s274 = ssub.s32 %s19, 1
        // Predicated region
        $region13: #{onnx_converter_forward.1} parent=11 // pred_check
          %p275 = pneg %p66
        $region14: #{onnx_converter_forward.1} parent=11 // pred_check_branch
          %277 = sbr.rel (%p275) target = $region16
        $region15: #{onnx_converter_forward.1} parent=11 // pred_region
          _
        $region16: #{onnx_converter_forward.1} parent=11 // pred_fallthru
          _
        // Predicated region
        $region17: #{onnx_converter_forward.1} parent=11 // pred_check
          %p278 = pneg %p87
        $region18: #{onnx_converter_forward.1} parent=11 // pred_check_branch
          %280 = sbr.rel (%p278) target = $region20
        $region19: #{onnx_converter_forward.1} parent=11 // pred_region
          _
        $region20: #{onnx_converter_forward.1} parent=11 // pred_fallthru
          _
        // Predicated region
        $region21: #{onnx_converter_forward.1} parent=11 // pred_check
          %p281 = pneg %p108
        $region22: #{onnx_converter_forward.1} parent=11 // pred_check_branch
          %283 = sbr.rel (%p281) target = $region24
        $region23: #{onnx_converter_forward.1} parent=11 // pred_region
          _
        $region24: #{onnx_converter_forward.1} parent=11 // pred_fallthru
          _
        // Predicated region
        $region25: #{onnx_converter_forward.1} parent=11 // pred_check
          %p284 = pneg %p129
        $region26: #{onnx_converter_forward.1} parent=11 // pred_check_branch
          %286 = sbr.rel (%p284) target = $region28
        $region27: #{onnx_converter_forward.1} parent=11 // pred_region
          _
        $region28: #{onnx_converter_forward.1} parent=11 // pred_fallthru
          _
        // Predicated region
        $region29: #{onnx_converter_forward.1} parent=11 // pred_check
          %p287 = pneg %p150
        $region30: #{onnx_converter_forward.1} parent=11 // pred_check_branch
          %289 = sbr.rel (%p287) target = $region32
        $region31: #{onnx_converter_forward.1} parent=11 // pred_region
          _
        $region32: #{onnx_converter_forward.1} parent=11 // pred_fallthru
          _
        // Predicated region
        $region33: #{onnx_converter_forward.1} parent=11 // pred_check
          %p290 = pneg %p171
        $region34: #{onnx_converter_forward.1} parent=11 // pred_check_branch
          %292 = sbr.rel (%p290) target = $region36
        $region35: #{onnx_converter_forward.1} parent=11 // pred_region
          _
        $region36: #{onnx_converter_forward.1} parent=11 // pred_fallthru
          _
        // Predicated region
        $region37: #{onnx_converter_forward.1} parent=11 // pred_check
          %p293 = pneg %p192
        $region38: #{onnx_converter_forward.1} parent=11 // pred_check_branch
          %295 = sbr.rel (%p293) target = $region40
        $region39: #{onnx_converter_forward.1} parent=11 // pred_region
          _
        $region40: #{onnx_converter_forward.1} parent=11 // pred_fallthru
          _
        // Predicated region
        $region41: #{onnx_converter_forward.1} parent=11 // pred_check
          %p296 = pneg %p213
        $region42: #{onnx_converter_forward.1} parent=11 // pred_check_branch
          %298 = sbr.rel (%p296) target = $region44
        $region43: #{onnx_converter_forward.1} parent=11 // pred_region
          _
        $region44: #{onnx_converter_forward.1} parent=11 // pred_fallthru
          _
        // Predicated region
        $region45: #{onnx_converter_forward.1} parent=11 // pred_check
          %p299 = pneg %p234
        $region46: #{onnx_converter_forward.1} parent=11 // pred_check_branch
          %301 = sbr.rel (%p299) target = $region48
        $region47: #{onnx_converter_forward.1} parent=11 // pred_region
          _
        $region48: #{onnx_converter_forward.1} parent=11 // pred_fallthru
          _
      $region12: #{onnx_converter_forward.1} parent=5 // pred_fallthru
        _
      %p302 = scmp.lt.s32.totalorder %s19, 2
      // Predicated region
      $region49: #{onnx_converter_forward.1} parent=5 // pred_check
        %p303 = pneg %p302
      $region50: #{onnx_converter_forward.1} parent=5 // pred_check_branch
        %305 = sbr.rel (%p303) target = $region52
      $region51: #{onnx_converter_forward.1} parent=5 // pred_region
        // Predicated region
        $region53: #{onnx_converter_forward.1} parent=51 // pred_check
          %p306 = pneg %p39
        $region54: #{onnx_converter_forward.1} parent=51 // pred_check_branch
          %308 = sbr.rel (%p306) target = $region56
        $region55: #{onnx_converter_forward.1} parent=51 // pred_region
          %p309 = scmp.lt.s32.totalorder %s19, 1
          %s310 = scalar_select %p309, %s19, 1
          %s311 = smul.addr %s310, 5
          %s312 = smul.addr %s311, 4
          %s313 = scalar_lea.vmem %s0, %s312
        $region56: #{onnx_converter_forward.1} parent=51 // pred_fallthru
          _
      $region52: #{onnx_converter_forward.1} parent=5 // pred_fallthru
        _
      %p314 = scmp.le.s32.totalorder 1, %s19
      %p315 = scmp.lt.s32.totalorder %s19, 3
      %p316 = pnand %p314, %p315
      %p317 = pneg %p316
      // Predicated region
      $region57: #{onnx_converter_forward.1} parent=5 // pred_check
        _
      $region58: #{onnx_converter_forward.1} parent=5 // pred_check_branch
        %319 = sbr.rel (%p316) target = $region60
      $region59: #{onnx_converter_forward.1} parent=5 // pred_region
        %s320 = ssub.s32 %s19, 1
        %p321 = scmp.lt.s32.totalorder %s24, 1
        %s322 = scalar_select %p321, %s24, 1
        %s323 = smul.addr %s322, 5
        %s324 = smul.addr %s323, 4
        %s325 = scalar_lea.vmem %s0, %s324
        %p326 = pneg %p45
        %p327 = pneg %p42
        %p328 = pneg %p66
        %p329 = pneg %p63
        %p330 = pneg %p87
        %p331 = pneg %p84
        %p332 = pneg %p108
        %p333 = pneg %p105
        %p334 = pneg %p129
        %p335 = pneg %p126
        %p336 = pneg %p150
        %p337 = pneg %p147
        %p338 = pneg %p171
        %p339 = pneg %p168
        %p340 = pneg %p192
        %p341 = pneg %p189
        %p342 = pneg %p213
        %p343 = pneg %p210
        %p344 = pneg %p234
        %p345 = pneg %p231
        %p346 = pneg %p260
        %p347 = pneg %p257
        %s348 = sand.u32 %s247, 1
        %s349 = scalar_lea.sflag [#allocation4], %s348
        %s350 = sand.u32 %s247, 1
        %s351 = scalar_lea.vmem [#allocation3], %s350
        %p352 = scmp.lt.s32.totalorder %s24, 1
        %s353 = scalar_select %p352, %s24, 1
        %s354 = smul.addr %s353, 5
        %s355 = smul.addr %s354, 4
        %s356 = scalar_lea.vmem %s0, %s355
        %v357 = vld [vmem:[%s356] sm:$0xff]
        %v358 = vld [vmem:[%s356 + $0x8] sm:$0xff]
        %v359 = vld [vmem:[%s1] sm:$0xff]
        %v360 = vld [vmem:[%s356] sm:$0xff]
        %v361 = vld [vmem:[%s356 + $0x8] sm:$0xff]
        %v362 = vld [vmem:[%s356 + $0x10] sm:$0xf]
        %s363 = scalar_lea.vmem %s1, 8
        %v364 = vld [vmem:[%s363] sm:$0xff]
        %v368 = vcombine.high %v360, %v360
        %v369 = vcombine.high %v361, %v361
        %370 = vrot.lane.b32.xlu0 %v360, 127
        %v371 = vpop.permute.xlu0 %370
        %372 = vrot.lane.b32.xlu0 %v368, 127
        %v373 = vpop.permute.xlu0 %372
        %374 = vrot.lane.b32.xlu0 %v361, 127
        %v375 = vpop.permute.xlu0 %374
        %376 = vrot.lane.b32.xlu0 %v369, 127
        %v377 = vpop.permute.xlu0 %376
        %378 = vrot.lane.b32.xlu0 %v362, 127
        %v379 = vpop.permute.xlu0 %378
        %vm380 = vcmask 1039360
        %v381 = vsel %vm380, %v371, %v373
        %v382 = vsel %vm380, %v373, %v375
        %v383 = vsel %vm380, %v375, %v377
        %v384 = vsel %vm380, %v377, %v379
        %vm385 = vcmask 31744
        %v387 = vsel %vm385, %v364, 0
        %vm389 = vcmask 1043456
        %v390 = vsel %vm389, %v381, 0
        %v392 = vsel %vm389, %v382, 0
        %v394 = vsel %vm389, %v383, 0
        %v396 = vsel %vm389, %v384, 0
        %398 = vmatprep.subr.mxu0 0.0
        %399 = vmatpush1.msra.mxu0 0.0
        %400 = vmatprep.subr.mxu0 0.0
        %401 = vmatpush1.msra.mxu0 0.0
        %402 = vmatprep.subr.mxu0 0.0
        %403 = vmatpush1.msra.mxu0 0.0
        %404 = vmatprep.subr.mxu0 0.0
        %405 = vmatpush1.msra.mxu0 0.0
        %406 = vmatprep.subr.mxu0 0.0
        %407 = vmatpush1.msra.mxu0 0.0
        %408 = vmatprep.subr.mxu0 0.0
        %409 = vmatpush1.msra.mxu0 0.0
        %410 = vmatprep.subr.mxu0 0.0
        %411 = vmatpush1.msra.mxu0 0.0
        %412 = vmatprep.subr.mxu0 0.0
        %413 = vmatpush1.msra.mxu0 0.0
        %414 = vmatprep.subr.mxu0 0.0
        %415 = vmatpush1.msra.mxu0 0.0
        %416 = vmatprep.subr.mxu0 0.0
        %417 = vmatpush1.msra.mxu0 0.0
        %418 = vmatprep.subr.mxu0 0.0
        %419 = vmatpush1.msra.mxu0 0.0
        %420 = vmatprep.subr.mxu0 0.0
        %421 = vmatpush1.msra.mxu0 0.0
        %422 = vmatprep.subr.mxu0 0.0
        %423 = vmatpush1.msra.mxu0 0.0
        %424 = vmatprep.subr.mxu0 0.0
        %425 = vmatpush1.msra.mxu0 0.0
        %426 = vmatprep.subr.mxu0 0.0
        %427 = vmatpush1.msra.mxu0 0.0
        %428 = vmatprep.subr.mxu0 %v392
        %429 = vmatpush1.msra.mxu0 %v390
        %430 = vmatprep.subr.mxu0 0.0
        %431 = vmatpush2.msra.mxu0 0.0
        %432 = vmatprep.subr.mxu0 0.0
        %433 = vmatpush2.msra.mxu0 0.0
        %434 = vmatprep.subr.mxu0 0.0
        %435 = vmatpush2.msra.mxu0 0.0
        %436 = vmatprep.subr.mxu0 0.0
        %437 = vmatpush2.msra.mxu0 0.0
        %438 = vmatprep.subr.mxu0 0.0
        %439 = vmatpush2.msra.mxu0 0.0
        %440 = vmatprep.subr.mxu0 0.0
        %441 = vmatpush2.msra.mxu0 0.0
        %442 = vmatprep.subr.mxu0 0.0
        %443 = vmatpush2.msra.mxu0 0.0
        %444 = vmatprep.subr.mxu0 0.0
        %445 = vmatpush2.msra.mxu0 0.0
        %446 = vmatprep.subr.mxu0 0.0
        %447 = vmatpush2.msra.mxu0 0.0
        %448 = vmatprep.subr.mxu0 0.0
        %449 = vmatpush2.msra.mxu0 0.0
        %450 = vmatprep.subr.mxu0 0.0
        %451 = vmatpush2.msra.mxu0 0.0
        %452 = vmatprep.subr.mxu0 0.0
        %453 = vmatpush2.msra.mxu0 0.0
        %454 = vmatprep.subr.mxu0 0.0
        %455 = vmatpush2.msra.mxu0 0.0
        %456 = vmatprep.subr.mxu0 0.0
        %457 = vmatpush2.msra.mxu0 0.0
        %458 = vmatprep.subr.mxu0 0.0
        %459 = vmatpush2.msra.mxu0 0.0
        %460 = vmatprep.subr.mxu0 0.0
        %461 = vmatpush2.msra.mxu0 0.0
        %462 = vmatprep.mubr.f32.mxu0 0.0
        %463 = vmatmul.mubr.f32.gmra.mxu0 %v387
        %v464 = vpop.f32.mrf.mxu0
        %v465 = vadd.f32 0.0, %v464
        %v466 = vpop.f32.mrf.mxu0
        %v467 = vadd.f32 0.0, %v466
        %468 = vdwg.mxu0
        %469 = vmatprep.subr.mxu0 0.0
        %470 = vmatpush1.msra.mxu0 0.0
        %471 = vmatprep.subr.mxu0 0.0
        %472 = vmatpush1.msra.mxu0 0.0
        %473 = vmatprep.subr.mxu0 0.0
        %474 = vmatpush1.msra.mxu0 0.0
        %475 = vmatprep.subr.mxu0 0.0
        %476 = vmatpush1.msra.mxu0 0.0
        %477 = vmatprep.subr.mxu0 0.0
        %478 = vmatpush1.msra.mxu0 0.0
        %479 = vmatprep.subr.mxu0 0.0
        %480 = vmatpush1.msra.mxu0 0.0
        %481 = vmatprep.subr.mxu0 0.0
        %482 = vmatpush1.msra.mxu0 0.0
        %483 = vmatprep.subr.mxu0 0.0
        %484 = vmatpush1.msra.mxu0 0.0
        %485 = vmatprep.subr.mxu0 0.0
        %486 = vmatpush1.msra.mxu0 0.0
        %487 = vmatprep.subr.mxu0 0.0
        %488 = vmatpush1.msra.mxu0 0.0
        %489 = vmatprep.subr.mxu0 0.0
        %490 = vmatpush1.msra.mxu0 0.0
        %491 = vmatprep.subr.mxu0 0.0
        %492 = vmatpush1.msra.mxu0 0.0
        %493 = vmatprep.subr.mxu0 0.0
        %494 = vmatpush1.msra.mxu0 0.0
        %495 = vmatprep.subr.mxu0 0.0
        %496 = vmatpush1.msra.mxu0 0.0
        %497 = vmatprep.subr.mxu0 0.0
        %498 = vmatpush1.msra.mxu0 0.0
        %499 = vmatprep.subr.mxu0 %v396
        %500 = vmatpush1.msra.mxu0 %v394
        %501 = vmatprep.subr.mxu0 0.0
        %502 = vmatpush2.msra.mxu0 0.0
        %503 = vmatprep.subr.mxu0 0.0
        %504 = vmatpush2.msra.mxu0 0.0
        %505 = vmatprep.subr.mxu0 0.0
        %506 = vmatpush2.msra.mxu0 0.0
        %507 = vmatprep.subr.mxu0 0.0
        %508 = vmatpush2.msra.mxu0 0.0
        %509 = vmatprep.subr.mxu0 0.0
        %510 = vmatpush2.msra.mxu0 0.0
        %511 = vmatprep.subr.mxu0 0.0
        %512 = vmatpush2.msra.mxu0 0.0
        %513 = vmatprep.subr.mxu0 0.0
        %514 = vmatpush2.msra.mxu0 0.0
        %515 = vmatprep.subr.mxu0 0.0
        %516 = vmatpush2.msra.mxu0 0.0
        %517 = vmatprep.subr.mxu0 0.0
        %518 = vmatpush2.msra.mxu0 0.0
        %519 = vmatprep.subr.mxu0 0.0
        %520 = vmatpush2.msra.mxu0 0.0
        %521 = vmatprep.subr.mxu0 0.0
        %522 = vmatpush2.msra.mxu0 0.0
        %523 = vmatprep.subr.mxu0 0.0
        %524 = vmatpush2.msra.mxu0 0.0
        %525 = vmatprep.subr.mxu0 0.0
        %526 = vmatpush2.msra.mxu0 0.0
        %527 = vmatprep.subr.mxu0 0.0
        %528 = vmatpush2.msra.mxu0 0.0
        %529 = vmatprep.subr.mxu0 0.0
        %530 = vmatpush2.msra.mxu0 0.0
        %531 = vmatprep.subr.mxu0 0.0
        %532 = vmatpush2.msra.mxu0 0.0
        %533 = vmatprep.mubr.f32.mxu0 0.0
        %534 = vmatmul.mubr.f32.gmra.mxu0 %v387
        %v535 = vpop.f32.mrf.mxu0
        %v536 = vadd.f32 0.0, %v535
        %v537 = vpop.f32.mrf.mxu0
        %v538 = vadd.f32 0.0, %v537
        %539 = vdwg.mxu0
        %v542 = vcombine.high %v357, %v357
        %v543 = vcombine.high %v358, %v358
        %v545 = vsel %vm385, %v359, 0
        %v547 = vsel %vm389, %v357, 0
        %v549 = vsel %vm389, %v542, 0
        %v551 = vsel %vm389, %v358, 0
        %v553 = vsel %vm389, %v543, 0
        %555 = vmatprep.subr.mxu0 0.0
        %556 = vmatpush1.msra.mxu0 0.0
        %557 = vmatprep.subr.mxu0 0.0
        %558 = vmatpush1.msra.mxu0 0.0
        %559 = vmatprep.subr.mxu0 0.0
        %560 = vmatpush1.msra.mxu0 0.0
        %561 = vmatprep.subr.mxu0 0.0
        %562 = vmatpush1.msra.mxu0 0.0
        %563 = vmatprep.subr.mxu0 0.0
        %564 = vmatpush1.msra.mxu0 0.0
        %565 = vmatprep.subr.mxu0 0.0
        %566 = vmatpush1.msra.mxu0 0.0
        %567 = vmatprep.subr.mxu0 0.0
        %568 = vmatpush1.msra.mxu0 0.0
        %569 = vmatprep.subr.mxu0 0.0
        %570 = vmatpush1.msra.mxu0 0.0
        %571 = vmatprep.subr.mxu0 0.0
        %572 = vmatpush1.msra.mxu0 0.0
        %573 = vmatprep.subr.mxu0 0.0
        %574 = vmatpush1.msra.mxu0 0.0
        %575 = vmatprep.subr.mxu0 0.0
        %576 = vmatpush1.msra.mxu0 0.0
        %577 = vmatprep.subr.mxu0 0.0
        %578 = vmatpush1.msra.mxu0 0.0
        %579 = vmatprep.subr.mxu0 0.0
        %580 = vmatpush1.msra.mxu0 0.0
        %581 = vmatprep.subr.mxu0 0.0
        %582 = vmatpush1.msra.mxu0 0.0
        %583 = vmatprep.subr.mxu0 0.0
        %584 = vmatpush1.msra.mxu0 0.0
        %585 = vmatprep.subr.mxu0 %v549
        %586 = vmatpush1.msra.mxu0 %v547
        %587 = vmatprep.subr.mxu0 0.0
        %588 = vmatpush2.msra.mxu0 0.0
        %589 = vmatprep.subr.mxu0 0.0
        %590 = vmatpush2.msra.mxu0 0.0
        %591 = vmatprep.subr.mxu0 0.0
        %592 = vmatpush2.msra.mxu0 0.0
        %593 = vmatprep.subr.mxu0 0.0
        %594 = vmatpush2.msra.mxu0 0.0
        %595 = vmatprep.subr.mxu0 0.0
        %596 = vmatpush2.msra.mxu0 0.0
        %597 = vmatprep.subr.mxu0 0.0
        %598 = vmatpush2.msra.mxu0 0.0
        %599 = vmatprep.subr.mxu0 0.0
        %600 = vmatpush2.msra.mxu0 0.0
        %601 = vmatprep.subr.mxu0 0.0
        %602 = vmatpush2.msra.mxu0 0.0
        %603 = vmatprep.subr.mxu0 0.0
        %604 = vmatpush2.msra.mxu0 0.0
        %605 = vmatprep.subr.mxu0 0.0
        %606 = vmatpush2.msra.mxu0 0.0
        %607 = vmatprep.subr.mxu0 0.0
        %608 = vmatpush2.msra.mxu0 0.0
        %609 = vmatprep.subr.mxu0 0.0
        %610 = vmatpush2.msra.mxu0 0.0
        %611 = vmatprep.subr.mxu0 0.0
        %612 = vmatpush2.msra.mxu0 0.0
        %613 = vmatprep.subr.mxu0 0.0
        %614 = vmatpush2.msra.mxu0 0.0
        %615 = vmatprep.subr.mxu0 0.0
        %616 = vmatpush2.msra.mxu0 0.0
        %617 = vmatprep.subr.mxu0 0.0
        %618 = vmatpush2.msra.mxu0 0.0
        %619 = vmatprep.mubr.f32.mxu0 0.0
        %620 = vmatmul.mubr.f32.gmra.mxu0 %v545
        %v621 = vpop.f32.mrf.mxu0
        %v622 = vadd.f32 %v465, %v621
        %v623 = vpop.f32.mrf.mxu0
        %v624 = vadd.f32 %v467, %v623
        %625 = vdwg.mxu0
        %626 = vmatprep.subr.mxu0 0.0
        %627 = vmatpush1.msra.mxu0 0.0
        %628 = vmatprep.subr.mxu0 0.0
        %629 = vmatpush1.msra.mxu0 0.0
        %630 = vmatprep.subr.mxu0 0.0
        %631 = vmatpush1.msra.mxu0 0.0
        %632 = vmatprep.subr.mxu0 0.0
        %633 = vmatpush1.msra.mxu0 0.0
        %634 = vmatprep.subr.mxu0 0.0
        %635 = vmatpush1.msra.mxu0 0.0
        %636 = vmatprep.subr.mxu0 0.0
        %637 = vmatpush1.msra.mxu0 0.0
        %638 = vmatprep.subr.mxu0 0.0
        %639 = vmatpush1.msra.mxu0 0.0
        %640 = vmatprep.subr.mxu0 0.0
        %641 = vmatpush1.msra.mxu0 0.0
        %642 = vmatprep.subr.mxu0 0.0
        %643 = vmatpush1.msra.mxu0 0.0
        %644 = vmatprep.subr.mxu0 0.0
        %645 = vmatpush1.msra.mxu0 0.0
        %646 = vmatprep.subr.mxu0 0.0
        %647 = vmatpush1.msra.mxu0 0.0
        %648 = vmatprep.subr.mxu0 0.0
        %649 = vmatpush1.msra.mxu0 0.0
        %650 = vmatprep.subr.mxu0 0.0
        %651 = vmatpush1.msra.mxu0 0.0
        %652 = vmatprep.subr.mxu0 0.0
        %653 = vmatpush1.msra.mxu0 0.0
        %654 = vmatprep.subr.mxu0 0.0
        %655 = vmatpush1.msra.mxu0 0.0
        %656 = vmatprep.subr.mxu0 %v553
        %657 = vmatpush1.msra.mxu0 %v551
        %658 = vmatprep.subr.mxu0 0.0
        %659 = vmatpush2.msra.mxu0 0.0
        %660 = vmatprep.subr.mxu0 0.0
        %661 = vmatpush2.msra.mxu0 0.0
        %662 = vmatprep.subr.mxu0 0.0
        %663 = vmatpush2.msra.mxu0 0.0
        %664 = vmatprep.subr.mxu0 0.0
        %665 = vmatpush2.msra.mxu0 0.0
        %666 = vmatprep.subr.mxu0 0.0
        %667 = vmatpush2.msra.mxu0 0.0
        %668 = vmatprep.subr.mxu0 0.0
        %669 = vmatpush2.msra.mxu0 0.0
        %670 = vmatprep.subr.mxu0 0.0
        %671 = vmatpush2.msra.mxu0 0.0
        %672 = vmatprep.subr.mxu0 0.0
        %673 = vmatpush2.msra.mxu0 0.0
        %674 = vmatprep.subr.mxu0 0.0
        %675 = vmatpush2.msra.mxu0 0.0
        %676 = vmatprep.subr.mxu0 0.0
        %677 = vmatpush2.msra.mxu0 0.0
        %678 = vmatprep.subr.mxu0 0.0
        %679 = vmatpush2.msra.mxu0 0.0
        %680 = vmatprep.subr.mxu0 0.0
        %681 = vmatpush2.msra.mxu0 0.0
        %682 = vmatprep.subr.mxu0 0.0
        %683 = vmatpush2.msra.mxu0 0.0
        %684 = vmatprep.subr.mxu0 0.0
        %685 = vmatpush2.msra.mxu0 0.0
        %686 = vmatprep.subr.mxu0 0.0
        %687 = vmatpush2.msra.mxu0 0.0
        %688 = vmatprep.subr.mxu0 0.0
        %689 = vmatpush2.msra.mxu0 0.0
        %690 = vmatprep.mubr.f32.mxu0 0.0
        %691 = vmatmul.mubr.f32.gmra.mxu0 %v545
        %v692 = vpop.f32.mrf.mxu0
        %v693 = vadd.f32 %v536, %v692
        %v694 = vpop.f32.mrf.mxu0
        %v695 = vadd.f32 %v538, %v694
        %696 = vdwg.mxu0
        %v697 = vld [vmem:[%s356] sm:$0xff]
        %v698 = vld [vmem:[%s356 + $0x8] sm:$0xff]
        %v699 = vld [vmem:[%s356 + $0x10] sm:$0xf]
        %s700 = scalar_lea.vmem %s1, 16
        %v701 = vld [vmem:[%s700] sm:$0xff]
        %v705 = vcombine.high %v697, %v697
        %v706 = vcombine.high %v698, %v698
        %707 = vrot.lane.b32.xlu0 %v697, 126
        %v708 = vpop.permute.xlu0 %707
        %709 = vrot.lane.b32.xlu0 %v705, 126
        %v710 = vpop.permute.xlu0 %709
        %711 = vrot.lane.b32.xlu0 %v698, 126
        %v712 = vpop.permute.xlu0 %711
        %713 = vrot.lane.b32.xlu0 %v706, 126
        %v714 = vpop.permute.xlu0 %713
        %715 = vrot.lane.b32.xlu0 %v699, 126
        %v716 = vpop.permute.xlu0 %715
        %vm717 = vcmask 1031168
        %v718 = vsel %vm717, %v708, %v710
        %v719 = vsel %vm717, %v710, %v712
        %v720 = vsel %vm717, %v712, %v714
        %v721 = vsel %vm717, %v714, %v716
        %v723 = vsel %vm385, %v701, 0
        %v725 = vsel %vm389, %v718, 0
        %v727 = vsel %vm389, %v719, 0
        %v729 = vsel %vm389, %v720, 0
        %v731 = vsel %vm389, %v721, 0
        %733 = vmatprep.subr.mxu0 0.0
        %734 = vmatpush1.msra.mxu0 0.0
        %735 = vmatprep.subr.mxu0 0.0
        %736 = vmatpush1.msra.mxu0 0.0
        %737 = vmatprep.subr.mxu0 0.0
        %738 = vmatpush1.msra.mxu0 0.0
        %739 = vmatprep.subr.mxu0 0.0
        %740 = vmatpush1.msra.mxu0 0.0
        %741 = vmatprep.subr.mxu0 0.0
        %742 = vmatpush1.msra.mxu0 0.0
        %743 = vmatprep.subr.mxu0 0.0
        %744 = vmatpush1.msra.mxu0 0.0
        %745 = vmatprep.subr.mxu0 0.0
        %746 = vmatpush1.msra.mxu0 0.0
        %747 = vmatprep.subr.mxu0 0.0
        %748 = vmatpush1.msra.mxu0 0.0
        %749 = vmatprep.subr.mxu0 0.0
        %750 = vmatpush1.msra.mxu0 0.0
        %751 = vmatprep.subr.mxu0 0.0
        %752 = vmatpush1.msra.mxu0 0.0
        %753 = vmatprep.subr.mxu0 0.0
        %754 = vmatpush1.msra.mxu0 0.0
        %755 = vmatprep.subr.mxu0 0.0
        %756 = vmatpush1.msra.mxu0 0.0
        %757 = vmatprep.subr.mxu0 0.0
        %758 = vmatpush1.msra.mxu0 0.0
        %759 = vmatprep.subr.mxu0 0.0
        %760 = vmatpush1.msra.mxu0 0.0
        %761 = vmatprep.subr.mxu0 0.0
        %762 = vmatpush1.msra.mxu0 0.0
        %763 = vmatprep.subr.mxu0 %v727
        %764 = vmatpush1.msra.mxu0 %v725
        %765 = vmatprep.subr.mxu0 0.0
        %766 = vmatpush2.msra.mxu0 0.0
        %767 = vmatprep.subr.mxu0 0.0
        %768 = vmatpush2.msra.mxu0 0.0
        %769 = vmatprep.subr.mxu0 0.0
        %770 = vmatpush2.msra.mxu0 0.0
        %771 = vmatprep.subr.mxu0 0.0
        %772 = vmatpush2.msra.mxu0 0.0
        %773 = vmatprep.subr.mxu0 0.0
        %774 = vmatpush2.msra.mxu0 0.0
        %775 = vmatprep.subr.mxu0 0.0
        %776 = vmatpush2.msra.mxu0 0.0
        %777 = vmatprep.subr.mxu0 0.0
        %778 = vmatpush2.msra.mxu0 0.0
        %779 = vmatprep.subr.mxu0 0.0
        %780 = vmatpush2.msra.mxu0 0.0
        %781 = vmatprep.subr.mxu0 0.0
        %782 = vmatpush2.msra.mxu0 0.0
        %783 = vmatprep.subr.mxu0 0.0
        %784 = vmatpush2.msra.mxu0 0.0
        %785 = vmatprep.subr.mxu0 0.0
        %786 = vmatpush2.msra.mxu0 0.0
        %787 = vmatprep.subr.mxu0 0.0
        %788 = vmatpush2.msra.mxu0 0.0
        %789 = vmatprep.subr.mxu0 0.0
        %790 = vmatpush2.msra.mxu0 0.0
        %791 = vmatprep.subr.mxu0 0.0
        %792 = vmatpush2.msra.mxu0 0.0
        %793 = vmatprep.subr.mxu0 0.0
        %794 = vmatpush2.msra.mxu0 0.0
        %795 = vmatprep.subr.mxu0 0.0
        %796 = vmatpush2.msra.mxu0 0.0
        %797 = vmatprep.mubr.f32.mxu0 0.0
        %798 = vmatmul.mubr.f32.gmra.mxu0 %v723
        %v799 = vpop.f32.mrf.mxu0
        %v800 = vadd.f32 0.0, %v799
        %v801 = vpop.f32.mrf.mxu0
        %v802 = vadd.f32 0.0, %v801
        %803 = vdwg.mxu0
        %804 = vmatprep.subr.mxu0 0.0
        %805 = vmatpush1.msra.mxu0 0.0
        %806 = vmatprep.subr.mxu0 0.0
        %807 = vmatpush1.msra.mxu0 0.0
        %808 = vmatprep.subr.mxu0 0.0
        %809 = vmatpush1.msra.mxu0 0.0
        %810 = vmatprep.subr.mxu0 0.0
        %811 = vmatpush1.msra.mxu0 0.0
        %812 = vmatprep.subr.mxu0 0.0
        %813 = vmatpush1.msra.mxu0 0.0
        %814 = vmatprep.subr.mxu0 0.0
        %815 = vmatpush1.msra.mxu0 0.0
        %816 = vmatprep.subr.mxu0 0.0
        %817 = vmatpush1.msra.mxu0 0.0
        %818 = vmatprep.subr.mxu0 0.0
        %819 = vmatpush1.msra.mxu0 0.0
        %820 = vmatprep.subr.mxu0 0.0
        %821 = vmatpush1.msra.mxu0 0.0
        %822 = vmatprep.subr.mxu0 0.0
        %823 = vmatpush1.msra.mxu0 0.0
        %824 = vmatprep.subr.mxu0 0.0
        %825 = vmatpush1.msra.mxu0 0.0
        %826 = vmatprep.subr.mxu0 0.0
        %827 = vmatpush1.msra.mxu0 0.0
        %828 = vmatprep.subr.mxu0 0.0
        %829 = vmatpush1.msra.mxu0 0.0
        %830 = vmatprep.subr.mxu0 0.0
        %831 = vmatpush1.msra.mxu0 0.0
        %832 = vmatprep.subr.mxu0 0.0
        %833 = vmatpush1.msra.mxu0 0.0
        %834 = vmatprep.subr.mxu0 %v731
        %835 = vmatpush1.msra.mxu0 %v729
        %836 = vmatprep.subr.mxu0 0.0
        %837 = vmatpush2.msra.mxu0 0.0
        %838 = vmatprep.subr.mxu0 0.0
        %839 = vmatpush2.msra.mxu0 0.0
        %840 = vmatprep.subr.mxu0 0.0
        %841 = vmatpush2.msra.mxu0 0.0
        %842 = vmatprep.subr.mxu0 0.0
        %843 = vmatpush2.msra.mxu0 0.0
        %844 = vmatprep.subr.mxu0 0.0
        %845 = vmatpush2.msra.mxu0 0.0
        %846 = vmatprep.subr.mxu0 0.0
        %847 = vmatpush2.msra.mxu0 0.0
        %848 = vmatprep.subr.mxu0 0.0
        %849 = vmatpush2.msra.mxu0 0.0
        %850 = vmatprep.subr.mxu0 0.0
        %851 = vmatpush2.msra.mxu0 0.0
        %852 = vmatprep.subr.mxu0 0.0
        %853 = vmatpush2.msra.mxu0 0.0
        %854 = vmatprep.subr.mxu0 0.0
        %855 = vmatpush2.msra.mxu0 0.0
        %856 = vmatprep.subr.mxu0 0.0
        %857 = vmatpush2.msra.mxu0 0.0
        %858 = vmatprep.subr.mxu0 0.0
        %859 = vmatpush2.msra.mxu0 0.0
        %860 = vmatprep.subr.mxu0 0.0
        %861 = vmatpush2.msra.mxu0 0.0
        %862 = vmatprep.subr.mxu0 0.0
        %863 = vmatpush2.msra.mxu0 0.0
        %864 = vmatprep.subr.mxu0 0.0
        %865 = vmatpush2.msra.mxu0 0.0
        %866 = vmatprep.subr.mxu0 0.0
        %867 = vmatpush2.msra.mxu0 0.0
        %868 = vmatprep.mubr.f32.mxu0 0.0
        %869 = vmatmul.mubr.f32.gmra.mxu0 %v723
        %v870 = vpop.f32.mrf.mxu0
        %v871 = vadd.f32 0.0, %v870
        %v872 = vpop.f32.mrf.mxu0
        %v873 = vadd.f32 0.0, %v872
        %874 = vdwg.mxu0
        %v875 = vadd.f32 %v622, %v800
        %v876 = vadd.f32 %v624, %v802
        %v877 = vadd.f32 %v693, %v871
        %v878 = vadd.f32 %v695, %v873
        %v879 = vld [vmem:[%s356] sm:$0xff]
        %v880 = vld [vmem:[%s356 + $0x8] sm:$0xff]
        %v881 = vld [vmem:[%s356 + $0x10] sm:$0xf]
        %s882 = scalar_lea.vmem %s1, 24
        %v883 = vld [vmem:[%s882] sm:$0xff]
        %v887 = vcombine.high %v879, %v879
        %v888 = vcombine.high %v880, %v880
        %889 = vrot.lane.b32.xlu0 %v879, 110
        %v890 = vpop.permute.xlu0 %889
        %891 = vrot.lane.b32.xlu0 %v887, 110
        %v892 = vpop.permute.xlu0 %891
        %893 = vrot.lane.b32.xlu0 %v880, 110
        %v894 = vpop.permute.xlu0 %893
        %895 = vrot.lane.b32.xlu0 %v888, 110
        %v896 = vpop.permute.xlu0 %895
        %897 = vrot.lane.b32.xlu0 %v881, 110
        %v898 = vpop.permute.xlu0 %897
        %vm899 = vcmask 900096
        %v900 = vsel %vm899, %v890, %v892
        %v901 = vsel %vm899, %v892, %v894
        %v902 = vsel %vm899, %v894, %v896
        %v903 = vsel %vm899, %v896, %v898
        %v905 = vsel %vm385, %v883, 0
        %v907 = vsel %vm389, %v900, 0
        %v909 = vsel %vm389, %v901, 0
        %v911 = vsel %vm389, %v902, 0
        %v913 = vsel %vm389, %v903, 0
        %915 = vmatprep.subr.mxu0 0.0
        %916 = vmatpush1.msra.mxu0 0.0
        %917 = vmatprep.subr.mxu0 0.0
        %918 = vmatpush1.msra.mxu0 0.0
        %919 = vmatprep.subr.mxu0 0.0
        %920 = vmatpush1.msra.mxu0 0.0
        %921 = vmatprep.subr.mxu0 0.0
        %922 = vmatpush1.msra.mxu0 0.0
        %923 = vmatprep.subr.mxu0 0.0
        %924 = vmatpush1.msra.mxu0 0.0
        %925 = vmatprep.subr.mxu0 0.0
        %926 = vmatpush1.msra.mxu0 0.0
        %927 = vmatprep.subr.mxu0 0.0
        %928 = vmatpush1.msra.mxu0 0.0
        %929 = vmatprep.subr.mxu0 0.0
        %930 = vmatpush1.msra.mxu0 0.0
        %931 = vmatprep.subr.mxu0 0.0
        %932 = vmatpush1.msra.mxu0 0.0
        %933 = vmatprep.subr.mxu0 0.0
        %934 = vmatpush1.msra.mxu0 0.0
        %935 = vmatprep.subr.mxu0 0.0
        %936 = vmatpush1.msra.mxu0 0.0
        %937 = vmatprep.subr.mxu0 0.0
        %938 = vmatpush1.msra.mxu0 0.0
        %939 = vmatprep.subr.mxu0 0.0
        %940 = vmatpush1.msra.mxu0 0.0
        %941 = vmatprep.subr.mxu0 0.0
        %942 = vmatpush1.msra.mxu0 0.0
        %943 = vmatprep.subr.mxu0 0.0
        %944 = vmatpush1.msra.mxu0 0.0
        %945 = vmatprep.subr.mxu0 %v909
        %946 = vmatpush1.msra.mxu0 %v907
        %947 = vmatprep.subr.mxu0 0.0
        %948 = vmatpush2.msra.mxu0 0.0
        %949 = vmatprep.subr.mxu0 0.0
        %950 = vmatpush2.msra.mxu0 0.0
        %951 = vmatprep.subr.mxu0 0.0
        %952 = vmatpush2.msra.mxu0 0.0
        %953 = vmatprep.subr.mxu0 0.0
        %954 = vmatpush2.msra.mxu0 0.0
        %955 = vmatprep.subr.mxu0 0.0
        %956 = vmatpush2.msra.mxu0 0.0
        %957 = vmatprep.subr.mxu0 0.0
        %958 = vmatpush2.msra.mxu0 0.0
        %959 = vmatprep.subr.mxu0 0.0
        %960 = vmatpush2.msra.mxu0 0.0
        %961 = vmatprep.subr.mxu0 0.0
        %962 = vmatpush2.msra.mxu0 0.0
        %963 = vmatprep.subr.mxu0 0.0
        %964 = vmatpush2.msra.mxu0 0.0
        %965 = vmatprep.subr.mxu0 0.0
        %966 = vmatpush2.msra.mxu0 0.0
        %967 = vmatprep.subr.mxu0 0.0
        %968 = vmatpush2.msra.mxu0 0.0
        %969 = vmatprep.subr.mxu0 0.0
        %970 = vmatpush2.msra.mxu0 0.0
        %971 = vmatprep.subr.mxu0 0.0
        %972 = vmatpush2.msra.mxu0 0.0
        %973 = vmatprep.subr.mxu0 0.0
        %974 = vmatpush2.msra.mxu0 0.0
        %975 = vmatprep.subr.mxu0 0.0
        %976 = vmatpush2.msra.mxu0 0.0
        %977 = vmatprep.subr.mxu0 0.0
        %978 = vmatpush2.msra.mxu0 0.0
        %979 = vmatprep.mubr.f32.mxu0 0.0
        %980 = vmatmul.mubr.f32.gmra.mxu0 %v905
        %v981 = vpop.f32.mrf.mxu0
        %v982 = vadd.f32 0.0, %v981
        %v983 = vpop.f32.mrf.mxu0
        %v984 = vadd.f32 0.0, %v983
        %985 = vdwg.mxu0
        %986 = vmatprep.subr.mxu0 0.0
        %987 = vmatpush1.msra.mxu0 0.0
        %988 = vmatprep.subr.mxu0 0.0
        %989 = vmatpush1.msra.mxu0 0.0
        %990 = vmatprep.subr.mxu0 0.0
        %991 = vmatpush1.msra.mxu0 0.0
        %992 = vmatprep.subr.mxu0 0.0
        %993 = vmatpush1.msra.mxu0 0.0
        %994 = vmatprep.subr.mxu0 0.0
        %995 = vmatpush1.msra.mxu0 0.0
        %996 = vmatprep.subr.mxu0 0.0
        %997 = vmatpush1.msra.mxu0 0.0
        %998 = vmatprep.subr.mxu0 0.0
        %999 = vmatpush1.msra.mxu0 0.0
        %1000 = vmatprep.subr.mxu0 0.0
        %1001 = vmatpush1.msra.mxu0 0.0
        %1002 = vmatprep.subr.mxu0 0.0
        %1003 = vmatpush1.msra.mxu0 0.0
        %1004 = vmatprep.subr.mxu0 0.0
        %1005 = vmatpush1.msra.mxu0 0.0
        %1006 = vmatprep.subr.mxu0 0.0
        %1007 = vmatpush1.msra.mxu0 0.0
        %1008 = vmatprep.subr.mxu0 0.0
        %1009 = vmatpush1.msra.mxu0 0.0
        %1010 = vmatprep.subr.mxu0 0.0
        %1011 = vmatpush1.msra.mxu0 0.0
        %1012 = vmatprep.subr.mxu0 0.0
        %1013 = vmatpush1.msra.mxu0 0.0
        %1014 = vmatprep.subr.mxu0 0.0
        %1015 = vmatpush1.msra.mxu0 0.0
        %1016 = vmatprep.subr.mxu0 %v913
        %1017 = vmatpush1.msra.mxu0 %v911
        %1018 = vmatprep.subr.mxu0 0.0
        %1019 = vmatpush2.msra.mxu0 0.0
        %1020 = vmatprep.subr.mxu0 0.0
        %1021 = vmatpush2.msra.mxu0 0.0
        %1022 = vmatprep.subr.mxu0 0.0
        %1023 = vmatpush2.msra.mxu0 0.0
        %1024 = vmatprep.subr.mxu0 0.0
        %1025 = vmatpush2.msra.mxu0 0.0
        %1026 = vmatprep.subr.mxu0 0.0
        %1027 = vmatpush2.msra.mxu0 0.0
        %1028 = vmatprep.subr.mxu0 0.0
        %1029 = vmatpush2.msra.mxu0 0.0
        %1030 = vmatprep.subr.mxu0 0.0
        %1031 = vmatpush2.msra.mxu0 0.0
        %1032 = vmatprep.subr.mxu0 0.0
        %1033 = vmatpush2.msra.mxu0 0.0
        %1034 = vmatprep.subr.mxu0 0.0
        %1035 = vmatpush2.msra.mxu0 0.0
        %1036 = vmatprep.subr.mxu0 0.0
        %1037 = vmatpush2.msra.mxu0 0.0
        %1038 = vmatprep.subr.mxu0 0.0
        %1039 = vmatpush2.msra.mxu0 0.0
        %1040 = vmatprep.subr.mxu0 0.0
        %1041 = vmatpush2.msra.mxu0 0.0
        %1042 = vmatprep.subr.mxu0 0.0
        %1043 = vmatpush2.msra.mxu0 0.0
        %1044 = vmatprep.subr.mxu0 0.0
        %1045 = vmatpush2.msra.mxu0 0.0
        %1046 = vmatprep.subr.mxu0 0.0
        %1047 = vmatpush2.msra.mxu0 0.0
        %1048 = vmatprep.subr.mxu0 0.0
        %1049 = vmatpush2.msra.mxu0 0.0
        %1050 = vmatprep.mubr.f32.mxu0 0.0
        %1051 = vmatmul.mubr.f32.gmra.mxu0 %v905
        %v1052 = vpop.f32.mrf.mxu0
        %v1053 = vadd.f32 0.0, %v1052
        %v1054 = vpop.f32.mrf.mxu0
        %v1055 = vadd.f32 0.0, %v1054
        %1056 = vdwg.mxu0
        %v1057 = vadd.f32 %v875, %v982
        %v1058 = vadd.f32 %v876, %v984
        %v1059 = vadd.f32 %v877, %v1053
        %v1060 = vadd.f32 %v878, %v1055
        %v1061 = vld [vmem:[%s356] sm:$0xff]
        %v1062 = vld [vmem:[%s356 + $0x8] sm:$0xff]
        %v1063 = vld [vmem:[%s356 + $0x10] sm:$0xf]
        %s1064 = scalar_lea.vmem %s1, 32
        %v1065 = vld [vmem:[%s1064] sm:$0xff]
        %v1069 = vcombine.high %v1061, %v1061
        %v1070 = vcombine.high %v1062, %v1062
        %1071 = vrot.lane.b32.xlu0 %v1061, 109
        %v1072 = vpop.permute.xlu0 %1071
        %1073 = vrot.lane.b32.xlu0 %v1069, 109
        %v1074 = vpop.permute.xlu0 %1073
        %1075 = vrot.lane.b32.xlu0 %v1062, 109
        %v1076 = vpop.permute.xlu0 %1075
        %1077 = vrot.lane.b32.xlu0 %v1070, 109
        %v1078 = vpop.permute.xlu0 %1077
        %1079 = vrot.lane.b32.xlu0 %v1063, 109
        %v1080 = vpop.permute.xlu0 %1079
        %vm1081 = vcmask 891904
        %v1082 = vsel %vm1081, %v1072, %v1074
        %v1083 = vsel %vm1081, %v1074, %v1076
        %v1084 = vsel %vm1081, %v1076, %v1078
        %v1085 = vsel %vm1081, %v1078, %v1080
        %v1087 = vsel %vm385, %v1065, 0
        %v1089 = vsel %vm389, %v1082, 0
        %v1091 = vsel %vm389, %v1083, 0
        %v1093 = vsel %vm389, %v1084, 0
        %v1095 = vsel %vm389, %v1085, 0
        %1097 = vmatprep.subr.mxu0 0.0
        %1098 = vmatpush1.msra.mxu0 0.0
        %1099 = vmatprep.subr.mxu0 0.0
        %1100 = vmatpush1.msra.mxu0 0.0
        %1101 = vmatprep.subr.mxu0 0.0
        %1102 = vmatpush1.msra.mxu0 0.0
        %1103 = vmatprep.subr.mxu0 0.0
        %1104 = vmatpush1.msra.mxu0 0.0
        %1105 = vmatprep.subr.mxu0 0.0
        %1106 = vmatpush1.msra.mxu0 0.0
        %1107 = vmatprep.subr.mxu0 0.0
        %1108 = vmatpush1.msra.mxu0 0.0
        %1109 = vmatprep.subr.mxu0 0.0
        %1110 = vmatpush1.msra.mxu0 0.0
        %1111 = vmatprep.subr.mxu0 0.0
        %1112 = vmatpush1.msra.mxu0 0.0
        %1113 = vmatprep.subr.mxu0 0.0
        %1114 = vmatpush1.msra.mxu0 0.0
        %1115 = vmatprep.subr.mxu0 0.0
        %1116 = vmatpush1.msra.mxu0 0.0
        %1117 = vmatprep.subr.mxu0 0.0
        %1118 = vmatpush1.msra.mxu0 0.0
        %1119 = vmatprep.subr.mxu0 0.0
        %1120 = vmatpush1.msra.mxu0 0.0
        %1121 = vmatprep.subr.mxu0 0.0
        %1122 = vmatpush1.msra.mxu0 0.0
        %1123 = vmatprep.subr.mxu0 0.0
        %1124 = vmatpush1.msra.mxu0 0.0
        %1125 = vmatprep.subr.mxu0 0.0
        %1126 = vmatpush1.msra.mxu0 0.0
        %1127 = vmatprep.subr.mxu0 %v1091
        %1128 = vmatpush1.msra.mxu0 %v1089
        %1129 = vmatprep.subr.mxu0 0.0
        %1130 = vmatpush2.msra.mxu0 0.0
        %1131 = vmatprep.subr.mxu0 0.0
        %1132 = vmatpush2.msra.mxu0 0.0
        %1133 = vmatprep.subr.mxu0 0.0
        %1134 = vmatpush2.msra.mxu0 0.0
        %1135 = vmatprep.subr.mxu0 0.0
        %1136 = vmatpush2.msra.mxu0 0.0
        %1137 = vmatprep.subr.mxu0 0.0
        %1138 = vmatpush2.msra.mxu0 0.0
        %1139 = vmatprep.subr.mxu0 0.0
        %1140 = vmatpush2.msra.mxu0 0.0
        %1141 = vmatprep.subr.mxu0 0.0
        %1142 = vmatpush2.msra.mxu0 0.0
        %1143 = vmatprep.subr.mxu0 0.0
        %1144 = vmatpush2.msra.mxu0 0.0
        %1145 = vmatprep.subr.mxu0 0.0
        %1146 = vmatpush2.msra.mxu0 0.0
        %1147 = vmatprep.subr.mxu0 0.0
        %1148 = vmatpush2.msra.mxu0 0.0
        %1149 = vmatprep.subr.mxu0 0.0
        %1150 = vmatpush2.msra.mxu0 0.0
        %1151 = vmatprep.subr.mxu0 0.0
        %1152 = vmatpush2.msra.mxu0 0.0
        %1153 = vmatprep.subr.mxu0 0.0
        %1154 = vmatpush2.msra.mxu0 0.0
        %1155 = vmatprep.subr.mxu0 0.0
        %1156 = vmatpush2.msra.mxu0 0.0
        %1157 = vmatprep.subr.mxu0 0.0
        %1158 = vmatpush2.msra.mxu0 0.0
        %1159 = vmatprep.subr.mxu0 0.0
        %1160 = vmatpush2.msra.mxu0 0.0
        %1161 = vmatprep.mubr.f32.mxu0 0.0
        %1162 = vmatmul.mubr.f32.gmra.mxu0 %v1087
        %v1163 = vpop.f32.mrf.mxu0
        %v1164 = vadd.f32 0.0, %v1163
        %v1165 = vpop.f32.mrf.mxu0
        %v1166 = vadd.f32 0.0, %v1165
        %1167 = vdwg.mxu0
        %1168 = vmatprep.subr.mxu0 0.0
        %1169 = vmatpush1.msra.mxu0 0.0
        %1170 = vmatprep.subr.mxu0 0.0
        %1171 = vmatpush1.msra.mxu0 0.0
        %1172 = vmatprep.subr.mxu0 0.0
        %1173 = vmatpush1.msra.mxu0 0.0
        %1174 = vmatprep.subr.mxu0 0.0
        %1175 = vmatpush1.msra.mxu0 0.0
        %1176 = vmatprep.subr.mxu0 0.0
        %1177 = vmatpush1.msra.mxu0 0.0
        %1178 = vmatprep.subr.mxu0 0.0
        %1179 = vmatpush1.msra.mxu0 0.0
        %1180 = vmatprep.subr.mxu0 0.0
        %1181 = vmatpush1.msra.mxu0 0.0
        %1182 = vmatprep.subr.mxu0 0.0
        %1183 = vmatpush1.msra.mxu0 0.0
        %1184 = vmatprep.subr.mxu0 0.0
        %1185 = vmatpush1.msra.mxu0 0.0
        %1186 = vmatprep.subr.mxu0 0.0
        %1187 = vmatpush1.msra.mxu0 0.0
        %1188 = vmatprep.subr.mxu0 0.0
        %1189 = vmatpush1.msra.mxu0 0.0
        %1190 = vmatprep.subr.mxu0 0.0
        %1191 = vmatpush1.msra.mxu0 0.0
        %1192 = vmatprep.subr.mxu0 0.0
        %1193 = vmatpush1.msra.mxu0 0.0
        %1194 = vmatprep.subr.mxu0 0.0
        %1195 = vmatpush1.msra.mxu0 0.0
        %1196 = vmatprep.subr.mxu0 0.0
        %1197 = vmatpush1.msra.mxu0 0.0
        %1198 = vmatprep.subr.mxu0 %v1095
        %1199 = vmatpush1.msra.mxu0 %v1093
        %1200 = vmatprep.subr.mxu0 0.0
        %1201 = vmatpush2.msra.mxu0 0.0
        %1202 = vmatprep.subr.mxu0 0.0
        %1203 = vmatpush2.msra.mxu0 0.0
        %1204 = vmatprep.subr.mxu0 0.0
        %1205 = vmatpush2.msra.mxu0 0.0
        %1206 = vmatprep.subr.mxu0 0.0
        %1207 = vmatpush2.msra.mxu0 0.0
        %1208 = vmatprep.subr.mxu0 0.0
        %1209 = vmatpush2.msra.mxu0 0.0
        %1210 = vmatprep.subr.mxu0 0.0
        %1211 = vmatpush2.msra.mxu0 0.0
        %1212 = vmatprep.subr.mxu0 0.0
        %1213 = vmatpush2.msra.mxu0 0.0
        %1214 = vmatprep.subr.mxu0 0.0
        %1215 = vmatpush2.msra.mxu0 0.0
        %1216 = vmatprep.subr.mxu0 0.0
        %1217 = vmatpush2.msra.mxu0 0.0
        %1218 = vmatprep.subr.mxu0 0.0
        %1219 = vmatpush2.msra.mxu0 0.0
        %1220 = vmatprep.subr.mxu0 0.0
        %1221 = vmatpush2.msra.mxu0 0.0
        %1222 = vmatprep.subr.mxu0 0.0
        %1223 = vmatpush2.msra.mxu0 0.0
        %1224 = vmatprep.subr.mxu0 0.0
        %1225 = vmatpush2.msra.mxu0 0.0
        %1226 = vmatprep.subr.mxu0 0.0
        %1227 = vmatpush2.msra.mxu0 0.0
        %1228 = vmatprep.subr.mxu0 0.0
        %1229 = vmatpush2.msra.mxu0 0.0
        %1230 = vmatprep.subr.mxu0 0.0
        %1231 = vmatpush2.msra.mxu0 0.0
        %1232 = vmatprep.mubr.f32.mxu0 0.0
        %1233 = vmatmul.mubr.f32.gmra.mxu0 %v1087
        %v1234 = vpop.f32.mrf.mxu0
        %v1235 = vadd.f32 0.0, %v1234
        %v1236 = vpop.f32.mrf.mxu0
        %v1237 = vadd.f32 0.0, %v1236
        %1238 = vdwg.mxu0
        %v1239 = vadd.f32 %v1057, %v1164
        %v1240 = vadd.f32 %v1058, %v1166
        %v1241 = vadd.f32 %v1059, %v1235
        %v1242 = vadd.f32 %v1060, %v1237
        %v1243 = vld [vmem:[%s356] sm:$0xff]
        %v1244 = vld [vmem:[%s356 + $0x8] sm:$0xff]
        %v1245 = vld [vmem:[%s356 + $0x10] sm:$0xf]
        %s1246 = scalar_lea.vmem %s1, 40
        %v1247 = vld [vmem:[%s1246] sm:$0xff]
        %v1251 = vcombine.high %v1243, %v1243
        %v1252 = vcombine.high %v1244, %v1244
        %1253 = vrot.lane.b32.xlu0 %v1243, 108
        %v1254 = vpop.permute.xlu0 %1253
        %1255 = vrot.lane.b32.xlu0 %v1251, 108
        %v1256 = vpop.permute.xlu0 %1255
        %1257 = vrot.lane.b32.xlu0 %v1244, 108
        %v1258 = vpop.permute.xlu0 %1257
        %1259 = vrot.lane.b32.xlu0 %v1252, 108
        %v1260 = vpop.permute.xlu0 %1259
        %1261 = vrot.lane.b32.xlu0 %v1245, 108
        %v1262 = vpop.permute.xlu0 %1261
        %vm1263 = vcmask 883712
        %v1264 = vsel %vm1263, %v1254, %v1256
        %v1265 = vsel %vm1263, %v1256, %v1258
        %v1266 = vsel %vm1263, %v1258, %v1260
        %v1267 = vsel %vm1263, %v1260, %v1262
        %v1269 = vsel %vm385, %v1247, 0
        %v1271 = vsel %vm389, %v1264, 0
        %v1273 = vsel %vm389, %v1265, 0
        %v1275 = vsel %vm389, %v1266, 0
        %v1277 = vsel %vm389, %v1267, 0
        %1279 = vmatprep.subr.mxu0 0.0
        %1280 = vmatpush1.msra.mxu0 0.0
        %1281 = vmatprep.subr.mxu0 0.0
        %1282 = vmatpush1.msra.mxu0 0.0
        %1283 = vmatprep.subr.mxu0 0.0
        %1284 = vmatpush1.msra.mxu0 0.0
        %1285 = vmatprep.subr.mxu0 0.0
        %1286 = vmatpush1.msra.mxu0 0.0
        %1287 = vmatprep.subr.mxu0 0.0
        %1288 = vmatpush1.msra.mxu0 0.0
        %1289 = vmatprep.subr.mxu0 0.0
        %1290 = vmatpush1.msra.mxu0 0.0
        %1291 = vmatprep.subr.mxu0 0.0
        %1292 = vmatpush1.msra.mxu0 0.0
        %1293 = vmatprep.subr.mxu0 0.0
        %1294 = vmatpush1.msra.mxu0 0.0
        %1295 = vmatprep.subr.mxu0 0.0
        %1296 = vmatpush1.msra.mxu0 0.0
        %1297 = vmatprep.subr.mxu0 0.0
        %1298 = vmatpush1.msra.mxu0 0.0
        %1299 = vmatprep.subr.mxu0 0.0
        %1300 = vmatpush1.msra.mxu0 0.0
        %1301 = vmatprep.subr.mxu0 0.0
        %1302 = vmatpush1.msra.mxu0 0.0
        %1303 = vmatprep.subr.mxu0 0.0
        %1304 = vmatpush1.msra.mxu0 0.0
        %1305 = vmatprep.subr.mxu0 0.0
        %1306 = vmatpush1.msra.mxu0 0.0
        %1307 = vmatprep.subr.mxu0 0.0
        %1308 = vmatpush1.msra.mxu0 0.0
        %1309 = vmatprep.subr.mxu0 %v1273
        %1310 = vmatpush1.msra.mxu0 %v1271
        %1311 = vmatprep.subr.mxu0 0.0
        %1312 = vmatpush2.msra.mxu0 0.0
        %1313 = vmatprep.subr.mxu0 0.0
        %1314 = vmatpush2.msra.mxu0 0.0
        %1315 = vmatprep.subr.mxu0 0.0
        %1316 = vmatpush2.msra.mxu0 0.0
        %1317 = vmatprep.subr.mxu0 0.0
        %1318 = vmatpush2.msra.mxu0 0.0
        %1319 = vmatprep.subr.mxu0 0.0
        %1320 = vmatpush2.msra.mxu0 0.0
        %1321 = vmatprep.subr.mxu0 0.0
        %1322 = vmatpush2.msra.mxu0 0.0
        %1323 = vmatprep.subr.mxu0 0.0
        %1324 = vmatpush2.msra.mxu0 0.0
        %1325 = vmatprep.subr.mxu0 0.0
        %1326 = vmatpush2.msra.mxu0 0.0
        %1327 = vmatprep.subr.mxu0 0.0
        %1328 = vmatpush2.msra.mxu0 0.0
        %1329 = vmatprep.subr.mxu0 0.0
        %1330 = vmatpush2.msra.mxu0 0.0
        %1331 = vmatprep.subr.mxu0 0.0
        %1332 = vmatpush2.msra.mxu0 0.0
        %1333 = vmatprep.subr.mxu0 0.0
        %1334 = vmatpush2.msra.mxu0 0.0
        %1335 = vmatprep.subr.mxu0 0.0
        %1336 = vmatpush2.msra.mxu0 0.0
        %1337 = vmatprep.subr.mxu0 0.0
        %1338 = vmatpush2.msra.mxu0 0.0
        %1339 = vmatprep.subr.mxu0 0.0
        %1340 = vmatpush2.msra.mxu0 0.0
        %1341 = vmatprep.subr.mxu0 0.0
        %1342 = vmatpush2.msra.mxu0 0.0
        %1343 = vmatprep.mubr.f32.mxu0 0.0
        %1344 = vmatmul.mubr.f32.gmra.mxu0 %v1269
        %v1345 = vpop.f32.mrf.mxu0
        %v1346 = vadd.f32 0.0, %v1345
        %v1347 = vpop.f32.mrf.mxu0
        %v1348 = vadd.f32 0.0, %v1347
        %1349 = vdwg.mxu0
        %1350 = vmatprep.subr.mxu0 0.0
        %1351 = vmatpush1.msra.mxu0 0.0
        %1352 = vmatprep.subr.mxu0 0.0
        %1353 = vmatpush1.msra.mxu0 0.0
        %1354 = vmatprep.subr.mxu0 0.0
        %1355 = vmatpush1.msra.mxu0 0.0
        %1356 = vmatprep.subr.mxu0 0.0
        %1357 = vmatpush1.msra.mxu0 0.0
        %1358 = vmatprep.subr.mxu0 0.0
        %1359 = vmatpush1.msra.mxu0 0.0
        %1360 = vmatprep.subr.mxu0 0.0
        %1361 = vmatpush1.msra.mxu0 0.0
        %1362 = vmatprep.subr.mxu0 0.0
        %1363 = vmatpush1.msra.mxu0 0.0
        %1364 = vmatprep.subr.mxu0 0.0
        %1365 = vmatpush1.msra.mxu0 0.0
        %1366 = vmatprep.subr.mxu0 0.0
        %1367 = vmatpush1.msra.mxu0 0.0
        %1368 = vmatprep.subr.mxu0 0.0
        %1369 = vmatpush1.msra.mxu0 0.0
        %1370 = vmatprep.subr.mxu0 0.0
        %1371 = vmatpush1.msra.mxu0 0.0
        %1372 = vmatprep.subr.mxu0 0.0
        %1373 = vmatpush1.msra.mxu0 0.0
        %1374 = vmatprep.subr.mxu0 0.0
        %1375 = vmatpush1.msra.mxu0 0.0
        %1376 = vmatprep.subr.mxu0 0.0
        %1377 = vmatpush1.msra.mxu0 0.0
        %1378 = vmatprep.subr.mxu0 0.0
        %1379 = vmatpush1.msra.mxu0 0.0
        %1380 = vmatprep.subr.mxu0 %v1277
        %1381 = vmatpush1.msra.mxu0 %v1275
        %1382 = vmatprep.subr.mxu0 0.0
        %1383 = vmatpush2.msra.mxu0 0.0
        %1384 = vmatprep.subr.mxu0 0.0
        %1385 = vmatpush2.msra.mxu0 0.0
        %1386 = vmatprep.subr.mxu0 0.0
        %1387 = vmatpush2.msra.mxu0 0.0
        %1388 = vmatprep.subr.mxu0 0.0
        %1389 = vmatpush2.msra.mxu0 0.0
        %1390 = vmatprep.subr.mxu0 0.0
        %1391 = vmatpush2.msra.mxu0 0.0
        %1392 = vmatprep.subr.mxu0 0.0
        %1393 = vmatpush2.msra.mxu0 0.0
        %1394 = vmatprep.subr.mxu0 0.0
        %1395 = vmatpush2.msra.mxu0 0.0
        %1396 = vmatprep.subr.mxu0 0.0
        %1397 = vmatpush2.msra.mxu0 0.0
        %1398 = vmatprep.subr.mxu0 0.0
        %1399 = vmatpush2.msra.mxu0 0.0
        %1400 = vmatprep.subr.mxu0 0.0
        %1401 = vmatpush2.msra.mxu0 0.0
        %1402 = vmatprep.subr.mxu0 0.0
        %1403 = vmatpush2.msra.mxu0 0.0
        %1404 = vmatprep.subr.mxu0 0.0
        %1405 = vmatpush2.msra.mxu0 0.0
        %1406 = vmatprep.subr.mxu0 0.0
        %1407 = vmatpush2.msra.mxu0 0.0
        %1408 = vmatprep.subr.mxu0 0.0
        %1409 = vmatpush2.msra.mxu0 0.0
        %1410 = vmatprep.subr.mxu0 0.0
        %1411 = vmatpush2.msra.mxu0 0.0
        %1412 = vmatprep.subr.mxu0 0.0
        %1413 = vmatpush2.msra.mxu0 0.0
        %1414 = vmatprep.mubr.f32.mxu0 0.0
        %1415 = vmatmul.mubr.f32.gmra.mxu0 %v1269
        %v1416 = vpop.f32.mrf.mxu0
        %v1417 = vadd.f32 0.0, %v1416
        %v1418 = vpop.f32.mrf.mxu0
        %v1419 = vadd.f32 0.0, %v1418
        %1420 = vdwg.mxu0
        %v1421 = vadd.f32 %v1239, %v1346
        %v1422 = vadd.f32 %v1240, %v1348
        %v1423 = vadd.f32 %v1241, %v1417
        %v1424 = vadd.f32 %v1242, %v1419
        %v1425 = vld [vmem:[%s356] sm:$0xff]
        %v1426 = vld [vmem:[%s356 + $0x8] sm:$0xff]
        %v1427 = vld [vmem:[%s356 + $0x10] sm:$0xf]
        %s1428 = scalar_lea.vmem %s1, 48
        %v1429 = vld [vmem:[%s1428] sm:$0xff]
        %v1433 = vcombine.high %v1425, %v1425
        %v1434 = vcombine.high %v1426, %v1426
        %1435 = vrot.lane.b32.xlu0 %v1425, 92
        %v1436 = vpop.permute.xlu0 %1435
        %1437 = vrot.lane.b32.xlu0 %v1433, 92
        %v1438 = vpop.permute.xlu0 %1437
        %1439 = vrot.lane.b32.xlu0 %v1426, 92
        %v1440 = vpop.permute.xlu0 %1439
        %1441 = vrot.lane.b32.xlu0 %v1434, 92
        %v1442 = vpop.permute.xlu0 %1441
        %1443 = vrot.lane.b32.xlu0 %v1427, 92
        %v1444 = vpop.permute.xlu0 %1443
        %vm1445 = vcmask 752640
        %v1446 = vsel %vm1445, %v1436, %v1438
        %v1447 = vsel %vm1445, %v1438, %v1440
        %v1448 = vsel %vm1445, %v1440, %v1442
        %v1449 = vsel %vm1445, %v1442, %v1444
        %v1451 = vsel %vm385, %v1429, 0
        %v1453 = vsel %vm389, %v1446, 0
        %v1455 = vsel %vm389, %v1447, 0
        %v1457 = vsel %vm389, %v1448, 0
        %v1459 = vsel %vm389, %v1449, 0
        %1461 = vmatprep.subr.mxu0 0.0
        %1462 = vmatpush1.msra.mxu0 0.0
        %1463 = vmatprep.subr.mxu0 0.0
        %1464 = vmatpush1.msra.mxu0 0.0
        %1465 = vmatprep.subr.mxu0 0.0
        %1466 = vmatpush1.msra.mxu0 0.0
        %1467 = vmatprep.subr.mxu0 0.0
        %1468 = vmatpush1.msra.mxu0 0.0
        %1469 = vmatprep.subr.mxu0 0.0
        %1470 = vmatpush1.msra.mxu0 0.0
        %1471 = vmatprep.subr.mxu0 0.0
        %1472 = vmatpush1.msra.mxu0 0.0
        %1473 = vmatprep.subr.mxu0 0.0
        %1474 = vmatpush1.msra.mxu0 0.0
        %1475 = vmatprep.subr.mxu0 0.0
        %1476 = vmatpush1.msra.mxu0 0.0
        %1477 = vmatprep.subr.mxu0 0.0
        %1478 = vmatpush1.msra.mxu0 0.0
        %1479 = vmatprep.subr.mxu0 0.0
        %1480 = vmatpush1.msra.mxu0 0.0
        %1481 = vmatprep.subr.mxu0 0.0
        %1482 = vmatpush1.msra.mxu0 0.0
        %1483 = vmatprep.subr.mxu0 0.0
        %1484 = vmatpush1.msra.mxu0 0.0
        %1485 = vmatprep.subr.mxu0 0.0
        %1486 = vmatpush1.msra.mxu0 0.0
        %1487 = vmatprep.subr.mxu0 0.0
        %1488 = vmatpush1.msra.mxu0 0.0
        %1489 = vmatprep.subr.mxu0 0.0
        %1490 = vmatpush1.msra.mxu0 0.0
        %1491 = vmatprep.subr.mxu0 %v1455
        %1492 = vmatpush1.msra.mxu0 %v1453
        %1493 = vmatprep.subr.mxu0 0.0
        %1494 = vmatpush2.msra.mxu0 0.0
        %1495 = vmatprep.subr.mxu0 0.0
        %1496 = vmatpush2.msra.mxu0 0.0
        %1497 = vmatprep.subr.mxu0 0.0
        %1498 = vmatpush2.msra.mxu0 0.0
        %1499 = vmatprep.subr.mxu0 0.0
        %1500 = vmatpush2.msra.mxu0 0.0
        %1501 = vmatprep.subr.mxu0 0.0
        %1502 = vmatpush2.msra.mxu0 0.0
        %1503 = vmatprep.subr.mxu0 0.0
        %1504 = vmatpush2.msra.mxu0 0.0
        %1505 = vmatprep.subr.mxu0 0.0
        %1506 = vmatpush2.msra.mxu0 0.0
        %1507 = vmatprep.subr.mxu0 0.0
        %1508 = vmatpush2.msra.mxu0 0.0
        %1509 = vmatprep.subr.mxu0 0.0
        %1510 = vmatpush2.msra.mxu0 0.0
        %1511 = vmatprep.subr.mxu0 0.0
        %1512 = vmatpush2.msra.mxu0 0.0
        %1513 = vmatprep.subr.mxu0 0.0
        %1514 = vmatpush2.msra.mxu0 0.0
        %1515 = vmatprep.subr.mxu0 0.0
        %1516 = vmatpush2.msra.mxu0 0.0
        %1517 = vmatprep.subr.mxu0 0.0
        %1518 = vmatpush2.msra.mxu0 0.0
        %1519 = vmatprep.subr.mxu0 0.0
        %1520 = vmatpush2.msra.mxu0 0.0
        %1521 = vmatprep.subr.mxu0 0.0
        %1522 = vmatpush2.msra.mxu0 0.0
        %1523 = vmatprep.subr.mxu0 0.0
        %1524 = vmatpush2.msra.mxu0 0.0
        %1525 = vmatprep.mubr.f32.mxu0 0.0
        %1526 = vmatmul.mubr.f32.gmra.mxu0 %v1451
        %v1527 = vpop.f32.mrf.mxu0
        %v1528 = vadd.f32 0.0, %v1527
        %v1529 = vpop.f32.mrf.mxu0
        %v1530 = vadd.f32 0.0, %v1529
        %1531 = vdwg.mxu0
        %1532 = vmatprep.subr.mxu0 0.0
        %1533 = vmatpush1.msra.mxu0 0.0
        %1534 = vmatprep.subr.mxu0 0.0
        %1535 = vmatpush1.msra.mxu0 0.0
        %1536 = vmatprep.subr.mxu0 0.0
        %1537 = vmatpush1.msra.mxu0 0.0
        %1538 = vmatprep.subr.mxu0 0.0
        %1539 = vmatpush1.msra.mxu0 0.0
        %1540 = vmatprep.subr.mxu0 0.0
        %1541 = vmatpush1.msra.mxu0 0.0
        %1542 = vmatprep.subr.mxu0 0.0
        %1543 = vmatpush1.msra.mxu0 0.0
        %1544 = vmatprep.subr.mxu0 0.0
        %1545 = vmatpush1.msra.mxu0 0.0
        %1546 = vmatprep.subr.mxu0 0.0
        %1547 = vmatpush1.msra.mxu0 0.0
        %1548 = vmatprep.subr.mxu0 0.0
        %1549 = vmatpush1.msra.mxu0 0.0
        %1550 = vmatprep.subr.mxu0 0.0
        %1551 = vmatpush1.msra.mxu0 0.0
        %1552 = vmatprep.subr.mxu0 0.0
        %1553 = vmatpush1.msra.mxu0 0.0
        %1554 = vmatprep.subr.mxu0 0.0
        %1555 = vmatpush1.msra.mxu0 0.0
        %1556 = vmatprep.subr.mxu0 0.0
        %1557 = vmatpush1.msra.mxu0 0.0
        %1558 = vmatprep.subr.mxu0 0.0
        %1559 = vmatpush1.msra.mxu0 0.0
        %1560 = vmatprep.subr.mxu0 0.0
        %1561 = vmatpush1.msra.mxu0 0.0
        %1562 = vmatprep.subr.mxu0 %v1459
        %1563 = vmatpush1.msra.mxu0 %v1457
        %1564 = vmatprep.subr.mxu0 0.0
        %1565 = vmatpush2.msra.mxu0 0.0
        %1566 = vmatprep.subr.mxu0 0.0
        %1567 = vmatpush2.msra.mxu0 0.0
        %1568 = vmatprep.subr.mxu0 0.0
        %1569 = vmatpush2.msra.mxu0 0.0
        %1570 = vmatprep.subr.mxu0 0.0
        %1571 = vmatpush2.msra.mxu0 0.0
        %1572 = vmatprep.subr.mxu0 0.0
        %1573 = vmatpush2.msra.mxu0 0.0
        %1574 = vmatprep.subr.mxu0 0.0
        %1575 = vmatpush2.msra.mxu0 0.0
        %1576 = vmatprep.subr.mxu0 0.0
        %1577 = vmatpush2.msra.mxu0 0.0
        %1578 = vmatprep.subr.mxu0 0.0
        %1579 = vmatpush2.msra.mxu0 0.0
        %1580 = vmatprep.subr.mxu0 0.0
        %1581 = vmatpush2.msra.mxu0 0.0
        %1582 = vmatprep.subr.mxu0 0.0
        %1583 = vmatpush2.msra.mxu0 0.0
        %1584 = vmatprep.subr.mxu0 0.0
        %1585 = vmatpush2.msra.mxu0 0.0
        %1586 = vmatprep.subr.mxu0 0.0
        %1587 = vmatpush2.msra.mxu0 0.0
        %1588 = vmatprep.subr.mxu0 0.0
        %1589 = vmatpush2.msra.mxu0 0.0
        %1590 = vmatprep.subr.mxu0 0.0
        %1591 = vmatpush2.msra.mxu0 0.0
        %1592 = vmatprep.subr.mxu0 0.0
        %1593 = vmatpush2.msra.mxu0 0.0
        %1594 = vmatprep.subr.mxu0 0.0
        %1595 = vmatpush2.msra.mxu0 0.0
        %1596 = vmatprep.mubr.f32.mxu0 0.0
        %1597 = vmatmul.mubr.f32.gmra.mxu0 %v1451
        %v1598 = vpop.f32.mrf.mxu0
        %v1599 = vadd.f32 0.0, %v1598
        %v1600 = vpop.f32.mrf.mxu0
        %v1601 = vadd.f32 0.0, %v1600
        %1602 = vdwg.mxu0
        %v1603 = vadd.f32 %v1421, %v1528
        %v1604 = vadd.f32 %v1422, %v1530
        %v1605 = vadd.f32 %v1423, %v1599
        %v1606 = vadd.f32 %v1424, %v1601
        %v1607 = vld [vmem:[%s356] sm:$0xff]
        %v1608 = vld [vmem:[%s356 + $0x8] sm:$0xff]
        %v1609 = vld [vmem:[%s356 + $0x10] sm:$0xf]
        %s1610 = scalar_lea.vmem %s1, 56
        %v1611 = vld [vmem:[%s1610] sm:$0xff]
        %v1615 = vcombine.high %v1607, %v1607
        %v1616 = vcombine.high %v1608, %v1608
        %1617 = vrot.lane.b32.xlu0 %v1607, 91
        %v1618 = vpop.permute.xlu0 %1617
        %1619 = vrot.lane.b32.xlu0 %v1615, 91
        %v1620 = vpop.permute.xlu0 %1619
        %1621 = vrot.lane.b32.xlu0 %v1608, 91
        %v1622 = vpop.permute.xlu0 %1621
        %1623 = vrot.lane.b32.xlu0 %v1616, 91
        %v1624 = vpop.permute.xlu0 %1623
        %1625 = vrot.lane.b32.xlu0 %v1609, 91
        %v1626 = vpop.permute.xlu0 %1625
        %vm1627 = vcmask 744448
        %v1628 = vsel %vm1627, %v1618, %v1620
        %v1629 = vsel %vm1627, %v1620, %v1622
        %v1630 = vsel %vm1627, %v1622, %v1624
        %v1631 = vsel %vm1627, %v1624, %v1626
        %v1633 = vsel %vm385, %v1611, 0
        %v1635 = vsel %vm389, %v1628, 0
        %v1637 = vsel %vm389, %v1629, 0
        %v1639 = vsel %vm389, %v1630, 0
        %v1641 = vsel %vm389, %v1631, 0
        %1643 = vmatprep.subr.mxu0 0.0
        %1644 = vmatpush1.msra.mxu0 0.0
        %1645 = vmatprep.subr.mxu0 0.0
        %1646 = vmatpush1.msra.mxu0 0.0
        %1647 = vmatprep.subr.mxu0 0.0
        %1648 = vmatpush1.msra.mxu0 0.0
        %1649 = vmatprep.subr.mxu0 0.0
        %1650 = vmatpush1.msra.mxu0 0.0
        %1651 = vmatprep.subr.mxu0 0.0
        %1652 = vmatpush1.msra.mxu0 0.0
        %1653 = vmatprep.subr.mxu0 0.0
        %1654 = vmatpush1.msra.mxu0 0.0
        %1655 = vmatprep.subr.mxu0 0.0
        %1656 = vmatpush1.msra.mxu0 0.0
        %1657 = vmatprep.subr.mxu0 0.0
        %1658 = vmatpush1.msra.mxu0 0.0
        %1659 = vmatprep.subr.mxu0 0.0
        %1660 = vmatpush1.msra.mxu0 0.0
        %1661 = vmatprep.subr.mxu0 0.0
        %1662 = vmatpush1.msra.mxu0 0.0
        %1663 = vmatprep.subr.mxu0 0.0
        %1664 = vmatpush1.msra.mxu0 0.0
        %1665 = vmatprep.subr.mxu0 0.0
        %1666 = vmatpush1.msra.mxu0 0.0
        %1667 = vmatprep.subr.mxu0 0.0
        %1668 = vmatpush1.msra.mxu0 0.0
        %1669 = vmatprep.subr.mxu0 0.0
        %1670 = vmatpush1.msra.mxu0 0.0
        %1671 = vmatprep.subr.mxu0 0.0
        %1672 = vmatpush1.msra.mxu0 0.0
        %1673 = vmatprep.subr.mxu0 %v1637
        %1674 = vmatpush1.msra.mxu0 %v1635
        %1675 = vmatprep.subr.mxu0 0.0
        %1676 = vmatpush2.msra.mxu0 0.0
        %1677 = vmatprep.subr.mxu0 0.0
        %1678 = vmatpush2.msra.mxu0 0.0
        %1679 = vmatprep.subr.mxu0 0.0
        %1680 = vmatpush2.msra.mxu0 0.0
        %1681 = vmatprep.subr.mxu0 0.0
        %1682 = vmatpush2.msra.mxu0 0.0
        %1683 = vmatprep.subr.mxu0 0.0
        %1684 = vmatpush2.msra.mxu0 0.0
        %1685 = vmatprep.subr.mxu0 0.0
        %1686 = vmatpush2.msra.mxu0 0.0
        %1687 = vmatprep.subr.mxu0 0.0
        %1688 = vmatpush2.msra.mxu0 0.0
        %1689 = vmatprep.subr.mxu0 0.0
        %1690 = vmatpush2.msra.mxu0 0.0
        %1691 = vmatprep.subr.mxu0 0.0
        %1692 = vmatpush2.msra.mxu0 0.0
        %1693 = vmatprep.subr.mxu0 0.0
        %1694 = vmatpush2.msra.mxu0 0.0
        %1695 = vmatprep.subr.mxu0 0.0
        %1696 = vmatpush2.msra.mxu0 0.0
        %1697 = vmatprep.subr.mxu0 0.0
        %1698 = vmatpush2.msra.mxu0 0.0
        %1699 = vmatprep.subr.mxu0 0.0
        %1700 = vmatpush2.msra.mxu0 0.0
        %1701 = vmatprep.subr.mxu0 0.0
        %1702 = vmatpush2.msra.mxu0 0.0
        %1703 = vmatprep.subr.mxu0 0.0
        %1704 = vmatpush2.msra.mxu0 0.0
        %1705 = vmatprep.subr.mxu0 0.0
        %1706 = vmatpush2.msra.mxu0 0.0
        %1707 = vmatprep.mubr.f32.mxu0 0.0
        %1708 = vmatmul.mubr.f32.gmra.mxu0 %v1633
        %v1709 = vpop.f32.mrf.mxu0
        %v1710 = vadd.f32 0.0, %v1709
        %v1711 = vpop.f32.mrf.mxu0
        %v1712 = vadd.f32 0.0, %v1711
        %1713 = vdwg.mxu0
        %1714 = vmatprep.subr.mxu0 0.0
        %1715 = vmatpush1.msra.mxu0 0.0
        %1716 = vmatprep.subr.mxu0 0.0
        %1717 = vmatpush1.msra.mxu0 0.0
        %1718 = vmatprep.subr.mxu0 0.0
        %1719 = vmatpush1.msra.mxu0 0.0
        %1720 = vmatprep.subr.mxu0 0.0
        %1721 = vmatpush1.msra.mxu0 0.0
        %1722 = vmatprep.subr.mxu0 0.0
        %1723 = vmatpush1.msra.mxu0 0.0
        %1724 = vmatprep.subr.mxu0 0.0
        %1725 = vmatpush1.msra.mxu0 0.0
        %1726 = vmatprep.subr.mxu0 0.0
        %1727 = vmatpush1.msra.mxu0 0.0
        %1728 = vmatprep.subr.mxu0 0.0
        %1729 = vmatpush1.msra.mxu0 0.0
        %1730 = vmatprep.subr.mxu0 0.0
        %1731 = vmatpush1.msra.mxu0 0.0
        %1732 = vmatprep.subr.mxu0 0.0
        %1733 = vmatpush1.msra.mxu0 0.0
        %1734 = vmatprep.subr.mxu0 0.0
        %1735 = vmatpush1.msra.mxu0 0.0
        %1736 = vmatprep.subr.mxu0 0.0
        %1737 = vmatpush1.msra.mxu0 0.0
        %1738 = vmatprep.subr.mxu0 0.0
        %1739 = vmatpush1.msra.mxu0 0.0
        %1740 = vmatprep.subr.mxu0 0.0
        %1741 = vmatpush1.msra.mxu0 0.0
        %1742 = vmatprep.subr.mxu0 0.0
        %1743 = vmatpush1.msra.mxu0 0.0
        %1744 = vmatprep.subr.mxu0 %v1641
        %1745 = vmatpush1.msra.mxu0 %v1639
        %1746 = vmatprep.subr.mxu0 0.0
        %1747 = vmatpush2.msra.mxu0 0.0
        %1748 = vmatprep.subr.mxu0 0.0
        %1749 = vmatpush2.msra.mxu0 0.0
        %1750 = vmatprep.subr.mxu0 0.0
        %1751 = vmatpush2.msra.mxu0 0.0
        %1752 = vmatprep.subr.mxu0 0.0
        %1753 = vmatpush2.msra.mxu0 0.0
        %1754 = vmatprep.subr.mxu0 0.0
        %1755 = vmatpush2.msra.mxu0 0.0
        %1756 = vmatprep.subr.mxu0 0.0
        %1757 = vmatpush2.msra.mxu0 0.0
        %1758 = vmatprep.subr.mxu0 0.0
        %1759 = vmatpush2.msra.mxu0 0.0
        %1760 = vmatprep.subr.mxu0 0.0
        %1761 = vmatpush2.msra.mxu0 0.0
        %1762 = vmatprep.subr.mxu0 0.0
        %1763 = vmatpush2.msra.mxu0 0.0
        %1764 = vmatprep.subr.mxu0 0.0
        %1765 = vmatpush2.msra.mxu0 0.0
        %1766 = vmatprep.subr.mxu0 0.0
        %1767 = vmatpush2.msra.mxu0 0.0
        %1768 = vmatprep.subr.mxu0 0.0
        %1769 = vmatpush2.msra.mxu0 0.0
        %1770 = vmatprep.subr.mxu0 0.0
        %1771 = vmatpush2.msra.mxu0 0.0
        %1772 = vmatprep.subr.mxu0 0.0
        %1773 = vmatpush2.msra.mxu0 0.0
        %1774 = vmatprep.subr.mxu0 0.0
        %1775 = vmatpush2.msra.mxu0 0.0
        %1776 = vmatprep.subr.mxu0 0.0
        %1777 = vmatpush2.msra.mxu0 0.0
        %1778 = vmatprep.mubr.f32.mxu0 0.0
        %1779 = vmatmul.mubr.f32.gmra.mxu0 %v1633
        %v1780 = vpop.f32.mrf.mxu0
        %v1781 = vadd.f32 0.0, %v1780
        %v1782 = vpop.f32.mrf.mxu0
        %v1783 = vadd.f32 0.0, %v1782
        %1784 = vdwg.mxu0
        %v1785 = vadd.f32 %v1603, %v1710
        %v1786 = vadd.f32 %v1604, %v1712
        %v1787 = vadd.f32 %v1605, %v1781
        %v1788 = vadd.f32 %v1606, %v1783
        %v1789 = vld [vmem:[%s356] sm:$0xff]
        %v1790 = vld [vmem:[%s356 + $0x8] sm:$0xff]
        %v1791 = vld [vmem:[%s356 + $0x10] sm:$0xf]
        %s1792 = scalar_lea.vmem %s1, 64
        %v1793 = vld [vmem:[%s1792] sm:$0xff]
        %v1797 = vcombine.high %v1789, %v1789
        %v1798 = vcombine.high %v1790, %v1790
        %1799 = vrot.lane.b32.xlu0 %v1789, 90
        %v1800 = vpop.permute.xlu0 %1799
        %1801 = vrot.lane.b32.xlu0 %v1797, 90
        %v1802 = vpop.permute.xlu0 %1801
        %1803 = vrot.lane.b32.xlu0 %v1790, 90
        %v1804 = vpop.permute.xlu0 %1803
        %1805 = vrot.lane.b32.xlu0 %v1798, 90
        %v1806 = vpop.permute.xlu0 %1805
        %1807 = vrot.lane.b32.xlu0 %v1791, 90
        %v1808 = vpop.permute.xlu0 %1807
        %vm1809 = vcmask 736256
        %v1810 = vsel %vm1809, %v1800, %v1802
        %v1811 = vsel %vm1809, %v1802, %v1804
        %v1812 = vsel %vm1809, %v1804, %v1806
        %v1813 = vsel %vm1809, %v1806, %v1808
        %v1815 = vsel %vm385, %v1793, 0
        %v1817 = vsel %vm389, %v1810, 0
        %v1819 = vsel %vm389, %v1811, 0
        %v1821 = vsel %vm389, %v1812, 0
        %v1823 = vsel %vm389, %v1813, 0
        %1825 = vmatprep.subr.mxu0 0.0
        %1826 = vmatpush1.msra.mxu0 0.0
        %1827 = vmatprep.subr.mxu0 0.0
        %1828 = vmatpush1.msra.mxu0 0.0
        %1829 = vmatprep.subr.mxu0 0.0
        %1830 = vmatpush1.msra.mxu0 0.0
        %1831 = vmatprep.subr.mxu0 0.0
        %1832 = vmatpush1.msra.mxu0 0.0
        %1833 = vmatprep.subr.mxu0 0.0
        %1834 = vmatpush1.msra.mxu0 0.0
        %1835 = vmatprep.subr.mxu0 0.0
        %1836 = vmatpush1.msra.mxu0 0.0
        %1837 = vmatprep.subr.mxu0 0.0
        %1838 = vmatpush1.msra.mxu0 0.0
        %1839 = vmatprep.subr.mxu0 0.0
        %1840 = vmatpush1.msra.mxu0 0.0
        %1841 = vmatprep.subr.mxu0 0.0
        %1842 = vmatpush1.msra.mxu0 0.0
        %1843 = vmatprep.subr.mxu0 0.0
        %1844 = vmatpush1.msra.mxu0 0.0
        %1845 = vmatprep.subr.mxu0 0.0
        %1846 = vmatpush1.msra.mxu0 0.0
        %1847 = vmatprep.subr.mxu0 0.0
        %1848 = vmatpush1.msra.mxu0 0.0
        %1849 = vmatprep.subr.mxu0 0.0
        %1850 = vmatpush1.msra.mxu0 0.0
        %1851 = vmatprep.subr.mxu0 0.0
        %1852 = vmatpush1.msra.mxu0 0.0
        %1853 = vmatprep.subr.mxu0 0.0
        %1854 = vmatpush1.msra.mxu0 0.0
        %1855 = vmatprep.subr.mxu0 %v1819
        %1856 = vmatpush1.msra.mxu0 %v1817
        %1857 = vmatprep.subr.mxu0 0.0
        %1858 = vmatpush2.msra.mxu0 0.0
        %1859 = vmatprep.subr.mxu0 0.0
        %1860 = vmatpush2.msra.mxu0 0.0
        %1861 = vmatprep.subr.mxu0 0.0
        %1862 = vmatpush2.msra.mxu0 0.0
        %1863 = vmatprep.subr.mxu0 0.0
        %1864 = vmatpush2.msra.mxu0 0.0
        %1865 = vmatprep.subr.mxu0 0.0
        %1866 = vmatpush2.msra.mxu0 0.0
        %1867 = vmatprep.subr.mxu0 0.0
        %1868 = vmatpush2.msra.mxu0 0.0
        %1869 = vmatprep.subr.mxu0 0.0
        %1870 = vmatpush2.msra.mxu0 0.0
        %1871 = vmatprep.subr.mxu0 0.0
        %1872 = vmatpush2.msra.mxu0 0.0
        %1873 = vmatprep.subr.mxu0 0.0
        %1874 = vmatpush2.msra.mxu0 0.0
        %1875 = vmatprep.subr.mxu0 0.0
        %1876 = vmatpush2.msra.mxu0 0.0
        %1877 = vmatprep.subr.mxu0 0.0
        %1878 = vmatpush2.msra.mxu0 0.0
        %1879 = vmatprep.subr.mxu0 0.0
        %1880 = vmatpush2.msra.mxu0 0.0
        %1881 = vmatprep.subr.mxu0 0.0
        %1882 = vmatpush2.msra.mxu0 0.0
        %1883 = vmatprep.subr.mxu0 0.0
        %1884 = vmatpush2.msra.mxu0 0.0
        %1885 = vmatprep.subr.mxu0 0.0
        %1886 = vmatpush2.msra.mxu0 0.0
        %1887 = vmatprep.subr.mxu0 0.0
        %1888 = vmatpush2.msra.mxu0 0.0
        %1889 = vmatprep.mubr.f32.mxu0 0.0
        %1890 = vmatmul.mubr.f32.gmra.mxu0 %v1815
        %v1891 = vpop.f32.mrf.mxu0
        %v1892 = vadd.f32 0.0, %v1891
        %v1893 = vpop.f32.mrf.mxu0
        %v1894 = vadd.f32 0.0, %v1893
        %1895 = vdwg.mxu0
        %1896 = vmatprep.subr.mxu0 0.0
        %1897 = vmatpush1.msra.mxu0 0.0
        %1898 = vmatprep.subr.mxu0 0.0
        %1899 = vmatpush1.msra.mxu0 0.0
        %1900 = vmatprep.subr.mxu0 0.0
        %1901 = vmatpush1.msra.mxu0 0.0
        %1902 = vmatprep.subr.mxu0 0.0
        %1903 = vmatpush1.msra.mxu0 0.0
        %1904 = vmatprep.subr.mxu0 0.0
        %1905 = vmatpush1.msra.mxu0 0.0
        %1906 = vmatprep.subr.mxu0 0.0
        %1907 = vmatpush1.msra.mxu0 0.0
        %1908 = vmatprep.subr.mxu0 0.0
        %1909 = vmatpush1.msra.mxu0 0.0
        %1910 = vmatprep.subr.mxu0 0.0
        %1911 = vmatpush1.msra.mxu0 0.0
        %1912 = vmatprep.subr.mxu0 0.0
        %1913 = vmatpush1.msra.mxu0 0.0
        %1914 = vmatprep.subr.mxu0 0.0
        %1915 = vmatpush1.msra.mxu0 0.0
        %1916 = vmatprep.subr.mxu0 0.0
        %1917 = vmatpush1.msra.mxu0 0.0
        %1918 = vmatprep.subr.mxu0 0.0
        %1919 = vmatpush1.msra.mxu0 0.0
        %1920 = vmatprep.subr.mxu0 0.0
        %1921 = vmatpush1.msra.mxu0 0.0
        %1922 = vmatprep.subr.mxu0 0.0
        %1923 = vmatpush1.msra.mxu0 0.0
        %1924 = vmatprep.subr.mxu0 0.0
        %1925 = vmatpush1.msra.mxu0 0.0
        %1926 = vmatprep.subr.mxu0 %v1823
        %1927 = vmatpush1.msra.mxu0 %v1821
        %1928 = vmatprep.subr.mxu0 0.0
        %1929 = vmatpush2.msra.mxu0 0.0
        %1930 = vmatprep.subr.mxu0 0.0
        %1931 = vmatpush2.msra.mxu0 0.0
        %1932 = vmatprep.subr.mxu0 0.0
        %1933 = vmatpush2.msra.mxu0 0.0
        %1934 = vmatprep.subr.mxu0 0.0
        %1935 = vmatpush2.msra.mxu0 0.0
        %1936 = vmatprep.subr.mxu0 0.0
        %1937 = vmatpush2.msra.mxu0 0.0
        %1938 = vmatprep.subr.mxu0 0.0
        %1939 = vmatpush2.msra.mxu0 0.0
        %1940 = vmatprep.subr.mxu0 0.0
        %1941 = vmatpush2.msra.mxu0 0.0
        %1942 = vmatprep.subr.mxu0 0.0
        %1943 = vmatpush2.msra.mxu0 0.0
        %1944 = vmatprep.subr.mxu0 0.0
        %1945 = vmatpush2.msra.mxu0 0.0
        %1946 = vmatprep.subr.mxu0 0.0
        %1947 = vmatpush2.msra.mxu0 0.0
        %1948 = vmatprep.subr.mxu0 0.0
        %1949 = vmatpush2.msra.mxu0 0.0
        %1950 = vmatprep.subr.mxu0 0.0
        %1951 = vmatpush2.msra.mxu0 0.0
        %1952 = vmatprep.subr.mxu0 0.0
        %1953 = vmatpush2.msra.mxu0 0.0
        %1954 = vmatprep.subr.mxu0 0.0
        %1955 = vmatpush2.msra.mxu0 0.0
        %1956 = vmatprep.subr.mxu0 0.0
        %1957 = vmatpush2.msra.mxu0 0.0
        %1958 = vmatprep.subr.mxu0 0.0
        %1959 = vmatpush2.msra.mxu0 0.0
        %1960 = vmatprep.mubr.f32.mxu0 0.0
        %1961 = vmatmul.mubr.f32.gmra.mxu0 %v1815
        %v1962 = vpop.f32.mrf.mxu0
        %v1963 = vadd.f32 0.0, %v1962
        %v1964 = vpop.f32.mrf.mxu0
        %v1965 = vadd.f32 0.0, %v1964
        %1966 = vdwg.mxu0
        %v1967 = vadd.f32 %v1785, %v1892
        %v1968 = vadd.f32 %v1786, %v1894
        %v1969 = vadd.f32 %v1787, %v1963
        %v1970 = vadd.f32 %v1788, %v1965
        %v1971 = vld [vmem:[%s2] sm:$0xff]
        %1973 = vset.pattern.permute.xlu0 0
        %1974 = vperm.xlu0 %1973, %v1971
        %v1975 = vpop.permute.xlu0 %1974
        %v1977 = vadd.f32 %v1967, %v1975
        %v1978 = vadd.f32 %v1968, %v1975
        %v1979 = vadd.f32 %v1969, %v1975
        %v1980 = vadd.f32 %v1970, %v1975
        %v1981 = vmax.f32 %v1977, 0.0
        %v1982 = vmax.f32 %v1978, 0.0
        %v1983 = vmax.f32 %v1979, 0.0
        %v1984 = vmax.f32 %v1980, 0.0
        %v1985 = vld [vmem:[%s3] sm:$0xf]
        %v1987 = vlaneseq
        %v1988 = vshrl.u32 %v1987, 7
        %v1989 = vsub.s32 0, %v1988
        %v1990 = vrot.slane %v1985, %v1989
        %v1991 = vlaneseq
        %v1992 = vshrl.u32 %v1991, 7
        %v1993 = vsub.s32 1, %v1992
        %v1994 = vrot.slane %v1985, %v1993
        %v1995 = vlaneseq
        %v1996 = vshrl.u32 %v1995, 7
        %v1997 = vsub.s32 2, %v1996
        %v1998 = vrot.slane %v1985, %v1997
        %v1999 = vlaneseq
        %v2000 = vshrl.u32 %v1999, 7
        %v2001 = vsub.s32 3, %v2000
        %v2002 = vrot.slane %v1985, %v2001
        %v2007 = vmul.f32 %v1981, %v1990
        %v2008 = vmul.f32 %v1982, %v1994
        %v2009 = vmul.f32 %v1983, %v1998
        %v2010 = vmul.f32 %v1984, %v2002
        %2011 = vst [vmem:[#allocation2] sm:$0xff] %v2007
        %2012 = vst [vmem:[#allocation2 + $0x8] sm:$0xff] %v2008
        %2013 = vst [vmem:[#allocation2 + $0x10] sm:$0xff] %v2009
        %2014 = vst [vmem:[#allocation2 + $0x18] sm:$0xff] %v2010
        %v2015 = vld [vmem:[#allocation2] sm:$0xff]
        %v2016 = vld [vmem:[#allocation2 + $0x8] sm:$0xff]
        %v2017 = vld [vmem:[#allocation2 + $0x10] sm:$0xff]
        %v2018 = vld [vmem:[%s4] sm:$0xff]
        %v2019 = vld [vmem:[#allocation2] sm:$0xff]
        %v2020 = vld [vmem:[#allocation2 + $0x8] sm:$0xff]
        %v2021 = vld [vmem:[#allocation2 + $0x10] sm:$0xff]
        %v2022 = vld [vmem:[#allocation2 + $0x18] sm:$0xff]
        %s2023 = scalar_lea.vmem %s4, 8
        %v2024 = vld [vmem:[%s2023] sm:$0xff]
        %2029 = vrot.lane.b32.xlu0 %v2019, 127
        %v2030 = vpop.permute.xlu0 %2029
        %2031 = vrot.lane.b32.xlu0 %v2020, 127
        %v2032 = vpop.permute.xlu0 %2031
        %2033 = vrot.lane.b32.xlu0 %v2021, 127
        %v2034 = vpop.permute.xlu0 %2033
        %2035 = vrot.lane.b32.xlu0 %v2022, 127
        %v2036 = vpop.permute.xlu0 %2035
        %v2037 = vsel %vm380, %v2030, %v2032
        %v2038 = vsel %vm380, %v2032, %v2034
        %v2039 = vsel %vm380, %v2034, %v2036
        %vm2043 = vcmask 64512
        %v2045 = vsel %vm2043, %v2024, 0
        %2047 = vmatprep.subr.mxu0 0.0
        %2048 = vmatpush1.msra.mxu0 0.0
        %2049 = vmatprep.subr.mxu0 0.0
        %2050 = vmatpush1.msra.mxu0 0.0
        %2051 = vmatprep.subr.mxu0 0.0
        %2052 = vmatpush1.msra.mxu0 0.0
        %2053 = vmatprep.subr.mxu0 0.0
        %2054 = vmatpush1.msra.mxu0 0.0
        %2055 = vmatprep.subr.mxu0 0.0
        %2056 = vmatpush1.msra.mxu0 0.0
        %2057 = vmatprep.subr.mxu0 0.0
        %2058 = vmatpush1.msra.mxu0 0.0
        %2059 = vmatprep.subr.mxu0 0.0
        %2060 = vmatpush1.msra.mxu0 0.0
        %2061 = vmatprep.subr.mxu0 0.0
        %2062 = vmatpush1.msra.mxu0 0.0
        %2063 = vmatprep.subr.mxu0 0.0
        %2064 = vmatpush1.msra.mxu0 0.0
        %2065 = vmatprep.subr.mxu0 0.0
        %2066 = vmatpush1.msra.mxu0 0.0
        %2067 = vmatprep.subr.mxu0 0.0
        %2068 = vmatpush1.msra.mxu0 0.0
        %2069 = vmatprep.subr.mxu0 0.0
        %2070 = vmatpush1.msra.mxu0 0.0
        %2071 = vmatprep.subr.mxu0 0.0
        %2072 = vmatpush1.msra.mxu0 0.0
        %2073 = vmatprep.subr.mxu0 0.0
        %2074 = vmatpush1.msra.mxu0 0.0
        %2075 = vmatprep.subr.mxu0 0.0
        %2076 = vmatpush1.msra.mxu0 0.0
        %2077 = vmatprep.subr.mxu0 %v2038
        %2078 = vmatpush1.msra.mxu0 %v2037
        %2079 = vmatprep.subr.mxu0 0.0
        %2080 = vmatpush2.msra.mxu0 0.0
        %2081 = vmatprep.subr.mxu0 0.0
        %2082 = vmatpush2.msra.mxu0 0.0
        %2083 = vmatprep.subr.mxu0 0.0
        %2084 = vmatpush2.msra.mxu0 0.0
        %2085 = vmatprep.subr.mxu0 0.0
        %2086 = vmatpush2.msra.mxu0 0.0
        %2087 = vmatprep.subr.mxu0 0.0
        %2088 = vmatpush2.msra.mxu0 0.0
        %2089 = vmatprep.subr.mxu0 0.0
        %2090 = vmatpush2.msra.mxu0 0.0
        %2091 = vmatprep.subr.mxu0 0.0
        %2092 = vmatpush2.msra.mxu0 0.0
        %2093 = vmatprep.subr.mxu0 0.0
        %2094 = vmatpush2.msra.mxu0 0.0
        %2095 = vmatprep.subr.mxu0 0.0
        %2096 = vmatpush2.msra.mxu0 0.0
        %2097 = vmatprep.subr.mxu0 0.0
        %2098 = vmatpush2.msra.mxu0 0.0
        %2099 = vmatprep.subr.mxu0 0.0
        %2100 = vmatpush2.msra.mxu0 0.0
        %2101 = vmatprep.subr.mxu0 0.0
        %2102 = vmatpush2.msra.mxu0 0.0
        %2103 = vmatprep.subr.mxu0 0.0
        %2104 = vmatpush2.msra.mxu0 0.0
        %2105 = vmatprep.subr.mxu0 0.0
        %2106 = vmatpush2.msra.mxu0 0.0
        %2107 = vmatprep.subr.mxu0 0.0
        %2108 = vmatpush2.msra.mxu0 0.0
        %2109 = vmatprep.subr.mxu0 0.0
        %2110 = vmatpush2.msra.mxu0 0.0
        %2111 = vmatprep.mubr.f32.mxu0 0.0
        %2112 = vmatmul.mubr.f32.gmra.mxu0 %v2045
        %v2113 = vpop.f32.mrf.mxu0
        %v2114 = vadd.f32 0.0, %v2113
        %v2115 = vpop.f32.mrf.mxu0
        %v2116 = vadd.f32 0.0, %v2115
        %2117 = vdwg.mxu0
        %2118 = vmatprep.subr.mxu0 0.0
        %2119 = vmatpush1.msra.mxu0 0.0
        %2120 = vmatprep.subr.mxu0 0.0
        %2121 = vmatpush1.msra.mxu0 0.0
        %2122 = vmatprep.subr.mxu0 0.0
        %2123 = vmatpush1.msra.mxu0 0.0
        %2124 = vmatprep.subr.mxu0 0.0
        %2125 = vmatpush1.msra.mxu0 0.0
        %2126 = vmatprep.subr.mxu0 0.0
        %2127 = vmatpush1.msra.mxu0 0.0
        %2128 = vmatprep.subr.mxu0 0.0
        %2129 = vmatpush1.msra.mxu0 0.0
        %2130 = vmatprep.subr.mxu0 0.0
        %2131 = vmatpush1.msra.mxu0 0.0
        %2132 = vmatprep.subr.mxu0 0.0
        %2133 = vmatpush1.msra.mxu0 0.0
        %2134 = vmatprep.subr.mxu0 0.0
        %2135 = vmatpush1.msra.mxu0 0.0
        %2136 = vmatprep.subr.mxu0 0.0
        %2137 = vmatpush1.msra.mxu0 0.0
        %2138 = vmatprep.subr.mxu0 0.0
        %2139 = vmatpush1.msra.mxu0 0.0
        %2140 = vmatprep.subr.mxu0 0.0
        %2141 = vmatpush1.msra.mxu0 0.0
        %2142 = vmatprep.subr.mxu0 0.0
        %2143 = vmatpush1.msra.mxu0 0.0
        %2144 = vmatprep.subr.mxu0 0.0
        %2145 = vmatpush1.msra.mxu0 0.0
        %2146 = vmatprep.subr.mxu0 0.0
        %2147 = vmatpush1.msra.mxu0 0.0
        %2148 = vmatprep.subr.mxu0 0.0
        %2149 = vmatpush1.msra.mxu0 %v2039
        %2150 = vmatprep.subr.mxu0 0.0
        %2151 = vmatpush2.msra.mxu0 0.0
        %2152 = vmatprep.subr.mxu0 0.0
        %2153 = vmatpush2.msra.mxu0 0.0
        %2154 = vmatprep.subr.mxu0 0.0
        %2155 = vmatpush2.msra.mxu0 0.0
        %2156 = vmatprep.subr.mxu0 0.0
        %2157 = vmatpush2.msra.mxu0 0.0
        %2158 = vmatprep.subr.mxu0 0.0
        %2159 = vmatpush2.msra.mxu0 0.0
        %2160 = vmatprep.subr.mxu0 0.0
        %2161 = vmatpush2.msra.mxu0 0.0
        %2162 = vmatprep.subr.mxu0 0.0
        %2163 = vmatpush2.msra.mxu0 0.0
        %2164 = vmatprep.subr.mxu0 0.0
        %2165 = vmatpush2.msra.mxu0 0.0
        %2166 = vmatprep.subr.mxu0 0.0
        %2167 = vmatpush2.msra.mxu0 0.0
        %2168 = vmatprep.subr.mxu0 0.0
        %2169 = vmatpush2.msra.mxu0 0.0
        %2170 = vmatprep.subr.mxu0 0.0
        %2171 = vmatpush2.msra.mxu0 0.0
        %2172 = vmatprep.subr.mxu0 0.0
        %2173 = vmatpush2.msra.mxu0 0.0
        %2174 = vmatprep.subr.mxu0 0.0
        %2175 = vmatpush2.msra.mxu0 0.0
        %2176 = vmatprep.subr.mxu0 0.0
        %2177 = vmatpush2.msra.mxu0 0.0
        %2178 = vmatprep.subr.mxu0 0.0
        %2179 = vmatpush2.msra.mxu0 0.0
        %2180 = vmatprep.subr.mxu0 0.0
        %2181 = vmatpush2.msra.mxu0 0.0
        %2182 = vmatprep.mubr.f32.mxu0 0.0
        %2183 = vmatmul.mubr.f32.gmra.mxu0 %v2045
        %v2184 = vpop.f32.mrf.mxu0
        %v2185 = vadd.f32 0.0, %v2184
        %v2186 = vpop.f32.mrf.mxu0
        %2187 = vdwg.mxu0
        %v2189 = vsel %vm2043, %v2018, 0
        %2191 = vmatprep.subr.mxu0 0.0
        %2192 = vmatpush1.msra.mxu0 0.0
        %2193 = vmatprep.subr.mxu0 0.0
        %2194 = vmatpush1.msra.mxu0 0.0
        %2195 = vmatprep.subr.mxu0 0.0
        %2196 = vmatpush1.msra.mxu0 0.0
        %2197 = vmatprep.subr.mxu0 0.0
        %2198 = vmatpush1.msra.mxu0 0.0
        %2199 = vmatprep.subr.mxu0 0.0
        %2200 = vmatpush1.msra.mxu0 0.0
        %2201 = vmatprep.subr.mxu0 0.0
        %2202 = vmatpush1.msra.mxu0 0.0
        %2203 = vmatprep.subr.mxu0 0.0
        %2204 = vmatpush1.msra.mxu0 0.0
        %2205 = vmatprep.subr.mxu0 0.0
        %2206 = vmatpush1.msra.mxu0 0.0
        %2207 = vmatprep.subr.mxu0 0.0
        %2208 = vmatpush1.msra.mxu0 0.0
        %2209 = vmatprep.subr.mxu0 0.0
        %2210 = vmatpush1.msra.mxu0 0.0
        %2211 = vmatprep.subr.mxu0 0.0
        %2212 = vmatpush1.msra.mxu0 0.0
        %2213 = vmatprep.subr.mxu0 0.0
        %2214 = vmatpush1.msra.mxu0 0.0
        %2215 = vmatprep.subr.mxu0 0.0
        %2216 = vmatpush1.msra.mxu0 0.0
        %2217 = vmatprep.subr.mxu0 0.0
        %2218 = vmatpush1.msra.mxu0 0.0
        %2219 = vmatprep.subr.mxu0 0.0
        %2220 = vmatpush1.msra.mxu0 0.0
        %2221 = vmatprep.subr.mxu0 %v2016
        %2222 = vmatpush1.msra.mxu0 %v2015
        %2223 = vmatprep.subr.mxu0 0.0
        %2224 = vmatpush2.msra.mxu0 0.0
        %2225 = vmatprep.subr.mxu0 0.0
        %2226 = vmatpush2.msra.mxu0 0.0
        %2227 = vmatprep.subr.mxu0 0.0
        %2228 = vmatpush2.msra.mxu0 0.0
        %2229 = vmatprep.subr.mxu0 0.0
        %2230 = vmatpush2.msra.mxu0 0.0
        %2231 = vmatprep.subr.mxu0 0.0
        %2232 = vmatpush2.msra.mxu0 0.0
        %2233 = vmatprep.subr.mxu0 0.0
        %2234 = vmatpush2.msra.mxu0 0.0
        %2235 = vmatprep.subr.mxu0 0.0
        %2236 = vmatpush2.msra.mxu0 0.0
        %2237 = vmatprep.subr.mxu0 0.0
        %2238 = vmatpush2.msra.mxu0 0.0
        %2239 = vmatprep.subr.mxu0 0.0
        %2240 = vmatpush2.msra.mxu0 0.0
        %2241 = vmatprep.subr.mxu0 0.0
        %2242 = vmatpush2.msra.mxu0 0.0
        %2243 = vmatprep.subr.mxu0 0.0
        %2244 = vmatpush2.msra.mxu0 0.0
        %2245 = vmatprep.subr.mxu0 0.0
        %2246 = vmatpush2.msra.mxu0 0.0
        %2247 = vmatprep.subr.mxu0 0.0
        %2248 = vmatpush2.msra.mxu0 0.0
        %2249 = vmatprep.subr.mxu0 0.0
        %2250 = vmatpush2.msra.mxu0 0.0
        %2251 = vmatprep.subr.mxu0 0.0
        %2252 = vmatpush2.msra.mxu0 0.0
        %2253 = vmatprep.subr.mxu0 0.0
        %2254 = vmatpush2.msra.mxu0 0.0
        %2255 = vmatprep.mubr.f32.mxu0 0.0
        %2256 = vmatmul.mubr.f32.gmra.mxu0 %v2189
        %v2257 = vpop.f32.mrf.mxu0
        %v2258 = vadd.f32 %v2114, %v2257
        %v2259 = vpop.f32.mrf.mxu0
        %v2260 = vadd.f32 %v2116, %v2259
        %2261 = vdwg.mxu0
        %2262 = vmatprep.subr.mxu0 0.0
        %2263 = vmatpush1.msra.mxu0 0.0
        %2264 = vmatprep.subr.mxu0 0.0
        %2265 = vmatpush1.msra.mxu0 0.0
        %2266 = vmatprep.subr.mxu0 0.0
        %2267 = vmatpush1.msra.mxu0 0.0
        %2268 = vmatprep.subr.mxu0 0.0
        %2269 = vmatpush1.msra.mxu0 0.0
        %2270 = vmatprep.subr.mxu0 0.0
        %2271 = vmatpush1.msra.mxu0 0.0
        %2272 = vmatprep.subr.mxu0 0.0
        %2273 = vmatpush1.msra.mxu0 0.0
        %2274 = vmatprep.subr.mxu0 0.0
        %2275 = vmatpush1.msra.mxu0 0.0
        %2276 = vmatprep.subr.mxu0 0.0
        %2277 = vmatpush1.msra.mxu0 0.0
        %2278 = vmatprep.subr.mxu0 0.0
        %2279 = vmatpush1.msra.mxu0 0.0
        %2280 = vmatprep.subr.mxu0 0.0
        %2281 = vmatpush1.msra.mxu0 0.0
        %2282 = vmatprep.subr.mxu0 0.0
        %2283 = vmatpush1.msra.mxu0 0.0
        %2284 = vmatprep.subr.mxu0 0.0
        %2285 = vmatpush1.msra.mxu0 0.0
        %2286 = vmatprep.subr.mxu0 0.0
        %2287 = vmatpush1.msra.mxu0 0.0
        %2288 = vmatprep.subr.mxu0 0.0
        %2289 = vmatpush1.msra.mxu0 0.0
        %2290 = vmatprep.subr.mxu0 0.0
        %2291 = vmatpush1.msra.mxu0 0.0
        %2292 = vmatprep.subr.mxu0 0.0
        %2293 = vmatpush1.msra.mxu0 %v2017
        %2294 = vmatprep.subr.mxu0 0.0
        %2295 = vmatpush2.msra.mxu0 0.0
        %2296 = vmatprep.subr.mxu0 0.0
        %2297 = vmatpush2.msra.mxu0 0.0
        %2298 = vmatprep.subr.mxu0 0.0
        %2299 = vmatpush2.msra.mxu0 0.0
        %2300 = vmatprep.subr.mxu0 0.0
        %2301 = vmatpush2.msra.mxu0 0.0
        %2302 = vmatprep.subr.mxu0 0.0
        %2303 = vmatpush2.msra.mxu0 0.0
        %2304 = vmatprep.subr.mxu0 0.0
        %2305 = vmatpush2.msra.mxu0 0.0
        %2306 = vmatprep.subr.mxu0 0.0
        %2307 = vmatpush2.msra.mxu0 0.0
        %2308 = vmatprep.subr.mxu0 0.0
        %2309 = vmatpush2.msra.mxu0 0.0
        %2310 = vmatprep.subr.mxu0 0.0
        %2311 = vmatpush2.msra.mxu0 0.0
        %2312 = vmatprep.subr.mxu0 0.0
        %2313 = vmatpush2.msra.mxu0 0.0
        %2314 = vmatprep.subr.mxu0 0.0
        %2315 = vmatpush2.msra.mxu0 0.0
        %2316 = vmatprep.subr.mxu0 0.0
        %2317 = vmatpush2.msra.mxu0 0.0
        %2318 = vmatprep.subr.mxu0 0.0
        %2319 = vmatpush2.msra.mxu0 0.0
        %2320 = vmatprep.subr.mxu0 0.0
        %2321 = vmatpush2.msra.mxu0 0.0
        %2322 = vmatprep.subr.mxu0 0.0
        %2323 = vmatpush2.msra.mxu0 0.0
        %2324 = vmatprep.subr.mxu0 0.0
        %2325 = vmatpush2.msra.mxu0 0.0
        %2326 = vmatprep.mubr.f32.mxu0 0.0
        %2327 = vmatmul.mubr.f32.gmra.mxu0 %v2189
        %v2328 = vpop.f32.mrf.mxu0
        %v2329 = vadd.f32 %v2185, %v2328
        %v2330 = vpop.f32.mrf.mxu0
        %2331 = vdwg.mxu0
        %s2332 = scalar_lea.vmem %s4, 16
        %v2333 = vld [vmem:[%s2332] sm:$0xff]
        %2334 = vrot.lane.b32.xlu0 %v2019, 126
        %v2335 = vpop.permute.xlu0 %2334
        %2336 = vrot.lane.b32.xlu0 %v2020, 126
        %v2337 = vpop.permute.xlu0 %2336
        %2338 = vrot.lane.b32.xlu0 %v2021, 126
        %v2339 = vpop.permute.xlu0 %2338
        %2340 = vrot.lane.b32.xlu0 %v2022, 126
        %v2341 = vpop.permute.xlu0 %2340
        %v2342 = vsel %vm717, %v2335, %v2337
        %v2343 = vsel %vm717, %v2337, %v2339
        %v2344 = vsel %vm717, %v2339, %v2341
        %v2349 = vsel %vm2043, %v2333, 0
        %2351 = vmatprep.subr.mxu0 0.0
        %2352 = vmatpush1.msra.mxu0 0.0
        %2353 = vmatprep.subr.mxu0 0.0
        %2354 = vmatpush1.msra.mxu0 0.0
        %2355 = vmatprep.subr.mxu0 0.0
        %2356 = vmatpush1.msra.mxu0 0.0
        %2357 = vmatprep.subr.mxu0 0.0
        %2358 = vmatpush1.msra.mxu0 0.0
        %2359 = vmatprep.subr.mxu0 0.0
        %2360 = vmatpush1.msra.mxu0 0.0
        %2361 = vmatprep.subr.mxu0 0.0
        %2362 = vmatpush1.msra.mxu0 0.0
        %2363 = vmatprep.subr.mxu0 0.0
        %2364 = vmatpush1.msra.mxu0 0.0
        %2365 = vmatprep.subr.mxu0 0.0
        %2366 = vmatpush1.msra.mxu0 0.0
        %2367 = vmatprep.subr.mxu0 0.0
        %2368 = vmatpush1.msra.mxu0 0.0
        %2369 = vmatprep.subr.mxu0 0.0
        %2370 = vmatpush1.msra.mxu0 0.0
        %2371 = vmatprep.subr.mxu0 0.0
        %2372 = vmatpush1.msra.mxu0 0.0
        %2373 = vmatprep.subr.mxu0 0.0
        %2374 = vmatpush1.msra.mxu0 0.0
        %2375 = vmatprep.subr.mxu0 0.0
        %2376 = vmatpush1.msra.mxu0 0.0
        %2377 = vmatprep.subr.mxu0 0.0
        %2378 = vmatpush1.msra.mxu0 0.0
        %2379 = vmatprep.subr.mxu0 0.0
        %2380 = vmatpush1.msra.mxu0 0.0
        %2381 = vmatprep.subr.mxu0 %v2343
        %2382 = vmatpush1.msra.mxu0 %v2342
        %2383 = vmatprep.subr.mxu0 0.0
        %2384 = vmatpush2.msra.mxu0 0.0
        %2385 = vmatprep.subr.mxu0 0.0
        %2386 = vmatpush2.msra.mxu0 0.0
        %2387 = vmatprep.subr.mxu0 0.0
        %2388 = vmatpush2.msra.mxu0 0.0
        %2389 = vmatprep.subr.mxu0 0.0
        %2390 = vmatpush2.msra.mxu0 0.0
        %2391 = vmatprep.subr.mxu0 0.0
        %2392 = vmatpush2.msra.mxu0 0.0
        %2393 = vmatprep.subr.mxu0 0.0
        %2394 = vmatpush2.msra.mxu0 0.0
        %2395 = vmatprep.subr.mxu0 0.0
        %2396 = vmatpush2.msra.mxu0 0.0
        %2397 = vmatprep.subr.mxu0 0.0
        %2398 = vmatpush2.msra.mxu0 0.0
        %2399 = vmatprep.subr.mxu0 0.0
        %2400 = vmatpush2.msra.mxu0 0.0
        %2401 = vmatprep.subr.mxu0 0.0
        %2402 = vmatpush2.msra.mxu0 0.0
        %2403 = vmatprep.subr.mxu0 0.0
        %2404 = vmatpush2.msra.mxu0 0.0
        %2405 = vmatprep.subr.mxu0 0.0
        %2406 = vmatpush2.msra.mxu0 0.0
        %2407 = vmatprep.subr.mxu0 0.0
        %2408 = vmatpush2.msra.mxu0 0.0
        %2409 = vmatprep.subr.mxu0 0.0
        %2410 = vmatpush2.msra.mxu0 0.0
        %2411 = vmatprep.subr.mxu0 0.0
        %2412 = vmatpush2.msra.mxu0 0.0
        %2413 = vmatprep.subr.mxu0 0.0
        %2414 = vmatpush2.msra.mxu0 0.0
        %2415 = vmatprep.mubr.f32.mxu0 0.0
        %2416 = vmatmul.mubr.f32.gmra.mxu0 %v2349
        %v2417 = vpop.f32.mrf.mxu0
        %v2418 = vadd.f32 0.0, %v2417
        %v2419 = vpop.f32.mrf.mxu0
        %v2420 = vadd.f32 0.0, %v2419
        %2421 = vdwg.mxu0
        %2422 = vmatprep.subr.mxu0 0.0
        %2423 = vmatpush1.msra.mxu0 0.0
        %2424 = vmatprep.subr.mxu0 0.0
        %2425 = vmatpush1.msra.mxu0 0.0
        %2426 = vmatprep.subr.mxu0 0.0
        %2427 = vmatpush1.msra.mxu0 0.0
        %2428 = vmatprep.subr.mxu0 0.0
        %2429 = vmatpush1.msra.mxu0 0.0
        %2430 = vmatprep.subr.mxu0 0.0
        %2431 = vmatpush1.msra.mxu0 0.0
        %2432 = vmatprep.subr.mxu0 0.0
        %2433 = vmatpush1.msra.mxu0 0.0
        %2434 = vmatprep.subr.mxu0 0.0
        %2435 = vmatpush1.msra.mxu0 0.0
        %2436 = vmatprep.subr.mxu0 0.0
        %2437 = vmatpush1.msra.mxu0 0.0
        %2438 = vmatprep.subr.mxu0 0.0
        %2439 = vmatpush1.msra.mxu0 0.0
        %2440 = vmatprep.subr.mxu0 0.0
        %2441 = vmatpush1.msra.mxu0 0.0
        %2442 = vmatprep.subr.mxu0 0.0
        %2443 = vmatpush1.msra.mxu0 0.0
        %2444 = vmatprep.subr.mxu0 0.0
        %2445 = vmatpush1.msra.mxu0 0.0
        %2446 = vmatprep.subr.mxu0 0.0
        %2447 = vmatpush1.msra.mxu0 0.0
        %2448 = vmatprep.subr.mxu0 0.0
        %2449 = vmatpush1.msra.mxu0 0.0
        %2450 = vmatprep.subr.mxu0 0.0
        %2451 = vmatpush1.msra.mxu0 0.0
        %2452 = vmatprep.subr.mxu0 0.0
        %2453 = vmatpush1.msra.mxu0 %v2344
        %2454 = vmatprep.subr.mxu0 0.0
        %2455 = vmatpush2.msra.mxu0 0.0
        %2456 = vmatprep.subr.mxu0 0.0
        %2457 = vmatpush2.msra.mxu0 0.0
        %2458 = vmatprep.subr.mxu0 0.0
        %2459 = vmatpush2.msra.mxu0 0.0
        %2460 = vmatprep.subr.mxu0 0.0
        %2461 = vmatpush2.msra.mxu0 0.0
        %2462 = vmatprep.subr.mxu0 0.0
        %2463 = vmatpush2.msra.mxu0 0.0
        %2464 = vmatprep.subr.mxu0 0.0
        %2465 = vmatpush2.msra.mxu0 0.0
        %2466 = vmatprep.subr.mxu0 0.0
        %2467 = vmatpush2.msra.mxu0 0.0
        %2468 = vmatprep.subr.mxu0 0.0
        %2469 = vmatpush2.msra.mxu0 0.0
        %2470 = vmatprep.subr.mxu0 0.0
        %2471 = vmatpush2.msra.mxu0 0.0
        %2472 = vmatprep.subr.mxu0 0.0
        %2473 = vmatpush2.msra.mxu0 0.0
        %2474 = vmatprep.subr.mxu0 0.0
        %2475 = vmatpush2.msra.mxu0 0.0
        %2476 = vmatprep.subr.mxu0 0.0
        %2477 = vmatpush2.msra.mxu0 0.0
        %2478 = vmatprep.subr.mxu0 0.0
        %2479 = vmatpush2.msra.mxu0 0.0
        %2480 = vmatprep.subr.mxu0 0.0
        %2481 = vmatpush2.msra.mxu0 0.0
        %2482 = vmatprep.subr.mxu0 0.0
        %2483 = vmatpush2.msra.mxu0 0.0
        %2484 = vmatprep.subr.mxu0 0.0
        %2485 = vmatpush2.msra.mxu0 0.0
        %2486 = vmatprep.mubr.f32.mxu0 0.0
        %2487 = vmatmul.mubr.f32.gmra.mxu0 %v2349
        %v2488 = vpop.f32.mrf.mxu0
        %v2489 = vadd.f32 0.0, %v2488
        %v2490 = vpop.f32.mrf.mxu0
        %2491 = vdwg.mxu0
        %v2492 = vadd.f32 %v2258, %v2418
        %v2493 = vadd.f32 %v2260, %v2420
        %v2494 = vadd.f32 %v2329, %v2489
        %s2495 = scalar_lea.vmem %s4, 24
        %v2496 = vld [vmem:[%s2495] sm:$0xff]
        %2497 = vrot.lane.b32.xlu0 %v2019, 110
        %v2498 = vpop.permute.xlu0 %2497
        %2499 = vrot.lane.b32.xlu0 %v2020, 110
        %v2500 = vpop.permute.xlu0 %2499
        %2501 = vrot.lane.b32.xlu0 %v2021, 110
        %v2502 = vpop.permute.xlu0 %2501
        %2503 = vrot.lane.b32.xlu0 %v2022, 110
        %v2504 = vpop.permute.xlu0 %2503
        %v2505 = vsel %vm899, %v2498, %v2500
        %v2506 = vsel %vm899, %v2500, %v2502
        %v2507 = vsel %vm899, %v2502, %v2504
        %v2512 = vsel %vm2043, %v2496, 0
        %2514 = vmatprep.subr.mxu0 0.0
        %2515 = vmatpush1.msra.mxu0 0.0
        %2516 = vmatprep.subr.mxu0 0.0
        %2517 = vmatpush1.msra.mxu0 0.0
        %2518 = vmatprep.subr.mxu0 0.0
        %2519 = vmatpush1.msra.mxu0 0.0
        %2520 = vmatprep.subr.mxu0 0.0
        %2521 = vmatpush1.msra.mxu0 0.0
        %2522 = vmatprep.subr.mxu0 0.0
        %2523 = vmatpush1.msra.mxu0 0.0
        %2524 = vmatprep.subr.mxu0 0.0
        %2525 = vmatpush1.msra.mxu0 0.0
        %2526 = vmatprep.subr.mxu0 0.0
        %2527 = vmatpush1.msra.mxu0 0.0
        %2528 = vmatprep.subr.mxu0 0.0
        %2529 = vmatpush1.msra.mxu0 0.0
        %2530 = vmatprep.subr.mxu0 0.0
        %2531 = vmatpush1.msra.mxu0 0.0
        %2532 = vmatprep.subr.mxu0 0.0
        %2533 = vmatpush1.msra.mxu0 0.0
        %2534 = vmatprep.subr.mxu0 0.0
        %2535 = vmatpush1.msra.mxu0 0.0
        %2536 = vmatprep.subr.mxu0 0.0
        %2537 = vmatpush1.msra.mxu0 0.0
        %2538 = vmatprep.subr.mxu0 0.0
        %2539 = vmatpush1.msra.mxu0 0.0
        %2540 = vmatprep.subr.mxu0 0.0
        %2541 = vmatpush1.msra.mxu0 0.0
        %2542 = vmatprep.subr.mxu0 0.0
        %2543 = vmatpush1.msra.mxu0 0.0
        %2544 = vmatprep.subr.mxu0 %v2506
        %2545 = vmatpush1.msra.mxu0 %v2505
        %2546 = vmatprep.subr.mxu0 0.0
        %2547 = vmatpush2.msra.mxu0 0.0
        %2548 = vmatprep.subr.mxu0 0.0
        %2549 = vmatpush2.msra.mxu0 0.0
        %2550 = vmatprep.subr.mxu0 0.0
        %2551 = vmatpush2.msra.mxu0 0.0
        %2552 = vmatprep.subr.mxu0 0.0
        %2553 = vmatpush2.msra.mxu0 0.0
        %2554 = vmatprep.subr.mxu0 0.0
        %2555 = vmatpush2.msra.mxu0 0.0
        %2556 = vmatprep.subr.mxu0 0.0
        %2557 = vmatpush2.msra.mxu0 0.0
        %2558 = vmatprep.subr.mxu0 0.0
        %2559 = vmatpush2.msra.mxu0 0.0
        %2560 = vmatprep.subr.mxu0 0.0
        %2561 = vmatpush2.msra.mxu0 0.0
        %2562 = vmatprep.subr.mxu0 0.0
        %2563 = vmatpush2.msra.mxu0 0.0
        %2564 = vmatprep.subr.mxu0 0.0
        %2565 = vmatpush2.msra.mxu0 0.0
        %2566 = vmatprep.subr.mxu0 0.0
        %2567 = vmatpush2.msra.mxu0 0.0
        %2568 = vmatprep.subr.mxu0 0.0
        %2569 = vmatpush2.msra.mxu0 0.0
        %2570 = vmatprep.subr.mxu0 0.0
        %2571 = vmatpush2.msra.mxu0 0.0
        %2572 = vmatprep.subr.mxu0 0.0
        %2573 = vmatpush2.msra.mxu0 0.0
        %2574 = vmatprep.subr.mxu0 0.0
        %2575 = vmatpush2.msra.mxu0 0.0
        %2576 = vmatprep.subr.mxu0 0.0
        %2577 = vmatpush2.msra.mxu0 0.0
        %2578 = vmatprep.mubr.f32.mxu0 0.0
        %2579 = vmatmul.mubr.f32.gmra.mxu0 %v2512
        %v2580 = vpop.f32.mrf.mxu0
        %v2581 = vadd.f32 0.0, %v2580
        %v2582 = vpop.f32.mrf.mxu0
        %v2583 = vadd.f32 0.0, %v2582
        %2584 = vdwg.mxu0
        %2585 = vmatprep.subr.mxu0 0.0
        %2586 = vmatpush1.msra.mxu0 0.0
        %2587 = vmatprep.subr.mxu0 0.0
        %2588 = vmatpush1.msra.mxu0 0.0
        %2589 = vmatprep.subr.mxu0 0.0
        %2590 = vmatpush1.msra.mxu0 0.0
        %2591 = vmatprep.subr.mxu0 0.0
        %2592 = vmatpush1.msra.mxu0 0.0
        %2593 = vmatprep.subr.mxu0 0.0
        %2594 = vmatpush1.msra.mxu0 0.0
        %2595 = vmatprep.subr.mxu0 0.0
        %2596 = vmatpush1.msra.mxu0 0.0
        %2597 = vmatprep.subr.mxu0 0.0
        %2598 = vmatpush1.msra.mxu0 0.0
        %2599 = vmatprep.subr.mxu0 0.0
        %2600 = vmatpush1.msra.mxu0 0.0
        %2601 = vmatprep.subr.mxu0 0.0
        %2602 = vmatpush1.msra.mxu0 0.0
        %2603 = vmatprep.subr.mxu0 0.0
        %2604 = vmatpush1.msra.mxu0 0.0
        %2605 = vmatprep.subr.mxu0 0.0
        %2606 = vmatpush1.msra.mxu0 0.0
        %2607 = vmatprep.subr.mxu0 0.0
        %2608 = vmatpush1.msra.mxu0 0.0
        %2609 = vmatprep.subr.mxu0 0.0
        %2610 = vmatpush1.msra.mxu0 0.0
        %2611 = vmatprep.subr.mxu0 0.0
        %2612 = vmatpush1.msra.mxu0 0.0
        %2613 = vmatprep.subr.mxu0 0.0
        %2614 = vmatpush1.msra.mxu0 0.0
        %2615 = vmatprep.subr.mxu0 0.0
        %2616 = vmatpush1.msra.mxu0 %v2507
        %2617 = vmatprep.subr.mxu0 0.0
        %2618 = vmatpush2.msra.mxu0 0.0
        %2619 = vmatprep.subr.mxu0 0.0
        %2620 = vmatpush2.msra.mxu0 0.0
        %2621 = vmatprep.subr.mxu0 0.0
        %2622 = vmatpush2.msra.mxu0 0.0
        %2623 = vmatprep.subr.mxu0 0.0
        %2624 = vmatpush2.msra.mxu0 0.0
        %2625 = vmatprep.subr.mxu0 0.0
        %2626 = vmatpush2.msra.mxu0 0.0
        %2627 = vmatprep.subr.mxu0 0.0
        %2628 = vmatpush2.msra.mxu0 0.0
        %2629 = vmatprep.subr.mxu0 0.0
        %2630 = vmatpush2.msra.mxu0 0.0
        %2631 = vmatprep.subr.mxu0 0.0
        %2632 = vmatpush2.msra.mxu0 0.0
        %2633 = vmatprep.subr.mxu0 0.0
        %2634 = vmatpush2.msra.mxu0 0.0
        %2635 = vmatprep.subr.mxu0 0.0
        %2636 = vmatpush2.msra.mxu0 0.0
        %2637 = vmatprep.subr.mxu0 0.0
        %2638 = vmatpush2.msra.mxu0 0.0
        %2639 = vmatprep.subr.mxu0 0.0
        %2640 = vmatpush2.msra.mxu0 0.0
        %2641 = vmatprep.subr.mxu0 0.0
        %2642 = vmatpush2.msra.mxu0 0.0
        %2643 = vmatprep.subr.mxu0 0.0
        %2644 = vmatpush2.msra.mxu0 0.0
        %2645 = vmatprep.subr.mxu0 0.0
        %2646 = vmatpush2.msra.mxu0 0.0
        %2647 = vmatprep.subr.mxu0 0.0
        %2648 = vmatpush2.msra.mxu0 0.0
        %2649 = vmatprep.mubr.f32.mxu0 0.0
        %2650 = vmatmul.mubr.f32.gmra.mxu0 %v2512
        %v2651 = vpop.f32.mrf.mxu0
        %v2652 = vadd.f32 0.0, %v2651
        %v2653 = vpop.f32.mrf.mxu0
        %2654 = vdwg.mxu0
        %v2655 = vadd.f32 %v2492, %v2581
        %v2656 = vadd.f32 %v2493, %v2583
        %v2657 = vadd.f32 %v2494, %v2652
        %s2658 = scalar_lea.vmem %s4, 32
        %v2659 = vld [vmem:[%s2658] sm:$0xff]
        %2660 = vrot.lane.b32.xlu0 %v2019, 109
        %v2661 = vpop.permute.xlu0 %2660
        %2662 = vrot.lane.b32.xlu0 %v2020, 109
        %v2663 = vpop.permute.xlu0 %2662
        %2664 = vrot.lane.b32.xlu0 %v2021, 109
        %v2665 = vpop.permute.xlu0 %2664
        %2666 = vrot.lane.b32.xlu0 %v2022, 109
        %v2667 = vpop.permute.xlu0 %2666
        %v2668 = vsel %vm1081, %v2661, %v2663
        %v2669 = vsel %vm1081, %v2663, %v2665
        %v2670 = vsel %vm1081, %v2665, %v2667
        %v2675 = vsel %vm2043, %v2659, 0
        %2677 = vmatprep.subr.mxu0 0.0
        %2678 = vmatpush1.msra.mxu0 0.0
        %2679 = vmatprep.subr.mxu0 0.0
        %2680 = vmatpush1.msra.mxu0 0.0
        %2681 = vmatprep.subr.mxu0 0.0
        %2682 = vmatpush1.msra.mxu0 0.0
        %2683 = vmatprep.subr.mxu0 0.0
        %2684 = vmatpush1.msra.mxu0 0.0
        %2685 = vmatprep.subr.mxu0 0.0
        %2686 = vmatpush1.msra.mxu0 0.0
        %2687 = vmatprep.subr.mxu0 0.0
        %2688 = vmatpush1.msra.mxu0 0.0
        %2689 = vmatprep.subr.mxu0 0.0
        %2690 = vmatpush1.msra.mxu0 0.0
        %2691 = vmatprep.subr.mxu0 0.0
        %2692 = vmatpush1.msra.mxu0 0.0
        %2693 = vmatprep.subr.mxu0 0.0
        %2694 = vmatpush1.msra.mxu0 0.0
        %2695 = vmatprep.subr.mxu0 0.0
        %2696 = vmatpush1.msra.mxu0 0.0
        %2697 = vmatprep.subr.mxu0 0.0
        %2698 = vmatpush1.msra.mxu0 0.0
        %2699 = vmatprep.subr.mxu0 0.0
        %2700 = vmatpush1.msra.mxu0 0.0
        %2701 = vmatprep.subr.mxu0 0.0
        %2702 = vmatpush1.msra.mxu0 0.0
        %2703 = vmatprep.subr.mxu0 0.0
        %2704 = vmatpush1.msra.mxu0 0.0
        %2705 = vmatprep.subr.mxu0 0.0
        %2706 = vmatpush1.msra.mxu0 0.0
        %2707 = vmatprep.subr.mxu0 %v2669
        %2708 = vmatpush1.msra.mxu0 %v2668
        %2709 = vmatprep.subr.mxu0 0.0
        %2710 = vmatpush2.msra.mxu0 0.0
        %2711 = vmatprep.subr.mxu0 0.0
        %2712 = vmatpush2.msra.mxu0 0.0
        %2713 = vmatprep.subr.mxu0 0.0
        %2714 = vmatpush2.msra.mxu0 0.0
        %2715 = vmatprep.subr.mxu0 0.0
        %2716 = vmatpush2.msra.mxu0 0.0
        %2717 = vmatprep.subr.mxu0 0.0
        %2718 = vmatpush2.msra.mxu0 0.0
        %2719 = vmatprep.subr.mxu0 0.0
        %2720 = vmatpush2.msra.mxu0 0.0
        %2721 = vmatprep.subr.mxu0 0.0
        %2722 = vmatpush2.msra.mxu0 0.0
        %2723 = vmatprep.subr.mxu0 0.0
        %2724 = vmatpush2.msra.mxu0 0.0
        %2725 = vmatprep.subr.mxu0 0.0
        %2726 = vmatpush2.msra.mxu0 0.0
        %2727 = vmatprep.subr.mxu0 0.0
        %2728 = vmatpush2.msra.mxu0 0.0
        %2729 = vmatprep.subr.mxu0 0.0
        %2730 = vmatpush2.msra.mxu0 0.0
        %2731 = vmatprep.subr.mxu0 0.0
        %2732 = vmatpush2.msra.mxu0 0.0
        %2733 = vmatprep.subr.mxu0 0.0
        %2734 = vmatpush2.msra.mxu0 0.0
        %2735 = vmatprep.subr.mxu0 0.0
        %2736 = vmatpush2.msra.mxu0 0.0
        %2737 = vmatprep.subr.mxu0 0.0
        %2738 = vmatpush2.msra.mxu0 0.0
        %2739 = vmatprep.subr.mxu0 0.0
        %2740 = vmatpush2.msra.mxu0 0.0
        %2741 = vmatprep.mubr.f32.mxu0 0.0
        %2742 = vmatmul.mubr.f32.gmra.mxu0 %v2675
        %v2743 = vpop.f32.mrf.mxu0
        %v2744 = vadd.f32 0.0, %v2743
        %v2745 = vpop.f32.mrf.mxu0
        %v2746 = vadd.f32 0.0, %v2745
        %2747 = vdwg.mxu0
        %2748 = vmatprep.subr.mxu0 0.0
        %2749 = vmatpush1.msra.mxu0 0.0
        %2750 = vmatprep.subr.mxu0 0.0
        %2751 = vmatpush1.msra.mxu0 0.0
        %2752 = vmatprep.subr.mxu0 0.0
        %2753 = vmatpush1.msra.mxu0 0.0
        %2754 = vmatprep.subr.mxu0 0.0
        %2755 = vmatpush1.msra.mxu0 0.0
        %2756 = vmatprep.subr.mxu0 0.0
        %2757 = vmatpush1.msra.mxu0 0.0
        %2758 = vmatprep.subr.mxu0 0.0
        %2759 = vmatpush1.msra.mxu0 0.0
        %2760 = vmatprep.subr.mxu0 0.0
        %2761 = vmatpush1.msra.mxu0 0.0
        %2762 = vmatprep.subr.mxu0 0.0
        %2763 = vmatpush1.msra.mxu0 0.0
        %2764 = vmatprep.subr.mxu0 0.0
        %2765 = vmatpush1.msra.mxu0 0.0
        %2766 = vmatprep.subr.mxu0 0.0
        %2767 = vmatpush1.msra.mxu0 0.0
        %2768 = vmatprep.subr.mxu0 0.0
        %2769 = vmatpush1.msra.mxu0 0.0
        %2770 = vmatprep.subr.mxu0 0.0
        %2771 = vmatpush1.msra.mxu0 0.0
        %2772 = vmatprep.subr.mxu0 0.0
        %2773 = vmatpush1.msra.mxu0 0.0
        %2774 = vmatprep.subr.mxu0 0.0
        %2775 = vmatpush1.msra.mxu0 0.0
        %2776 = vmatprep.subr.mxu0 0.0
        %2777 = vmatpush1.msra.mxu0 0.0
        %2778 = vmatprep.subr.mxu0 0.0
        %2779 = vmatpush1.msra.mxu0 %v2670
        %2780 = vmatprep.subr.mxu0 0.0
        %2781 = vmatpush2.msra.mxu0 0.0
        %2782 = vmatprep.subr.mxu0 0.0
        %2783 = vmatpush2.msra.mxu0 0.0
        %2784 = vmatprep.subr.mxu0 0.0
        %2785 = vmatpush2.msra.mxu0 0.0
        %2786 = vmatprep.subr.mxu0 0.0
        %2787 = vmatpush2.msra.mxu0 0.0
        %2788 = vmatprep.subr.mxu0 0.0
        %2789 = vmatpush2.msra.mxu0 0.0
        %2790 = vmatprep.subr.mxu0 0.0
        %2791 = vmatpush2.msra.mxu0 0.0
        %2792 = vmatprep.subr.mxu0 0.0
        %2793 = vmatpush2.msra.mxu0 0.0
        %2794 = vmatprep.subr.mxu0 0.0
        %2795 = vmatpush2.msra.mxu0 0.0
        %2796 = vmatprep.subr.mxu0 0.0
        %2797 = vmatpush2.msra.mxu0 0.0
        %2798 = vmatprep.subr.mxu0 0.0
        %2799 = vmatpush2.msra.mxu0 0.0
        %2800 = vmatprep.subr.mxu0 0.0
        %2801 = vmatpush2.msra.mxu0 0.0
        %2802 = vmatprep.subr.mxu0 0.0
        %2803 = vmatpush2.msra.mxu0 0.0
        %2804 = vmatprep.subr.mxu0 0.0
        %2805 = vmatpush2.msra.mxu0 0.0
        %2806 = vmatprep.subr.mxu0 0.0
        %2807 = vmatpush2.msra.mxu0 0.0
        %2808 = vmatprep.subr.mxu0 0.0
        %2809 = vmatpush2.msra.mxu0 0.0
        %2810 = vmatprep.subr.mxu0 0.0
        %2811 = vmatpush2.msra.mxu0 0.0
        %2812 = vmatprep.mubr.f32.mxu0 0.0
        %2813 = vmatmul.mubr.f32.gmra.mxu0 %v2675
        %v2814 = vpop.f32.mrf.mxu0
        %v2815 = vadd.f32 0.0, %v2814
        %v2816 = vpop.f32.mrf.mxu0
        %2817 = vdwg.mxu0
        %v2818 = vadd.f32 %v2655, %v2744
        %v2819 = vadd.f32 %v2656, %v2746
        %v2820 = vadd.f32 %v2657, %v2815
        %s2821 = scalar_lea.vmem %s4, 40
        %v2822 = vld [vmem:[%s2821] sm:$0xff]
        %2823 = vrot.lane.b32.xlu0 %v2019, 108
        %v2824 = vpop.permute.xlu0 %2823
        %2825 = vrot.lane.b32.xlu0 %v2020, 108
        %v2826 = vpop.permute.xlu0 %2825
        %2827 = vrot.lane.b32.xlu0 %v2021, 108
        %v2828 = vpop.permute.xlu0 %2827
        %2829 = vrot.lane.b32.xlu0 %v2022, 108
        %v2830 = vpop.permute.xlu0 %2829
        %v2831 = vsel %vm1263, %v2824, %v2826
        %v2832 = vsel %vm1263, %v2826, %v2828
        %v2833 = vsel %vm1263, %v2828, %v2830
        %v2838 = vsel %vm2043, %v2822, 0
        %2840 = vmatprep.subr.mxu0 0.0
        %2841 = vmatpush1.msra.mxu0 0.0
        %2842 = vmatprep.subr.mxu0 0.0
        %2843 = vmatpush1.msra.mxu0 0.0
        %2844 = vmatprep.subr.mxu0 0.0
        %2845 = vmatpush1.msra.mxu0 0.0
        %2846 = vmatprep.subr.mxu0 0.0
        %2847 = vmatpush1.msra.mxu0 0.0
        %2848 = vmatprep.subr.mxu0 0.0
        %2849 = vmatpush1.msra.mxu0 0.0
        %2850 = vmatprep.subr.mxu0 0.0
        %2851 = vmatpush1.msra.mxu0 0.0
        %2852 = vmatprep.subr.mxu0 0.0
        %2853 = vmatpush1.msra.mxu0 0.0
        %2854 = vmatprep.subr.mxu0 0.0
        %2855 = vmatpush1.msra.mxu0 0.0
        %2856 = vmatprep.subr.mxu0 0.0
        %2857 = vmatpush1.msra.mxu0 0.0
        %2858 = vmatprep.subr.mxu0 0.0
        %2859 = vmatpush1.msra.mxu0 0.0
        %2860 = vmatprep.subr.mxu0 0.0
        %2861 = vmatpush1.msra.mxu0 0.0
        %2862 = vmatprep.subr.mxu0 0.0
        %2863 = vmatpush1.msra.mxu0 0.0
        %2864 = vmatprep.subr.mxu0 0.0
        %2865 = vmatpush1.msra.mxu0 0.0
        %2866 = vmatprep.subr.mxu0 0.0
        %2867 = vmatpush1.msra.mxu0 0.0
        %2868 = vmatprep.subr.mxu0 0.0
        %2869 = vmatpush1.msra.mxu0 0.0
        %2870 = vmatprep.subr.mxu0 %v2832
        %2871 = vmatpush1.msra.mxu0 %v2831
        %2872 = vmatprep.subr.mxu0 0.0
        %2873 = vmatpush2.msra.mxu0 0.0
        %2874 = vmatprep.subr.mxu0 0.0
        %2875 = vmatpush2.msra.mxu0 0.0
        %2876 = vmatprep.subr.mxu0 0.0
        %2877 = vmatpush2.msra.mxu0 0.0
        %2878 = vmatprep.subr.mxu0 0.0
        %2879 = vmatpush2.msra.mxu0 0.0
        %2880 = vmatprep.subr.mxu0 0.0
        %2881 = vmatpush2.msra.mxu0 0.0
        %2882 = vmatprep.subr.mxu0 0.0
        %2883 = vmatpush2.msra.mxu0 0.0
        %2884 = vmatprep.subr.mxu0 0.0
        %2885 = vmatpush2.msra.mxu0 0.0
        %2886 = vmatprep.subr.mxu0 0.0
        %2887 = vmatpush2.msra.mxu0 0.0
        %2888 = vmatprep.subr.mxu0 0.0
        %2889 = vmatpush2.msra.mxu0 0.0
        %2890 = vmatprep.subr.mxu0 0.0
        %2891 = vmatpush2.msra.mxu0 0.0
        %2892 = vmatprep.subr.mxu0 0.0
        %2893 = vmatpush2.msra.mxu0 0.0
        %2894 = vmatprep.subr.mxu0 0.0
        %2895 = vmatpush2.msra.mxu0 0.0
        %2896 = vmatprep.subr.mxu0 0.0
        %2897 = vmatpush2.msra.mxu0 0.0
        %2898 = vmatprep.subr.mxu0 0.0
        %2899 = vmatpush2.msra.mxu0 0.0
        %2900 = vmatprep.subr.mxu0 0.0
        %2901 = vmatpush2.msra.mxu0 0.0
        %2902 = vmatprep.subr.mxu0 0.0
        %2903 = vmatpush2.msra.mxu0 0.0
        %2904 = vmatprep.mubr.f32.mxu0 0.0
        %2905 = vmatmul.mubr.f32.gmra.mxu0 %v2838
        %v2906 = vpop.f32.mrf.mxu0
        %v2907 = vadd.f32 0.0, %v2906
        %v2908 = vpop.f32.mrf.mxu0
        %v2909 = vadd.f32 0.0, %v2908
        %2910 = vdwg.mxu0
        %2911 = vmatprep.subr.mxu0 0.0
        %2912 = vmatpush1.msra.mxu0 0.0
        %2913 = vmatprep.subr.mxu0 0.0
        %2914 = vmatpush1.msra.mxu0 0.0
        %2915 = vmatprep.subr.mxu0 0.0
        %2916 = vmatpush1.msra.mxu0 0.0
        %2917 = vmatprep.subr.mxu0 0.0
        %2918 = vmatpush1.msra.mxu0 0.0
        %2919 = vmatprep.subr.mxu0 0.0
        %2920 = vmatpush1.msra.mxu0 0.0
        %2921 = vmatprep.subr.mxu0 0.0
        %2922 = vmatpush1.msra.mxu0 0.0
        %2923 = vmatprep.subr.mxu0 0.0
        %2924 = vmatpush1.msra.mxu0 0.0
        %2925 = vmatprep.subr.mxu0 0.0
        %2926 = vmatpush1.msra.mxu0 0.0
        %2927 = vmatprep.subr.mxu0 0.0
        %2928 = vmatpush1.msra.mxu0 0.0
        %2929 = vmatprep.subr.mxu0 0.0
        %2930 = vmatpush1.msra.mxu0 0.0
        %2931 = vmatprep.subr.mxu0 0.0
        %2932 = vmatpush1.msra.mxu0 0.0
        %2933 = vmatprep.subr.mxu0 0.0
        %2934 = vmatpush1.msra.mxu0 0.0
        %2935 = vmatprep.subr.mxu0 0.0
        %2936 = vmatpush1.msra.mxu0 0.0
        %2937 = vmatprep.subr.mxu0 0.0
        %2938 = vmatpush1.msra.mxu0 0.0
        %2939 = vmatprep.subr.mxu0 0.0
        %2940 = vmatpush1.msra.mxu0 0.0
        %2941 = vmatprep.subr.mxu0 0.0
        %2942 = vmatpush1.msra.mxu0 %v2833
        %2943 = vmatprep.subr.mxu0 0.0
        %2944 = vmatpush2.msra.mxu0 0.0
        %2945 = vmatprep.subr.mxu0 0.0
        %2946 = vmatpush2.msra.mxu0 0.0
        %2947 = vmatprep.subr.mxu0 0.0
        %2948 = vmatpush2.msra.mxu0 0.0
        %2949 = vmatprep.subr.mxu0 0.0
        %2950 = vmatpush2.msra.mxu0 0.0
        %2951 = vmatprep.subr.mxu0 0.0
        %2952 = vmatpush2.msra.mxu0 0.0
        %2953 = vmatprep.subr.mxu0 0.0
        %2954 = vmatpush2.msra.mxu0 0.0
        %2955 = vmatprep.subr.mxu0 0.0
        %2956 = vmatpush2.msra.mxu0 0.0
        %2957 = vmatprep.subr.mxu0 0.0
        %2958 = vmatpush2.msra.mxu0 0.0
        %2959 = vmatprep.subr.mxu0 0.0
        %2960 = vmatpush2.msra.mxu0 0.0
        %2961 = vmatprep.subr.mxu0 0.0
        %2962 = vmatpush2.msra.mxu0 0.0
        %2963 = vmatprep.subr.mxu0 0.0
        %2964 = vmatpush2.msra.mxu0 0.0
        %2965 = vmatprep.subr.mxu0 0.0
        %2966 = vmatpush2.msra.mxu0 0.0
        %2967 = vmatprep.subr.mxu0 0.0
        %2968 = vmatpush2.msra.mxu0 0.0
        %2969 = vmatprep.subr.mxu0 0.0
        %2970 = vmatpush2.msra.mxu0 0.0
        %2971 = vmatprep.subr.mxu0 0.0
        %2972 = vmatpush2.msra.mxu0 0.0
        %2973 = vmatprep.subr.mxu0 0.0
        %2974 = vmatpush2.msra.mxu0 0.0
        %2975 = vmatprep.mubr.f32.mxu0 0.0
        %2976 = vmatmul.mubr.f32.gmra.mxu0 %v2838
        %v2977 = vpop.f32.mrf.mxu0
        %v2978 = vadd.f32 0.0, %v2977
        %v2979 = vpop.f32.mrf.mxu0
        %2980 = vdwg.mxu0
        %v2981 = vadd.f32 %v2818, %v2907
        %v2982 = vadd.f32 %v2819, %v2909
        %v2983 = vadd.f32 %v2820, %v2978
        %s2984 = scalar_lea.vmem %s4, 48
        %v2985 = vld [vmem:[%s2984] sm:$0xff]
        %2986 = vrot.lane.b32.xlu0 %v2019, 92
        %v2987 = vpop.permute.xlu0 %2986
        %2988 = vrot.lane.b32.xlu0 %v2020, 92
        %v2989 = vpop.permute.xlu0 %2988
        %2990 = vrot.lane.b32.xlu0 %v2021, 92
        %v2991 = vpop.permute.xlu0 %2990
        %2992 = vrot.lane.b32.xlu0 %v2022, 92
        %v2993 = vpop.permute.xlu0 %2992
        %v2994 = vsel %vm1445, %v2987, %v2989
        %v2995 = vsel %vm1445, %v2989, %v2991
        %v2996 = vsel %vm1445, %v2991, %v2993
        %v3001 = vsel %vm2043, %v2985, 0
        %3003 = vmatprep.subr.mxu0 0.0
        %3004 = vmatpush1.msra.mxu0 0.0
        %3005 = vmatprep.subr.mxu0 0.0
        %3006 = vmatpush1.msra.mxu0 0.0
        %3007 = vmatprep.subr.mxu0 0.0
        %3008 = vmatpush1.msra.mxu0 0.0
        %3009 = vmatprep.subr.mxu0 0.0
        %3010 = vmatpush1.msra.mxu0 0.0
        %3011 = vmatprep.subr.mxu0 0.0
        %3012 = vmatpush1.msra.mxu0 0.0
        %3013 = vmatprep.subr.mxu0 0.0
        %3014 = vmatpush1.msra.mxu0 0.0
        %3015 = vmatprep.subr.mxu0 0.0
        %3016 = vmatpush1.msra.mxu0 0.0
        %3017 = vmatprep.subr.mxu0 0.0
        %3018 = vmatpush1.msra.mxu0 0.0
        %3019 = vmatprep.subr.mxu0 0.0
        %3020 = vmatpush1.msra.mxu0 0.0
        %3021 = vmatprep.subr.mxu0 0.0
        %3022 = vmatpush1.msra.mxu0 0.0
        %3023 = vmatprep.subr.mxu0 0.0
        %3024 = vmatpush1.msra.mxu0 0.0
        %3025 = vmatprep.subr.mxu0 0.0
        %3026 = vmatpush1.msra.mxu0 0.0
        %3027 = vmatprep.subr.mxu0 0.0
        %3028 = vmatpush1.msra.mxu0 0.0
        %3029 = vmatprep.subr.mxu0 0.0
        %3030 = vmatpush1.msra.mxu0 0.0
        %3031 = vmatprep.subr.mxu0 0.0
        %3032 = vmatpush1.msra.mxu0 0.0
        %3033 = vmatprep.subr.mxu0 %v2995
        %3034 = vmatpush1.msra.mxu0 %v2994
        %3035 = vmatprep.subr.mxu0 0.0
        %3036 = vmatpush2.msra.mxu0 0.0
        %3037 = vmatprep.subr.mxu0 0.0
        %3038 = vmatpush2.msra.mxu0 0.0
        %3039 = vmatprep.subr.mxu0 0.0
        %3040 = vmatpush2.msra.mxu0 0.0
        %3041 = vmatprep.subr.mxu0 0.0
        %3042 = vmatpush2.msra.mxu0 0.0
        %3043 = vmatprep.subr.mxu0 0.0
        %3044 = vmatpush2.msra.mxu0 0.0
        %3045 = vmatprep.subr.mxu0 0.0
        %3046 = vmatpush2.msra.mxu0 0.0
        %3047 = vmatprep.subr.mxu0 0.0
        %3048 = vmatpush2.msra.mxu0 0.0
        %3049 = vmatprep.subr.mxu0 0.0
        %3050 = vmatpush2.msra.mxu0 0.0
        %3051 = vmatprep.subr.mxu0 0.0
        %3052 = vmatpush2.msra.mxu0 0.0
        %3053 = vmatprep.subr.mxu0 0.0
        %3054 = vmatpush2.msra.mxu0 0.0
        %3055 = vmatprep.subr.mxu0 0.0
        %3056 = vmatpush2.msra.mxu0 0.0
        %3057 = vmatprep.subr.mxu0 0.0
        %3058 = vmatpush2.msra.mxu0 0.0
        %3059 = vmatprep.subr.mxu0 0.0
        %3060 = vmatpush2.msra.mxu0 0.0
        %3061 = vmatprep.subr.mxu0 0.0
        %3062 = vmatpush2.msra.mxu0 0.0
        %3063 = vmatprep.subr.mxu0 0.0
        %3064 = vmatpush2.msra.mxu0 0.0
        %3065 = vmatprep.subr.mxu0 0.0
        %3066 = vmatpush2.msra.mxu0 0.0
        %3067 = vmatprep.mubr.f32.mxu0 0.0
        %3068 = vmatmul.mubr.f32.gmra.mxu0 %v3001
        %v3069 = vpop.f32.mrf.mxu0
        %v3070 = vadd.f32 0.0, %v3069
        %v3071 = vpop.f32.mrf.mxu0
        %v3072 = vadd.f32 0.0, %v3071
        %3073 = vdwg.mxu0
        %3074 = vmatprep.subr.mxu0 0.0
        %3075 = vmatpush1.msra.mxu0 0.0
        %3076 = vmatprep.subr.mxu0 0.0
        %3077 = vmatpush1.msra.mxu0 0.0
        %3078 = vmatprep.subr.mxu0 0.0
        %3079 = vmatpush1.msra.mxu0 0.0
        %3080 = vmatprep.subr.mxu0 0.0
        %3081 = vmatpush1.msra.mxu0 0.0
        %3082 = vmatprep.subr.mxu0 0.0
        %3083 = vmatpush1.msra.mxu0 0.0
        %3084 = vmatprep.subr.mxu0 0.0
        %3085 = vmatpush1.msra.mxu0 0.0
        %3086 = vmatprep.subr.mxu0 0.0
        %3087 = vmatpush1.msra.mxu0 0.0
        %3088 = vmatprep.subr.mxu0 0.0
        %3089 = vmatpush1.msra.mxu0 0.0
        %3090 = vmatprep.subr.mxu0 0.0
        %3091 = vmatpush1.msra.mxu0 0.0
        %3092 = vmatprep.subr.mxu0 0.0
        %3093 = vmatpush1.msra.mxu0 0.0
        %3094 = vmatprep.subr.mxu0 0.0
        %3095 = vmatpush1.msra.mxu0 0.0
        %3096 = vmatprep.subr.mxu0 0.0
        %3097 = vmatpush1.msra.mxu0 0.0
        %3098 = vmatprep.subr.mxu0 0.0
        %3099 = vmatpush1.msra.mxu0 0.0
        %3100 = vmatprep.subr.mxu0 0.0
        %3101 = vmatpush1.msra.mxu0 0.0
        %3102 = vmatprep.subr.mxu0 0.0
        %3103 = vmatpush1.msra.mxu0 0.0
        %3104 = vmatprep.subr.mxu0 0.0
        %3105 = vmatpush1.msra.mxu0 %v2996
        %3106 = vmatprep.subr.mxu0 0.0
        %3107 = vmatpush2.msra.mxu0 0.0
        %3108 = vmatprep.subr.mxu0 0.0
        %3109 = vmatpush2.msra.mxu0 0.0
        %3110 = vmatprep.subr.mxu0 0.0
        %3111 = vmatpush2.msra.mxu0 0.0
        %3112 = vmatprep.subr.mxu0 0.0
        %3113 = vmatpush2.msra.mxu0 0.0
        %3114 = vmatprep.subr.mxu0 0.0
        %3115 = vmatpush2.msra.mxu0 0.0
        %3116 = vmatprep.subr.mxu0 0.0
        %3117 = vmatpush2.msra.mxu0 0.0
        %3118 = vmatprep.subr.mxu0 0.0
        %3119 = vmatpush2.msra.mxu0 0.0
        %3120 = vmatprep.subr.mxu0 0.0
        %3121 = vmatpush2.msra.mxu0 0.0
        %3122 = vmatprep.subr.mxu0 0.0
        %3123 = vmatpush2.msra.mxu0 0.0
        %3124 = vmatprep.subr.mxu0 0.0
        %3125 = vmatpush2.msra.mxu0 0.0
        %3126 = vmatprep.subr.mxu0 0.0
        %3127 = vmatpush2.msra.mxu0 0.0
        %3128 = vmatprep.subr.mxu0 0.0
        %3129 = vmatpush2.msra.mxu0 0.0
        %3130 = vmatprep.subr.mxu0 0.0
        %3131 = vmatpush2.msra.mxu0 0.0
        %3132 = vmatprep.subr.mxu0 0.0
        %3133 = vmatpush2.msra.mxu0 0.0
        %3134 = vmatprep.subr.mxu0 0.0
        %3135 = vmatpush2.msra.mxu0 0.0
        %3136 = vmatprep.subr.mxu0 0.0
        %3137 = vmatpush2.msra.mxu0 0.0
        %3138 = vmatprep.mubr.f32.mxu0 0.0
        %3139 = vmatmul.mubr.f32.gmra.mxu0 %v3001
        %v3140 = vpop.f32.mrf.mxu0
        %v3141 = vadd.f32 0.0, %v3140
        %v3142 = vpop.f32.mrf.mxu0
        %3143 = vdwg.mxu0
        %v3144 = vadd.f32 %v2981, %v3070
        %v3145 = vadd.f32 %v2982, %v3072
        %v3146 = vadd.f32 %v2983, %v3141
        %s3147 = scalar_lea.vmem %s4, 56
        %v3148 = vld [vmem:[%s3147] sm:$0xff]
        %3149 = vrot.lane.b32.xlu0 %v2019, 91
        %v3150 = vpop.permute.xlu0 %3149
        %3151 = vrot.lane.b32.xlu0 %v2020, 91
        %v3152 = vpop.permute.xlu0 %3151
        %3153 = vrot.lane.b32.xlu0 %v2021, 91
        %v3154 = vpop.permute.xlu0 %3153
        %3155 = vrot.lane.b32.xlu0 %v2022, 91
        %v3156 = vpop.permute.xlu0 %3155
        %v3157 = vsel %vm1627, %v3150, %v3152
        %v3158 = vsel %vm1627, %v3152, %v3154
        %v3159 = vsel %vm1627, %v3154, %v3156
        %v3164 = vsel %vm2043, %v3148, 0
        %3166 = vmatprep.subr.mxu0 0.0
        %3167 = vmatpush1.msra.mxu0 0.0
        %3168 = vmatprep.subr.mxu0 0.0
        %3169 = vmatpush1.msra.mxu0 0.0
        %3170 = vmatprep.subr.mxu0 0.0
        %3171 = vmatpush1.msra.mxu0 0.0
        %3172 = vmatprep.subr.mxu0 0.0
        %3173 = vmatpush1.msra.mxu0 0.0
        %3174 = vmatprep.subr.mxu0 0.0
        %3175 = vmatpush1.msra.mxu0 0.0
        %3176 = vmatprep.subr.mxu0 0.0
        %3177 = vmatpush1.msra.mxu0 0.0
        %3178 = vmatprep.subr.mxu0 0.0
        %3179 = vmatpush1.msra.mxu0 0.0
        %3180 = vmatprep.subr.mxu0 0.0
        %3181 = vmatpush1.msra.mxu0 0.0
        %3182 = vmatprep.subr.mxu0 0.0
        %3183 = vmatpush1.msra.mxu0 0.0
        %3184 = vmatprep.subr.mxu0 0.0
        %3185 = vmatpush1.msra.mxu0 0.0
        %3186 = vmatprep.subr.mxu0 0.0
        %3187 = vmatpush1.msra.mxu0 0.0
        %3188 = vmatprep.subr.mxu0 0.0
        %3189 = vmatpush1.msra.mxu0 0.0
        %3190 = vmatprep.subr.mxu0 0.0
        %3191 = vmatpush1.msra.mxu0 0.0
        %3192 = vmatprep.subr.mxu0 0.0
        %3193 = vmatpush1.msra.mxu0 0.0
        %3194 = vmatprep.subr.mxu0 0.0
        %3195 = vmatpush1.msra.mxu0 0.0
        %3196 = vmatprep.subr.mxu0 %v3158
        %3197 = vmatpush1.msra.mxu0 %v3157
        %3198 = vmatprep.subr.mxu0 0.0
        %3199 = vmatpush2.msra.mxu0 0.0
        %3200 = vmatprep.subr.mxu0 0.0
        %3201 = vmatpush2.msra.mxu0 0.0
        %3202 = vmatprep.subr.mxu0 0.0
        %3203 = vmatpush2.msra.mxu0 0.0
        %3204 = vmatprep.subr.mxu0 0.0
        %3205 = vmatpush2.msra.mxu0 0.0
        %3206 = vmatprep.subr.mxu0 0.0
        %3207 = vmatpush2.msra.mxu0 0.0
        %3208 = vmatprep.subr.mxu0 0.0
        %3209 = vmatpush2.msra.mxu0 0.0
        %3210 = vmatprep.subr.mxu0 0.0
        %3211 = vmatpush2.msra.mxu0 0.0
        %3212 = vmatprep.subr.mxu0 0.0
        %3213 = vmatpush2.msra.mxu0 0.0
        %3214 = vmatprep.subr.mxu0 0.0
        %3215 = vmatpush2.msra.mxu0 0.0
        %3216 = vmatprep.subr.mxu0 0.0
        %3217 = vmatpush2.msra.mxu0 0.0
        %3218 = vmatprep.subr.mxu0 0.0
        %3219 = vmatpush2.msra.mxu0 0.0
        %3220 = vmatprep.subr.mxu0 0.0
        %3221 = vmatpush2.msra.mxu0 0.0
        %3222 = vmatprep.subr.mxu0 0.0
        %3223 = vmatpush2.msra.mxu0 0.0
        %3224 = vmatprep.subr.mxu0 0.0
        %3225 = vmatpush2.msra.mxu0 0.0
        %3226 = vmatprep.subr.mxu0 0.0
        %3227 = vmatpush2.msra.mxu0 0.0
        %3228 = vmatprep.subr.mxu0 0.0
        %3229 = vmatpush2.msra.mxu0 0.0
        %3230 = vmatprep.mubr.f32.mxu0 0.0
        %3231 = vmatmul.mubr.f32.gmra.mxu0 %v3164
        %v3232 = vpop.f32.mrf.mxu0
        %v3233 = vadd.f32 0.0, %v3232
        %v3234 = vpop.f32.mrf.mxu0
        %v3235 = vadd.f32 0.0, %v3234
        %3236 = vdwg.mxu0
        %3237 = vmatprep.subr.mxu0 0.0
        %3238 = vmatpush1.msra.mxu0 0.0
        %3239 = vmatprep.subr.mxu0 0.0
        %3240 = vmatpush1.msra.mxu0 0.0
        %3241 = vmatprep.subr.mxu0 0.0
        %3242 = vmatpush1.msra.mxu0 0.0
        %3243 = vmatprep.subr.mxu0 0.0
        %3244 = vmatpush1.msra.mxu0 0.0
        %3245 = vmatprep.subr.mxu0 0.0
        %3246 = vmatpush1.msra.mxu0 0.0
        %3247 = vmatprep.subr.mxu0 0.0
        %3248 = vmatpush1.msra.mxu0 0.0
        %3249 = vmatprep.subr.mxu0 0.0
        %3250 = vmatpush1.msra.mxu0 0.0
        %3251 = vmatprep.subr.mxu0 0.0
        %3252 = vmatpush1.msra.mxu0 0.0
        %3253 = vmatprep.subr.mxu0 0.0
        %3254 = vmatpush1.msra.mxu0 0.0
        %3255 = vmatprep.subr.mxu0 0.0
        %3256 = vmatpush1.msra.mxu0 0.0
        %3257 = vmatprep.subr.mxu0 0.0
        %3258 = vmatpush1.msra.mxu0 0.0
        %3259 = vmatprep.subr.mxu0 0.0
        %3260 = vmatpush1.msra.mxu0 0.0
        %3261 = vmatprep.subr.mxu0 0.0
        %3262 = vmatpush1.msra.mxu0 0.0
        %3263 = vmatprep.subr.mxu0 0.0
        %3264 = vmatpush1.msra.mxu0 0.0
        %3265 = vmatprep.subr.mxu0 0.0
        %3266 = vmatpush1.msra.mxu0 0.0
        %3267 = vmatprep.subr.mxu0 0.0
        %3268 = vmatpush1.msra.mxu0 %v3159
        %3269 = vmatprep.subr.mxu0 0.0
        %3270 = vmatpush2.msra.mxu0 0.0
        %3271 = vmatprep.subr.mxu0 0.0
        %3272 = vmatpush2.msra.mxu0 0.0
        %3273 = vmatprep.subr.mxu0 0.0
        %3274 = vmatpush2.msra.mxu0 0.0
        %3275 = vmatprep.subr.mxu0 0.0
        %3276 = vmatpush2.msra.mxu0 0.0
        %3277 = vmatprep.subr.mxu0 0.0
        %3278 = vmatpush2.msra.mxu0 0.0
        %3279 = vmatprep.subr.mxu0 0.0
        %3280 = vmatpush2.msra.mxu0 0.0
        %3281 = vmatprep.subr.mxu0 0.0
        %3282 = vmatpush2.msra.mxu0 0.0
        %3283 = vmatprep.subr.mxu0 0.0
        %3284 = vmatpush2.msra.mxu0 0.0
        %3285 = vmatprep.subr.mxu0 0.0
        %3286 = vmatpush2.msra.mxu0 0.0
        %3287 = vmatprep.subr.mxu0 0.0
        %3288 = vmatpush2.msra.mxu0 0.0
        %3289 = vmatprep.subr.mxu0 0.0
        %3290 = vmatpush2.msra.mxu0 0.0
        %3291 = vmatprep.subr.mxu0 0.0
        %3292 = vmatpush2.msra.mxu0 0.0
        %3293 = vmatprep.subr.mxu0 0.0
        %3294 = vmatpush2.msra.mxu0 0.0
        %3295 = vmatprep.subr.mxu0 0.0
        %3296 = vmatpush2.msra.mxu0 0.0
        %3297 = vmatprep.subr.mxu0 0.0
        %3298 = vmatpush2.msra.mxu0 0.0
        %3299 = vmatprep.subr.mxu0 0.0
        %3300 = vmatpush2.msra.mxu0 0.0
        %3301 = vmatprep.mubr.f32.mxu0 0.0
        %3302 = vmatmul.mubr.f32.gmra.mxu0 %v3164
        %v3303 = vpop.f32.mrf.mxu0
        %v3304 = vadd.f32 0.0, %v3303
        %v3305 = vpop.f32.mrf.mxu0
        %3306 = vdwg.mxu0
        %v3307 = vadd.f32 %v3144, %v3233
        %v3308 = vadd.f32 %v3145, %v3235
        %v3309 = vadd.f32 %v3146, %v3304
        %s3310 = scalar_lea.vmem %s4, 64
        %v3311 = vld [vmem:[%s3310] sm:$0xff]
        %3312 = vrot.lane.b32.xlu0 %v2019, 90
        %v3313 = vpop.permute.xlu0 %3312
        %3314 = vrot.lane.b32.xlu0 %v2020, 90
        %v3315 = vpop.permute.xlu0 %3314
        %3316 = vrot.lane.b32.xlu0 %v2021, 90
        %v3317 = vpop.permute.xlu0 %3316
        %3318 = vrot.lane.b32.xlu0 %v2022, 90
        %v3319 = vpop.permute.xlu0 %3318
        %v3320 = vsel %vm1809, %v3313, %v3315
        %v3321 = vsel %vm1809, %v3315, %v3317
        %v3322 = vsel %vm1809, %v3317, %v3319
        %v3327 = vsel %vm2043, %v3311, 0
        %3329 = vmatprep.subr.mxu0 0.0
        %3330 = vmatpush1.msra.mxu0 0.0
        %3331 = vmatprep.subr.mxu0 0.0
        %3332 = vmatpush1.msra.mxu0 0.0
        %3333 = vmatprep.subr.mxu0 0.0
        %3334 = vmatpush1.msra.mxu0 0.0
        %3335 = vmatprep.subr.mxu0 0.0
        %3336 = vmatpush1.msra.mxu0 0.0
        %3337 = vmatprep.subr.mxu0 0.0
        %3338 = vmatpush1.msra.mxu0 0.0
        %3339 = vmatprep.subr.mxu0 0.0
        %3340 = vmatpush1.msra.mxu0 0.0
        %3341 = vmatprep.subr.mxu0 0.0
        %3342 = vmatpush1.msra.mxu0 0.0
        %3343 = vmatprep.subr.mxu0 0.0
        %3344 = vmatpush1.msra.mxu0 0.0
        %3345 = vmatprep.subr.mxu0 0.0
        %3346 = vmatpush1.msra.mxu0 0.0
        %3347 = vmatprep.subr.mxu0 0.0
        %3348 = vmatpush1.msra.mxu0 0.0
        %3349 = vmatprep.subr.mxu0 0.0
        %3350 = vmatpush1.msra.mxu0 0.0
        %3351 = vmatprep.subr.mxu0 0.0
        %3352 = vmatpush1.msra.mxu0 0.0
        %3353 = vmatprep.subr.mxu0 0.0
        %3354 = vmatpush1.msra.mxu0 0.0
        %3355 = vmatprep.subr.mxu0 0.0
        %3356 = vmatpush1.msra.mxu0 0.0
        %3357 = vmatprep.subr.mxu0 0.0
        %3358 = vmatpush1.msra.mxu0 0.0
        %3359 = vmatprep.subr.mxu0 %v3321
        %3360 = vmatpush1.msra.mxu0 %v3320
        %3361 = vmatprep.subr.mxu0 0.0
        %3362 = vmatpush2.msra.mxu0 0.0
        %3363 = vmatprep.subr.mxu0 0.0
        %3364 = vmatpush2.msra.mxu0 0.0
        %3365 = vmatprep.subr.mxu0 0.0
        %3366 = vmatpush2.msra.mxu0 0.0
        %3367 = vmatprep.subr.mxu0 0.0
        %3368 = vmatpush2.msra.mxu0 0.0
        %3369 = vmatprep.subr.mxu0 0.0
        %3370 = vmatpush2.msra.mxu0 0.0
        %3371 = vmatprep.subr.mxu0 0.0
        %3372 = vmatpush2.msra.mxu0 0.0
        %3373 = vmatprep.subr.mxu0 0.0
        %3374 = vmatpush2.msra.mxu0 0.0
        %3375 = vmatprep.subr.mxu0 0.0
        %3376 = vmatpush2.msra.mxu0 0.0
        %3377 = vmatprep.subr.mxu0 0.0
        %3378 = vmatpush2.msra.mxu0 0.0
        %3379 = vmatprep.subr.mxu0 0.0
        %3380 = vmatpush2.msra.mxu0 0.0
        %3381 = vmatprep.subr.mxu0 0.0
        %3382 = vmatpush2.msra.mxu0 0.0
        %3383 = vmatprep.subr.mxu0 0.0
        %3384 = vmatpush2.msra.mxu0 0.0
        %3385 = vmatprep.subr.mxu0 0.0
        %3386 = vmatpush2.msra.mxu0 0.0
        %3387 = vmatprep.subr.mxu0 0.0
        %3388 = vmatpush2.msra.mxu0 0.0
        %3389 = vmatprep.subr.mxu0 0.0
        %3390 = vmatpush2.msra.mxu0 0.0
        %3391 = vmatprep.subr.mxu0 0.0
        %3392 = vmatpush2.msra.mxu0 0.0
        %3393 = vmatprep.mubr.f32.mxu0 0.0
        %3394 = vmatmul.mubr.f32.gmra.mxu0 %v3327
        %v3395 = vpop.f32.mrf.mxu0
        %v3396 = vadd.f32 0.0, %v3395
        %v3397 = vpop.f32.mrf.mxu0
        %v3398 = vadd.f32 0.0, %v3397
        %3399 = vdwg.mxu0
        %3400 = vmatprep.subr.mxu0 0.0
        %3401 = vmatpush1.msra.mxu0 0.0
        %3402 = vmatprep.subr.mxu0 0.0
        %3403 = vmatpush1.msra.mxu0 0.0
        %3404 = vmatprep.subr.mxu0 0.0
        %3405 = vmatpush1.msra.mxu0 0.0
        %3406 = vmatprep.subr.mxu0 0.0
        %3407 = vmatpush1.msra.mxu0 0.0
        %3408 = vmatprep.subr.mxu0 0.0
        %3409 = vmatpush1.msra.mxu0 0.0
        %3410 = vmatprep.subr.mxu0 0.0
        %3411 = vmatpush1.msra.mxu0 0.0
        %3412 = vmatprep.subr.mxu0 0.0
        %3413 = vmatpush1.msra.mxu0 0.0
        %3414 = vmatprep.subr.mxu0 0.0
        %3415 = vmatpush1.msra.mxu0 0.0
        %3416 = vmatprep.subr.mxu0 0.0
        %3417 = vmatpush1.msra.mxu0 0.0
        %3418 = vmatprep.subr.mxu0 0.0
        %3419 = vmatpush1.msra.mxu0 0.0
        %3420 = vmatprep.subr.mxu0 0.0
        %3421 = vmatpush1.msra.mxu0 0.0
        %3422 = vmatprep.subr.mxu0 0.0
        %3423 = vmatpush1.msra.mxu0 0.0
        %3424 = vmatprep.subr.mxu0 0.0
        %3425 = vmatpush1.msra.mxu0 0.0
        %3426 = vmatprep.subr.mxu0 0.0
        %3427 = vmatpush1.msra.mxu0 0.0
        %3428 = vmatprep.subr.mxu0 0.0
        %3429 = vmatpush1.msra.mxu0 0.0
        %3430 = vmatprep.subr.mxu0 0.0
        %3431 = vmatpush1.msra.mxu0 %v3322
        %3432 = vmatprep.subr.mxu0 0.0
        %3433 = vmatpush2.msra.mxu0 0.0
        %3434 = vmatprep.subr.mxu0 0.0
        %3435 = vmatpush2.msra.mxu0 0.0
        %3436 = vmatprep.subr.mxu0 0.0
        %3437 = vmatpush2.msra.mxu0 0.0
        %3438 = vmatprep.subr.mxu0 0.0
        %3439 = vmatpush2.msra.mxu0 0.0
        %3440 = vmatprep.subr.mxu0 0.0
        %3441 = vmatpush2.msra.mxu0 0.0
        %3442 = vmatprep.subr.mxu0 0.0
        %3443 = vmatpush2.msra.mxu0 0.0
        %3444 = vmatprep.subr.mxu0 0.0
        %3445 = vmatpush2.msra.mxu0 0.0
        %3446 = vmatprep.subr.mxu0 0.0
        %3447 = vmatpush2.msra.mxu0 0.0
        %3448 = vmatprep.subr.mxu0 0.0
        %3449 = vmatpush2.msra.mxu0 0.0
        %3450 = vmatprep.subr.mxu0 0.0
        %3451 = vmatpush2.msra.mxu0 0.0
        %3452 = vmatprep.subr.mxu0 0.0
        %3453 = vmatpush2.msra.mxu0 0.0
        %3454 = vmatprep.subr.mxu0 0.0
        %3455 = vmatpush2.msra.mxu0 0.0
        %3456 = vmatprep.subr.mxu0 0.0
        %3457 = vmatpush2.msra.mxu0 0.0
        %3458 = vmatprep.subr.mxu0 0.0
        %3459 = vmatpush2.msra.mxu0 0.0
        %3460 = vmatprep.subr.mxu0 0.0
        %3461 = vmatpush2.msra.mxu0 0.0
        %3462 = vmatprep.subr.mxu0 0.0
        %3463 = vmatpush2.msra.mxu0 0.0
        %3464 = vmatprep.mubr.f32.mxu0 0.0
        %3465 = vmatmul.mubr.f32.gmra.mxu0 %v3327
        %v3466 = vpop.f32.mrf.mxu0
        %v3467 = vadd.f32 0.0, %v3466
        %v3468 = vpop.f32.mrf.mxu0
        %3469 = vdwg.mxu0
        %v3470 = vadd.f32 %v3307, %v3396
        %v3471 = vadd.f32 %v3308, %v3398
        %v3472 = vadd.f32 %v3309, %v3467
        %v3473 = vld [vmem:[%s5] sm:$0xff]
        %3475 = vset.pattern.permute.xlu0 0
        %3476 = vperm.xlu0 %3475, %v3473
        %v3477 = vpop.permute.xlu0 %3476
        %v3479 = vadd.f32 %v3470, %v3477
        %v3480 = vadd.f32 %v3471, %v3477
        %v3481 = vadd.f32 %v3472, %v3477
        %v3482 = vmax.f32 %v3479, 0.0
        %v3483 = vmax.f32 %v3480, 0.0
        %v3484 = vmax.f32 %v3481, 0.0
        %v3485 = vld [vmem:[%s6] sm:$0xff]
        %v3486 = vld [vmem:[%s6 + $0x8] sm:$0xff]
        %v3487 = vld [vmem:[%s6 + $0x10] sm:$0xff]
        %v3488 = vld [vmem:[%s6 + $0x18] sm:$0xff]
        %v3489 = vld [vmem:[%s6 + $0x20] sm:$0xff]
        %v3490 = vld [vmem:[%s6 + $0x28] sm:$0xff]
        %v3491 = vld [vmem:[%s6 + $0x30] sm:$0xff]
        %v3492 = vld [vmem:[%s6 + $0x38] sm:$0xff]
        %v3493 = vld [vmem:[%s6 + $0x40] sm:$0xff]
        %v3494 = vld [vmem:[%s6 + $0x48] sm:$0xff]
        %v3495 = vld [vmem:[%s6 + $0x50] sm:$0xff]
        %v3496 = vld [vmem:[%s6 + $0x58] sm:$0xff]
        %v3497 = vld [vmem:[%s6 + $0x60] sm:$0xff]
        %v3498 = vld [vmem:[%s6 + $0x68] sm:$0xff]
        %v3499 = vld [vmem:[%s6 + $0x70] sm:$0xff]
        %v3500 = vld [vmem:[%s6 + $0x78] sm:$0xff]
        %v3501 = vld [vmem:[%s6 + $0x80] sm:$0xff]
        %v3502 = vld [vmem:[%s6 + $0x88] sm:$0xff]
        %v3503 = vld [vmem:[%s6 + $0x90] sm:$0xff]
        %v3504 = vld [vmem:[%s6 + $0x98] sm:$0xff]
        %v3505 = vld [vmem:[%s6 + $0xa0] sm:$0xff]
        %v3506 = vld [vmem:[%s6 + $0xa8] sm:$0xff]
        %v3507 = vld [vmem:[%s6 + $0xb0] sm:$0xff]
        %v3508 = vld [vmem:[%s6 + $0xb8] sm:$0xff]
        %v3509 = vld [vmem:[%s6 + $0xc0] sm:$0xff]
        %v3510 = vld [vmem:[%s6 + $0xc8] sm:$0xff]
        %v3511 = vld [vmem:[%s6 + $0xd0] sm:$0xff]
        %v3512 = vld [vmem:[%s6 + $0xd8] sm:$0xff]
        %v3513 = vld [vmem:[%s6 + $0xe0] sm:$0xff]
        %v3514 = vld [vmem:[%s6 + $0xe8] sm:$0xff]
        %v3515 = vld [vmem:[%s6 + $0xf0] sm:$0xff]
        %v3516 = vld [vmem:[%s6 + $0xf8] sm:$0xff]
        %v3517 = vld [vmem:[%s6 + $0x100] sm:$0xff]
        %v3518 = vld [vmem:[%s6 + $0x108] sm:$0xff]
        %v3519 = vld [vmem:[%s6 + $0x110] sm:$0xff]
        %v3520 = vld [vmem:[%s6 + $0x118] sm:$0xff]
        %v3521 = vld [vmem:[%s6 + $0x120] sm:$0xff]
        %v3522 = vld [vmem:[%s6 + $0x128] sm:$0xff]
        %v3523 = vld [vmem:[%s6 + $0x130] sm:$0xff]
        %v3524 = vld [vmem:[%s6 + $0x138] sm:$0xff]
        %v3525 = vld [vmem:[%s6 + $0x140] sm:$0xff]
        %v3526 = vld [vmem:[%s6 + $0x148] sm:$0xff]
        %v3527 = vld [vmem:[%s6 + $0x150] sm:$0xff]
        %v3528 = vld [vmem:[%s6 + $0x158] sm:$0xff]
        %v3529 = vld [vmem:[%s6 + $0x160] sm:$0xff]
        %v3530 = vld [vmem:[%s6 + $0x168] sm:$0xff]
        %v3531 = vld [vmem:[%s6 + $0x170] sm:$0xff]
        %v3532 = vld [vmem:[%s6 + $0x178] sm:$0xff]
        %s3533 = scalar_lea.vmem %s6, 384
        %v3534 = vld [vmem:[%s3533] sm:$0xff]
        %v3535 = vld [vmem:[%s3533 + $0x8] sm:$0xff]
        %v3536 = vld [vmem:[%s3533 + $0x10] sm:$0xff]
        %v3537 = vld [vmem:[%s3533 + $0x18] sm:$0xff]
        %v3538 = vld [vmem:[%s3533 + $0x20] sm:$0xff]
        %v3539 = vld [vmem:[%s3533 + $0x28] sm:$0xff]
        %v3540 = vld [vmem:[%s3533 + $0x30] sm:$0xff]
        %v3541 = vld [vmem:[%s3533 + $0x38] sm:$0xff]
        %v3542 = vld [vmem:[%s3533 + $0x40] sm:$0xff]
        %v3543 = vld [vmem:[%s3533 + $0x48] sm:$0xff]
        %v3544 = vld [vmem:[%s3533 + $0x50] sm:$0xff]
        %v3545 = vld [vmem:[%s3533 + $0x58] sm:$0xff]
        %v3546 = vld [vmem:[%s3533 + $0x60] sm:$0xff]
        %v3547 = vld [vmem:[%s3533 + $0x68] sm:$0xff]
        %v3548 = vld [vmem:[%s3533 + $0x70] sm:$0xff]
        %v3549 = vld [vmem:[%s3533 + $0x78] sm:$0xff]
        %v3550 = vld [vmem:[%s3533 + $0x80] sm:$0xff]
        %v3551 = vld [vmem:[%s3533 + $0x88] sm:$0xff]
        %v3552 = vld [vmem:[%s3533 + $0x90] sm:$0xff]
        %v3553 = vld [vmem:[%s3533 + $0x98] sm:$0xff]
        %v3554 = vld [vmem:[%s3533 + $0xa0] sm:$0xff]
        %v3555 = vld [vmem:[%s3533 + $0xa8] sm:$0xff]
        %v3556 = vld [vmem:[%s3533 + $0xb0] sm:$0xff]
        %v3557 = vld [vmem:[%s3533 + $0xb8] sm:$0xff]
        %v3558 = vld [vmem:[%s3533 + $0xc0] sm:$0xff]
        %v3559 = vld [vmem:[%s3533 + $0xc8] sm:$0xff]
        %v3560 = vld [vmem:[%s3533 + $0xd0] sm:$0xff]
        %v3561 = vld [vmem:[%s3533 + $0xd8] sm:$0xff]
        %v3562 = vld [vmem:[%s3533 + $0xe0] sm:$0xff]
        %v3563 = vld [vmem:[%s3533 + $0xe8] sm:$0xff]
        %v3564 = vld [vmem:[%s3533 + $0xf0] sm:$0xff]
        %v3565 = vld [vmem:[%s3533 + $0xf8] sm:$0xff]
        %v3566 = vld [vmem:[%s3533 + $0x100] sm:$0xff]
        %v3567 = vld [vmem:[%s3533 + $0x108] sm:$0xff]
        %v3568 = vld [vmem:[%s3533 + $0x110] sm:$0xff]
        %v3569 = vld [vmem:[%s3533 + $0x118] sm:$0xff]
        %v3570 = vld [vmem:[%s3533 + $0x120] sm:$0xff]
        %v3571 = vld [vmem:[%s3533 + $0x128] sm:$0xff]
        %v3572 = vld [vmem:[%s3533 + $0x130] sm:$0xff]
        %v3573 = vld [vmem:[%s3533 + $0x138] sm:$0xff]
        %v3574 = vld [vmem:[%s3533 + $0x140] sm:$0xff]
        %v3575 = vld [vmem:[%s3533 + $0x148] sm:$0xff]
        %v3576 = vld [vmem:[%s3533 + $0x150] sm:$0xff]
        %v3577 = vld [vmem:[%s3533 + $0x158] sm:$0xff]
        %v3578 = vld [vmem:[%s3533 + $0x160] sm:$0xff]
        %v3579 = vld [vmem:[%s3533 + $0x168] sm:$0xff]
        %v3580 = vld [vmem:[%s3533 + $0x170] sm:$0xff]
        %v3581 = vld [vmem:[%s3533 + $0x178] sm:$0xff]
        %v3585 = vrot.slane %v3482, 1
        %v3586 = vrot.slane %v3483, 1
        %v3587 = vrot.slane %v3484, 1
        %3591 = vmatprep.subr.mxu0 0.0
        %3592 = vmatpush1.msra.mxu0 %v3549
        %3593 = vmatprep.subr.mxu0 0.0
        %3594 = vmatpush1.msra.mxu0 %v3548
        %3595 = vmatprep.subr.mxu0 0.0
        %3596 = vmatpush1.msra.mxu0 %v3547
        %3597 = vmatprep.subr.mxu0 0.0
        %3598 = vmatpush1.msra.mxu0 %v3546
        %3599 = vmatprep.subr.mxu0 0.0
        %3600 = vmatpush1.msra.mxu0 %v3545
        %3601 = vmatprep.subr.mxu0 0.0
        %3602 = vmatpush1.msra.mxu0 %v3544
        %3603 = vmatprep.subr.mxu0 0.0
        %3604 = vmatpush1.msra.mxu0 %v3543
        %3605 = vmatprep.subr.mxu0 0.0
        %3606 = vmatpush1.msra.mxu0 %v3542
        %3607 = vmatprep.subr.mxu0 0.0
        %3608 = vmatpush1.msra.mxu0 %v3541
        %3609 = vmatprep.subr.mxu0 0.0
        %3610 = vmatpush1.msra.mxu0 %v3540
        %3611 = vmatprep.subr.mxu0 0.0
        %3612 = vmatpush1.msra.mxu0 %v3539
        %3613 = vmatprep.subr.mxu0 0.0
        %3614 = vmatpush1.msra.mxu0 %v3538
        %3615 = vmatprep.subr.mxu0 0.0
        %3616 = vmatpush1.msra.mxu0 %v3537
        %3617 = vmatprep.subr.mxu0 0.0
        %3618 = vmatpush1.msra.mxu0 %v3536
        %3619 = vmatprep.subr.mxu0 0.0
        %3620 = vmatpush1.msra.mxu0 %v3535
        %3621 = vmatprep.subr.mxu0 0.0
        %3622 = vmatpush1.msra.mxu0 %v3534
        %3623 = vmatprep.subr.mxu0 0.0
        %3624 = vmatpush2.msra.mxu0 %v3565
        %3625 = vmatprep.subr.mxu0 0.0
        %3626 = vmatpush2.msra.mxu0 %v3564
        %3627 = vmatprep.subr.mxu0 0.0
        %3628 = vmatpush2.msra.mxu0 %v3563
        %3629 = vmatprep.subr.mxu0 0.0
        %3630 = vmatpush2.msra.mxu0 %v3562
        %3631 = vmatprep.subr.mxu0 0.0
        %3632 = vmatpush2.msra.mxu0 %v3561
        %3633 = vmatprep.subr.mxu0 0.0
        %3634 = vmatpush2.msra.mxu0 %v3560
        %3635 = vmatprep.subr.mxu0 0.0
        %3636 = vmatpush2.msra.mxu0 %v3559
        %3637 = vmatprep.subr.mxu0 0.0
        %3638 = vmatpush2.msra.mxu0 %v3558
        %3639 = vmatprep.subr.mxu0 0.0
        %3640 = vmatpush2.msra.mxu0 %v3557
        %3641 = vmatprep.subr.mxu0 0.0
        %3642 = vmatpush2.msra.mxu0 %v3556
        %3643 = vmatprep.subr.mxu0 0.0
        %3644 = vmatpush2.msra.mxu0 %v3555
        %3645 = vmatprep.subr.mxu0 0.0
        %3646 = vmatpush2.msra.mxu0 %v3554
        %3647 = vmatprep.subr.mxu0 0.0
        %3648 = vmatpush2.msra.mxu0 %v3553
        %3649 = vmatprep.subr.mxu0 0.0
        %3650 = vmatpush2.msra.mxu0 %v3552
        %3651 = vmatprep.subr.mxu0 0.0
        %3652 = vmatpush2.msra.mxu0 %v3551
        %3653 = vmatprep.subr.mxu0 0.0
        %3654 = vmatpush2.msra.mxu0 %v3550
        %3655 = vmatprep.mubr.f32.mxu0 %v3586
        %3656 = vmatmul.mubr.f32.gmra.mxu0 %v3585
        %v3657 = vpop.f32.mrf.mxu0
        %v3658 = vadd.f32 0.0, %v3657
        %v3659 = vpop.f32.mrf.mxu0
        %3660 = vdwg.mxu0
        %3661 = vmatprep.subr.mxu0 0.0
        %3662 = vmatpush1.msra.mxu0 %v3581
        %3663 = vmatprep.subr.mxu0 0.0
        %3664 = vmatpush1.msra.mxu0 %v3580
        %3665 = vmatprep.subr.mxu0 0.0
        %3666 = vmatpush1.msra.mxu0 %v3579
        %3667 = vmatprep.subr.mxu0 0.0
        %3668 = vmatpush1.msra.mxu0 %v3578
        %3669 = vmatprep.subr.mxu0 0.0
        %3670 = vmatpush1.msra.mxu0 %v3577
        %3671 = vmatprep.subr.mxu0 0.0
        %3672 = vmatpush1.msra.mxu0 %v3576
        %3673 = vmatprep.subr.mxu0 0.0
        %3674 = vmatpush1.msra.mxu0 %v3575
        %3675 = vmatprep.subr.mxu0 0.0
        %3676 = vmatpush1.msra.mxu0 %v3574
        %3677 = vmatprep.subr.mxu0 0.0
        %3678 = vmatpush1.msra.mxu0 %v3573
        %3679 = vmatprep.subr.mxu0 0.0
        %3680 = vmatpush1.msra.mxu0 %v3572
        %3681 = vmatprep.subr.mxu0 0.0
        %3682 = vmatpush1.msra.mxu0 %v3571
        %3683 = vmatprep.subr.mxu0 0.0
        %3684 = vmatpush1.msra.mxu0 %v3570
        %3685 = vmatprep.subr.mxu0 0.0
        %3686 = vmatpush1.msra.mxu0 %v3569
        %3687 = vmatprep.subr.mxu0 0.0
        %3688 = vmatpush1.msra.mxu0 %v3568
        %3689 = vmatprep.subr.mxu0 0.0
        %3690 = vmatpush1.msra.mxu0 %v3567
        %3691 = vmatprep.subr.mxu0 0.0
        %3692 = vmatpush1.msra.mxu0 %v3566
        %3693 = vmatprep.subr.mxu0 0.0
        %3694 = vmatpush2.msra.mxu0 0.0
        %3695 = vmatprep.subr.mxu0 0.0
        %3696 = vmatpush2.msra.mxu0 0.0
        %3697 = vmatprep.subr.mxu0 0.0
        %3698 = vmatpush2.msra.mxu0 0.0
        %3699 = vmatprep.subr.mxu0 0.0
        %3700 = vmatpush2.msra.mxu0 0.0
        %3701 = vmatprep.subr.mxu0 0.0
        %3702 = vmatpush2.msra.mxu0 0.0
        %3703 = vmatprep.subr.mxu0 0.0
        %3704 = vmatpush2.msra.mxu0 0.0
        %3705 = vmatprep.subr.mxu0 0.0
        %3706 = vmatpush2.msra.mxu0 0.0
        %3707 = vmatprep.subr.mxu0 0.0
        %3708 = vmatpush2.msra.mxu0 0.0
        %3709 = vmatprep.subr.mxu0 0.0
        %3710 = vmatpush2.msra.mxu0 0.0
        %3711 = vmatprep.subr.mxu0 0.0
        %3712 = vmatpush2.msra.mxu0 0.0
        %3713 = vmatprep.subr.mxu0 0.0
        %3714 = vmatpush2.msra.mxu0 0.0
        %3715 = vmatprep.subr.mxu0 0.0
        %3716 = vmatpush2.msra.mxu0 0.0
        %3717 = vmatprep.subr.mxu0 0.0
        %3718 = vmatpush2.msra.mxu0 0.0
        %3719 = vmatprep.subr.mxu0 0.0
        %3720 = vmatpush2.msra.mxu0 0.0
        %3721 = vmatprep.subr.mxu0 0.0
        %3722 = vmatpush2.msra.mxu0 0.0
        %3723 = vmatprep.subr.mxu0 0.0
        %3724 = vmatpush2.msra.mxu0 0.0
        %3725 = vmatprep.mubr.f32.mxu0 0.0
        %3726 = vmatmul.mubr.f32.gmra.mxu0 %v3587
        %v3727 = vpop.f32.mrf.mxu0
        %v3728 = vadd.f32 %v3658, %v3727
        %v3729 = vpop.f32.mrf.mxu0
        %3730 = vdwg.mxu0
        %3731 = vmatprep.subr.mxu0 0.0
        %3732 = vmatpush1.msra.mxu0 %v3500
        %3733 = vmatprep.subr.mxu0 0.0
        %3734 = vmatpush1.msra.mxu0 %v3499
        %3735 = vmatprep.subr.mxu0 0.0
        %3736 = vmatpush1.msra.mxu0 %v3498
        %3737 = vmatprep.subr.mxu0 0.0
        %3738 = vmatpush1.msra.mxu0 %v3497
        %3739 = vmatprep.subr.mxu0 0.0
        %3740 = vmatpush1.msra.mxu0 %v3496
        %3741 = vmatprep.subr.mxu0 0.0
        %3742 = vmatpush1.msra.mxu0 %v3495
        %3743 = vmatprep.subr.mxu0 0.0
        %3744 = vmatpush1.msra.mxu0 %v3494
        %3745 = vmatprep.subr.mxu0 0.0
        %3746 = vmatpush1.msra.mxu0 %v3493
        %3747 = vmatprep.subr.mxu0 0.0
        %3748 = vmatpush1.msra.mxu0 %v3492
        %3749 = vmatprep.subr.mxu0 0.0
        %3750 = vmatpush1.msra.mxu0 %v3491
        %3751 = vmatprep.subr.mxu0 0.0
        %3752 = vmatpush1.msra.mxu0 %v3490
        %3753 = vmatprep.subr.mxu0 0.0
        %3754 = vmatpush1.msra.mxu0 %v3489
        %3755 = vmatprep.subr.mxu0 0.0
        %3756 = vmatpush1.msra.mxu0 %v3488
        %3757 = vmatprep.subr.mxu0 0.0
        %3758 = vmatpush1.msra.mxu0 %v3487
        %3759 = vmatprep.subr.mxu0 0.0
        %3760 = vmatpush1.msra.mxu0 %v3486
        %3761 = vmatprep.subr.mxu0 0.0
        %3762 = vmatpush1.msra.mxu0 %v3485
        %3763 = vmatprep.subr.mxu0 0.0
        %3764 = vmatpush2.msra.mxu0 %v3516
        %3765 = vmatprep.subr.mxu0 0.0
        %3766 = vmatpush2.msra.mxu0 %v3515
        %3767 = vmatprep.subr.mxu0 0.0
        %3768 = vmatpush2.msra.mxu0 %v3514
        %3769 = vmatprep.subr.mxu0 0.0
        %3770 = vmatpush2.msra.mxu0 %v3513
        %3771 = vmatprep.subr.mxu0 0.0
        %3772 = vmatpush2.msra.mxu0 %v3512
        %3773 = vmatprep.subr.mxu0 0.0
        %3774 = vmatpush2.msra.mxu0 %v3511
        %3775 = vmatprep.subr.mxu0 0.0
        %3776 = vmatpush2.msra.mxu0 %v3510
        %3777 = vmatprep.subr.mxu0 0.0
        %3778 = vmatpush2.msra.mxu0 %v3509
        %3779 = vmatprep.subr.mxu0 0.0
        %3780 = vmatpush2.msra.mxu0 %v3508
        %3781 = vmatprep.subr.mxu0 0.0
        %3782 = vmatpush2.msra.mxu0 %v3507
        %3783 = vmatprep.subr.mxu0 0.0
        %3784 = vmatpush2.msra.mxu0 %v3506
        %3785 = vmatprep.subr.mxu0 0.0
        %3786 = vmatpush2.msra.mxu0 %v3505
        %3787 = vmatprep.subr.mxu0 0.0
        %3788 = vmatpush2.msra.mxu0 %v3504
        %3789 = vmatprep.subr.mxu0 0.0
        %3790 = vmatpush2.msra.mxu0 %v3503
        %3791 = vmatprep.subr.mxu0 0.0
        %3792 = vmatpush2.msra.mxu0 %v3502
        %3793 = vmatprep.subr.mxu0 0.0
        %3794 = vmatpush2.msra.mxu0 %v3501
        %3795 = vmatprep.mubr.f32.mxu0 %v3483
        %3796 = vmatmul.mubr.f32.gmra.mxu0 %v3482
        %v3797 = vpop.f32.mrf.mxu0
        %v3798 = vadd.f32 %v3728, %v3797
        %v3799 = vpop.f32.mrf.mxu0
        %3800 = vdwg.mxu0
        %3801 = vmatprep.subr.mxu0 0.0
        %3802 = vmatpush1.msra.mxu0 %v3532
        %3803 = vmatprep.subr.mxu0 0.0
        %3804 = vmatpush1.msra.mxu0 %v3531
        %3805 = vmatprep.subr.mxu0 0.0
        %3806 = vmatpush1.msra.mxu0 %v3530
        %3807 = vmatprep.subr.mxu0 0.0
        %3808 = vmatpush1.msra.mxu0 %v3529
        %3809 = vmatprep.subr.mxu0 0.0
        %3810 = vmatpush1.msra.mxu0 %v3528
        %3811 = vmatprep.subr.mxu0 0.0
        %3812 = vmatpush1.msra.mxu0 %v3527
        %3813 = vmatprep.subr.mxu0 0.0
        %3814 = vmatpush1.msra.mxu0 %v3526
        %3815 = vmatprep.subr.mxu0 0.0
        %3816 = vmatpush1.msra.mxu0 %v3525
        %3817 = vmatprep.subr.mxu0 0.0
        %3818 = vmatpush1.msra.mxu0 %v3524
        %3819 = vmatprep.subr.mxu0 0.0
        %3820 = vmatpush1.msra.mxu0 %v3523
        %3821 = vmatprep.subr.mxu0 0.0
        %3822 = vmatpush1.msra.mxu0 %v3522
        %3823 = vmatprep.subr.mxu0 0.0
        %3824 = vmatpush1.msra.mxu0 %v3521
        %3825 = vmatprep.subr.mxu0 0.0
        %3826 = vmatpush1.msra.mxu0 %v3520
        %3827 = vmatprep.subr.mxu0 0.0
        %3828 = vmatpush1.msra.mxu0 %v3519
        %3829 = vmatprep.subr.mxu0 0.0
        %3830 = vmatpush1.msra.mxu0 %v3518
        %3831 = vmatprep.subr.mxu0 0.0
        %3832 = vmatpush1.msra.mxu0 %v3517
        %3833 = vmatprep.subr.mxu0 0.0
        %3834 = vmatpush2.msra.mxu0 0.0
        %3835 = vmatprep.subr.mxu0 0.0
        %3836 = vmatpush2.msra.mxu0 0.0
        %3837 = vmatprep.subr.mxu0 0.0
        %3838 = vmatpush2.msra.mxu0 0.0
        %3839 = vmatprep.subr.mxu0 0.0
        %3840 = vmatpush2.msra.mxu0 0.0
        %3841 = vmatprep.subr.mxu0 0.0
        %3842 = vmatpush2.msra.mxu0 0.0
        %3843 = vmatprep.subr.mxu0 0.0
        %3844 = vmatpush2.msra.mxu0 0.0
        %3845 = vmatprep.subr.mxu0 0.0
        %3846 = vmatpush2.msra.mxu0 0.0
        %3847 = vmatprep.subr.mxu0 0.0
        %3848 = vmatpush2.msra.mxu0 0.0
        %3849 = vmatprep.subr.mxu0 0.0
        %3850 = vmatpush2.msra.mxu0 0.0
        %3851 = vmatprep.subr.mxu0 0.0
        %3852 = vmatpush2.msra.mxu0 0.0
        %3853 = vmatprep.subr.mxu0 0.0
        %3854 = vmatpush2.msra.mxu0 0.0
        %3855 = vmatprep.subr.mxu0 0.0
        %3856 = vmatpush2.msra.mxu0 0.0
        %3857 = vmatprep.subr.mxu0 0.0
        %3858 = vmatpush2.msra.mxu0 0.0
        %3859 = vmatprep.subr.mxu0 0.0
        %3860 = vmatpush2.msra.mxu0 0.0
        %3861 = vmatprep.subr.mxu0 0.0
        %3862 = vmatpush2.msra.mxu0 0.0
        %3863 = vmatprep.subr.mxu0 0.0
        %3864 = vmatpush2.msra.mxu0 0.0
        %3865 = vmatprep.mubr.f32.mxu0 0.0
        %3866 = vmatmul.mubr.f32.gmra.mxu0 %v3484
        %v3867 = vpop.f32.mrf.mxu0
        %v3868 = vadd.f32 %v3798, %v3867
        %v3869 = vpop.f32.mrf.mxu0
        %3870 = vdwg.mxu0
        %s3871 = scalar_lea.vmem %s6, 768
        %v3872 = vld [vmem:[%s3871] sm:$0xff]
        %v3873 = vld [vmem:[%s3871 + $0x8] sm:$0xff]
        %v3874 = vld [vmem:[%s3871 + $0x10] sm:$0xff]
        %v3875 = vld [vmem:[%s3871 + $0x18] sm:$0xff]
        %v3876 = vld [vmem:[%s3871 + $0x20] sm:$0xff]
        %v3877 = vld [vmem:[%s3871 + $0x28] sm:$0xff]
        %v3878 = vld [vmem:[%s3871 + $0x30] sm:$0xff]
        %v3879 = vld [vmem:[%s3871 + $0x38] sm:$0xff]
        %v3880 = vld [vmem:[%s3871 + $0x40] sm:$0xff]
        %v3881 = vld [vmem:[%s3871 + $0x48] sm:$0xff]
        %v3882 = vld [vmem:[%s3871 + $0x50] sm:$0xff]
        %v3883 = vld [vmem:[%s3871 + $0x58] sm:$0xff]
        %v3884 = vld [vmem:[%s3871 + $0x60] sm:$0xff]
        %v3885 = vld [vmem:[%s3871 + $0x68] sm:$0xff]
        %v3886 = vld [vmem:[%s3871 + $0x70] sm:$0xff]
        %v3887 = vld [vmem:[%s3871 + $0x78] sm:$0xff]
        %v3888 = vld [vmem:[%s3871 + $0x80] sm:$0xff]
        %v3889 = vld [vmem:[%s3871 + $0x88] sm:$0xff]
        %v3890 = vld [vmem:[%s3871 + $0x90] sm:$0xff]
        %v3891 = vld [vmem:[%s3871 + $0x98] sm:$0xff]
        %v3892 = vld [vmem:[%s3871 + $0xa0] sm:$0xff]
        %v3893 = vld [vmem:[%s3871 + $0xa8] sm:$0xff]
        %v3894 = vld [vmem:[%s3871 + $0xb0] sm:$0xff]
        %v3895 = vld [vmem:[%s3871 + $0xb8] sm:$0xff]
        %v3896 = vld [vmem:[%s3871 + $0xc0] sm:$0xff]
        %v3897 = vld [vmem:[%s3871 + $0xc8] sm:$0xff]
        %v3898 = vld [vmem:[%s3871 + $0xd0] sm:$0xff]
        %v3899 = vld [vmem:[%s3871 + $0xd8] sm:$0xff]
        %v3900 = vld [vmem:[%s3871 + $0xe0] sm:$0xff]
        %v3901 = vld [vmem:[%s3871 + $0xe8] sm:$0xff]
        %v3902 = vld [vmem:[%s3871 + $0xf0] sm:$0xff]
        %v3903 = vld [vmem:[%s3871 + $0xf8] sm:$0xff]
        %v3904 = vld [vmem:[%s3871 + $0x100] sm:$0xff]
        %v3905 = vld [vmem:[%s3871 + $0x108] sm:$0xff]
        %v3906 = vld [vmem:[%s3871 + $0x110] sm:$0xff]
        %v3907 = vld [vmem:[%s3871 + $0x118] sm:$0xff]
        %v3908 = vld [vmem:[%s3871 + $0x120] sm:$0xff]
        %v3909 = vld [vmem:[%s3871 + $0x128] sm:$0xff]
        %v3910 = vld [vmem:[%s3871 + $0x130] sm:$0xff]
        %v3911 = vld [vmem:[%s3871 + $0x138] sm:$0xff]
        %v3912 = vld [vmem:[%s3871 + $0x140] sm:$0xff]
        %v3913 = vld [vmem:[%s3871 + $0x148] sm:$0xff]
        %v3914 = vld [vmem:[%s3871 + $0x150] sm:$0xff]
        %v3915 = vld [vmem:[%s3871 + $0x158] sm:$0xff]
        %v3916 = vld [vmem:[%s3871 + $0x160] sm:$0xff]
        %v3917 = vld [vmem:[%s3871 + $0x168] sm:$0xff]
        %v3918 = vld [vmem:[%s3871 + $0x170] sm:$0xff]
        %v3919 = vld [vmem:[%s3871 + $0x178] sm:$0xff]
        %v3920 = vrot.slane %v3482, 2
        %v3921 = vrot.slane %v3483, 2
        %v3922 = vrot.slane %v3484, 2
        %3926 = vmatprep.subr.mxu0 0.0
        %3927 = vmatpush1.msra.mxu0 %v3887
        %3928 = vmatprep.subr.mxu0 0.0
        %3929 = vmatpush1.msra.mxu0 %v3886
        %3930 = vmatprep.subr.mxu0 0.0
        %3931 = vmatpush1.msra.mxu0 %v3885
        %3932 = vmatprep.subr.mxu0 0.0
        %3933 = vmatpush1.msra.mxu0 %v3884
        %3934 = vmatprep.subr.mxu0 0.0
        %3935 = vmatpush1.msra.mxu0 %v3883
        %3936 = vmatprep.subr.mxu0 0.0
        %3937 = vmatpush1.msra.mxu0 %v3882
        %3938 = vmatprep.subr.mxu0 0.0
        %3939 = vmatpush1.msra.mxu0 %v3881
        %3940 = vmatprep.subr.mxu0 0.0
        %3941 = vmatpush1.msra.mxu0 %v3880
        %3942 = vmatprep.subr.mxu0 0.0
        %3943 = vmatpush1.msra.mxu0 %v3879
        %3944 = vmatprep.subr.mxu0 0.0
        %3945 = vmatpush1.msra.mxu0 %v3878
        %3946 = vmatprep.subr.mxu0 0.0
        %3947 = vmatpush1.msra.mxu0 %v3877
        %3948 = vmatprep.subr.mxu0 0.0
        %3949 = vmatpush1.msra.mxu0 %v3876
        %3950 = vmatprep.subr.mxu0 0.0
        %3951 = vmatpush1.msra.mxu0 %v3875
        %3952 = vmatprep.subr.mxu0 0.0
        %3953 = vmatpush1.msra.mxu0 %v3874
        %3954 = vmatprep.subr.mxu0 0.0
        %3955 = vmatpush1.msra.mxu0 %v3873
        %3956 = vmatprep.subr.mxu0 0.0
        %3957 = vmatpush1.msra.mxu0 %v3872
        %3958 = vmatprep.subr.mxu0 0.0
        %3959 = vmatpush2.msra.mxu0 %v3903
        %3960 = vmatprep.subr.mxu0 0.0
        %3961 = vmatpush2.msra.mxu0 %v3902
        %3962 = vmatprep.subr.mxu0 0.0
        %3963 = vmatpush2.msra.mxu0 %v3901
        %3964 = vmatprep.subr.mxu0 0.0
        %3965 = vmatpush2.msra.mxu0 %v3900
        %3966 = vmatprep.subr.mxu0 0.0
        %3967 = vmatpush2.msra.mxu0 %v3899
        %3968 = vmatprep.subr.mxu0 0.0
        %3969 = vmatpush2.msra.mxu0 %v3898
        %3970 = vmatprep.subr.mxu0 0.0
        %3971 = vmatpush2.msra.mxu0 %v3897
        %3972 = vmatprep.subr.mxu0 0.0
        %3973 = vmatpush2.msra.mxu0 %v3896
        %3974 = vmatprep.subr.mxu0 0.0
        %3975 = vmatpush2.msra.mxu0 %v3895
        %3976 = vmatprep.subr.mxu0 0.0
        %3977 = vmatpush2.msra.mxu0 %v3894
        %3978 = vmatprep.subr.mxu0 0.0
        %3979 = vmatpush2.msra.mxu0 %v3893
        %3980 = vmatprep.subr.mxu0 0.0
        %3981 = vmatpush2.msra.mxu0 %v3892
        %3982 = vmatprep.subr.mxu0 0.0
        %3983 = vmatpush2.msra.mxu0 %v3891
        %3984 = vmatprep.subr.mxu0 0.0
        %3985 = vmatpush2.msra.mxu0 %v3890
        %3986 = vmatprep.subr.mxu0 0.0
        %3987 = vmatpush2.msra.mxu0 %v3889
        %3988 = vmatprep.subr.mxu0 0.0
        %3989 = vmatpush2.msra.mxu0 %v3888
        %3990 = vmatprep.mubr.f32.mxu0 %v3921
        %3991 = vmatmul.mubr.f32.gmra.mxu0 %v3920
        %v3992 = vpop.f32.mrf.mxu0
        %v3993 = vadd.f32 0.0, %v3992
        %v3994 = vpop.f32.mrf.mxu0
        %3995 = vdwg.mxu0
        %3996 = vmatprep.subr.mxu0 0.0
        %3997 = vmatpush1.msra.mxu0 %v3919
        %3998 = vmatprep.subr.mxu0 0.0
        %3999 = vmatpush1.msra.mxu0 %v3918
        %4000 = vmatprep.subr.mxu0 0.0
        %4001 = vmatpush1.msra.mxu0 %v3917
        %4002 = vmatprep.subr.mxu0 0.0
        %4003 = vmatpush1.msra.mxu0 %v3916
        %4004 = vmatprep.subr.mxu0 0.0
        %4005 = vmatpush1.msra.mxu0 %v3915
        %4006 = vmatprep.subr.mxu0 0.0
        %4007 = vmatpush1.msra.mxu0 %v3914
        %4008 = vmatprep.subr.mxu0 0.0
        %4009 = vmatpush1.msra.mxu0 %v3913
        %4010 = vmatprep.subr.mxu0 0.0
        %4011 = vmatpush1.msra.mxu0 %v3912
        %4012 = vmatprep.subr.mxu0 0.0
        %4013 = vmatpush1.msra.mxu0 %v3911
        %4014 = vmatprep.subr.mxu0 0.0
        %4015 = vmatpush1.msra.mxu0 %v3910
        %4016 = vmatprep.subr.mxu0 0.0
        %4017 = vmatpush1.msra.mxu0 %v3909
        %4018 = vmatprep.subr.mxu0 0.0
        %4019 = vmatpush1.msra.mxu0 %v3908
        %4020 = vmatprep.subr.mxu0 0.0
        %4021 = vmatpush1.msra.mxu0 %v3907
        %4022 = vmatprep.subr.mxu0 0.0
        %4023 = vmatpush1.msra.mxu0 %v3906
        %4024 = vmatprep.subr.mxu0 0.0
        %4025 = vmatpush1.msra.mxu0 %v3905
        %4026 = vmatprep.subr.mxu0 0.0
        %4027 = vmatpush1.msra.mxu0 %v3904
        %4028 = vmatprep.subr.mxu0 0.0
        %4029 = vmatpush2.msra.mxu0 0.0
        %4030 = vmatprep.subr.mxu0 0.0
        %4031 = vmatpush2.msra.mxu0 0.0
        %4032 = vmatprep.subr.mxu0 0.0
        %4033 = vmatpush2.msra.mxu0 0.0
        %4034 = vmatprep.subr.mxu0 0.0
        %4035 = vmatpush2.msra.mxu0 0.0
        %4036 = vmatprep.subr.mxu0 0.0
        %4037 = vmatpush2.msra.mxu0 0.0
        %4038 = vmatprep.subr.mxu0 0.0
        %4039 = vmatpush2.msra.mxu0 0.0
        %4040 = vmatprep.subr.mxu0 0.0
        %4041 = vmatpush2.msra.mxu0 0.0
        %4042 = vmatprep.subr.mxu0 0.0
        %4043 = vmatpush2.msra.mxu0 0.0
        %4044 = vmatprep.subr.mxu0 0.0
        %4045 = vmatpush2.msra.mxu0 0.0
        %4046 = vmatprep.subr.mxu0 0.0
        %4047 = vmatpush2.msra.mxu0 0.0
        %4048 = vmatprep.subr.mxu0 0.0
        %4049 = vmatpush2.msra.mxu0 0.0
        %4050 = vmatprep.subr.mxu0 0.0
        %4051 = vmatpush2.msra.mxu0 0.0
        %4052 = vmatprep.subr.mxu0 0.0
        %4053 = vmatpush2.msra.mxu0 0.0
        %4054 = vmatprep.subr.mxu0 0.0
        %4055 = vmatpush2.msra.mxu0 0.0
        %4056 = vmatprep.subr.mxu0 0.0
        %4057 = vmatpush2.msra.mxu0 0.0
        %4058 = vmatprep.subr.mxu0 0.0
        %4059 = vmatpush2.msra.mxu0 0.0
        %4060 = vmatprep.mubr.f32.mxu0 0.0
        %4061 = vmatmul.mubr.f32.gmra.mxu0 %v3922
        %v4062 = vpop.f32.mrf.mxu0
        %v4063 = vadd.f32 %v3993, %v4062
        %v4064 = vpop.f32.mrf.mxu0
        %4065 = vdwg.mxu0
        %v4066 = vadd.f32 %v3868, %v4063
        %s4067 = scalar_lea.vmem %s6, 1152
        %v4068 = vld [vmem:[%s4067] sm:$0xff]
        %v4069 = vld [vmem:[%s4067 + $0x8] sm:$0xff]
        %v4070 = vld [vmem:[%s4067 + $0x10] sm:$0xff]
        %v4071 = vld [vmem:[%s4067 + $0x18] sm:$0xff]
        %v4072 = vld [vmem:[%s4067 + $0x20] sm:$0xff]
        %v4073 = vld [vmem:[%s4067 + $0x28] sm:$0xff]
        %v4074 = vld [vmem:[%s4067 + $0x30] sm:$0xff]
        %v4075 = vld [vmem:[%s4067 + $0x38] sm:$0xff]
        %v4076 = vld [vmem:[%s4067 + $0x40] sm:$0xff]
        %v4077 = vld [vmem:[%s4067 + $0x48] sm:$0xff]
        %v4078 = vld [vmem:[%s4067 + $0x50] sm:$0xff]
        %v4079 = vld [vmem:[%s4067 + $0x58] sm:$0xff]
        %v4080 = vld [vmem:[%s4067 + $0x60] sm:$0xff]
        %v4081 = vld [vmem:[%s4067 + $0x68] sm:$0xff]
        %v4082 = vld [vmem:[%s4067 + $0x70] sm:$0xff]
        %v4083 = vld [vmem:[%s4067 + $0x78] sm:$0xff]
        %v4084 = vld [vmem:[%s4067 + $0x80] sm:$0xff]
        %v4085 = vld [vmem:[%s4067 + $0x88] sm:$0xff]
        %v4086 = vld [vmem:[%s4067 + $0x90] sm:$0xff]
        %v4087 = vld [vmem:[%s4067 + $0x98] sm:$0xff]
        %v4088 = vld [vmem:[%s4067 + $0xa0] sm:$0xff]
        %v4089 = vld [vmem:[%s4067 + $0xa8] sm:$0xff]
        %v4090 = vld [vmem:[%s4067 + $0xb0] sm:$0xff]
        %v4091 = vld [vmem:[%s4067 + $0xb8] sm:$0xff]
        %v4092 = vld [vmem:[%s4067 + $0xc0] sm:$0xff]
        %v4093 = vld [vmem:[%s4067 + $0xc8] sm:$0xff]
        %v4094 = vld [vmem:[%s4067 + $0xd0] sm:$0xff]
        %v4095 = vld [vmem:[%s4067 + $0xd8] sm:$0xff]
        %v4096 = vld [vmem:[%s4067 + $0xe0] sm:$0xff]
        %v4097 = vld [vmem:[%s4067 + $0xe8] sm:$0xff]
        %v4098 = vld [vmem:[%s4067 + $0xf0] sm:$0xff]
        %v4099 = vld [vmem:[%s4067 + $0xf8] sm:$0xff]
        %v4100 = vld [vmem:[%s4067 + $0x100] sm:$0xff]
        %v4101 = vld [vmem:[%s4067 + $0x108] sm:$0xff]
        %v4102 = vld [vmem:[%s4067 + $0x110] sm:$0xff]
        %v4103 = vld [vmem:[%s4067 + $0x118] sm:$0xff]
        %v4104 = vld [vmem:[%s4067 + $0x120] sm:$0xff]
        %v4105 = vld [vmem:[%s4067 + $0x128] sm:$0xff]
        %v4106 = vld [vmem:[%s4067 + $0x130] sm:$0xff]
        %v4107 = vld [vmem:[%s4067 + $0x138] sm:$0xff]
        %v4108 = vld [vmem:[%s4067 + $0x140] sm:$0xff]
        %v4109 = vld [vmem:[%s4067 + $0x148] sm:$0xff]
        %v4110 = vld [vmem:[%s4067 + $0x150] sm:$0xff]
        %v4111 = vld [vmem:[%s4067 + $0x158] sm:$0xff]
        %v4112 = vld [vmem:[%s4067 + $0x160] sm:$0xff]
        %v4113 = vld [vmem:[%s4067 + $0x168] sm:$0xff]
        %v4114 = vld [vmem:[%s4067 + $0x170] sm:$0xff]
        %v4115 = vld [vmem:[%s4067 + $0x178] sm:$0xff]
        %v4116 = vrot.slane %v3482, 3
        %v4117 = vrot.slane %v3483, 3
        %v4118 = vrot.slane %v3484, 3
        %4122 = vmatprep.subr.mxu0 0.0
        %4123 = vmatpush1.msra.mxu0 %v4083
        %4124 = vmatprep.subr.mxu0 0.0
        %4125 = vmatpush1.msra.mxu0 %v4082
        %4126 = vmatprep.subr.mxu0 0.0
        %4127 = vmatpush1.msra.mxu0 %v4081
        %4128 = vmatprep.subr.mxu0 0.0
        %4129 = vmatpush1.msra.mxu0 %v4080
        %4130 = vmatprep.subr.mxu0 0.0
        %4131 = vmatpush1.msra.mxu0 %v4079
        %4132 = vmatprep.subr.mxu0 0.0
        %4133 = vmatpush1.msra.mxu0 %v4078
        %4134 = vmatprep.subr.mxu0 0.0
        %4135 = vmatpush1.msra.mxu0 %v4077
        %4136 = vmatprep.subr.mxu0 0.0
        %4137 = vmatpush1.msra.mxu0 %v4076
        %4138 = vmatprep.subr.mxu0 0.0
        %4139 = vmatpush1.msra.mxu0 %v4075
        %4140 = vmatprep.subr.mxu0 0.0
        %4141 = vmatpush1.msra.mxu0 %v4074
        %4142 = vmatprep.subr.mxu0 0.0
        %4143 = vmatpush1.msra.mxu0 %v4073
        %4144 = vmatprep.subr.mxu0 0.0
        %4145 = vmatpush1.msra.mxu0 %v4072
        %4146 = vmatprep.subr.mxu0 0.0
        %4147 = vmatpush1.msra.mxu0 %v4071
        %4148 = vmatprep.subr.mxu0 0.0
        %4149 = vmatpush1.msra.mxu0 %v4070
        %4150 = vmatprep.subr.mxu0 0.0
        %4151 = vmatpush1.msra.mxu0 %v4069
        %4152 = vmatprep.subr.mxu0 0.0
        %4153 = vmatpush1.msra.mxu0 %v4068
        %4154 = vmatprep.subr.mxu0 0.0
        %4155 = vmatpush2.msra.mxu0 %v4099
        %4156 = vmatprep.subr.mxu0 0.0
        %4157 = vmatpush2.msra.mxu0 %v4098
        %4158 = vmatprep.subr.mxu0 0.0
        %4159 = vmatpush2.msra.mxu0 %v4097
        %4160 = vmatprep.subr.mxu0 0.0
        %4161 = vmatpush2.msra.mxu0 %v4096
        %4162 = vmatprep.subr.mxu0 0.0
        %4163 = vmatpush2.msra.mxu0 %v4095
        %4164 = vmatprep.subr.mxu0 0.0
        %4165 = vmatpush2.msra.mxu0 %v4094
        %4166 = vmatprep.subr.mxu0 0.0
        %4167 = vmatpush2.msra.mxu0 %v4093
        %4168 = vmatprep.subr.mxu0 0.0
        %4169 = vmatpush2.msra.mxu0 %v4092
        %4170 = vmatprep.subr.mxu0 0.0
        %4171 = vmatpush2.msra.mxu0 %v4091
        %4172 = vmatprep.subr.mxu0 0.0
        %4173 = vmatpush2.msra.mxu0 %v4090
        %4174 = vmatprep.subr.mxu0 0.0
        %4175 = vmatpush2.msra.mxu0 %v4089
        %4176 = vmatprep.subr.mxu0 0.0
        %4177 = vmatpush2.msra.mxu0 %v4088
        %4178 = vmatprep.subr.mxu0 0.0
        %4179 = vmatpush2.msra.mxu0 %v4087
        %4180 = vmatprep.subr.mxu0 0.0
        %4181 = vmatpush2.msra.mxu0 %v4086
        %4182 = vmatprep.subr.mxu0 0.0
        %4183 = vmatpush2.msra.mxu0 %v4085
        %4184 = vmatprep.subr.mxu0 0.0
        %4185 = vmatpush2.msra.mxu0 %v4084
        %4186 = vmatprep.mubr.f32.mxu0 %v4117
        %4187 = vmatmul.mubr.f32.gmra.mxu0 %v4116
        %v4188 = vpop.f32.mrf.mxu0
        %v4189 = vadd.f32 0.0, %v4188
        %v4190 = vpop.f32.mrf.mxu0
        %4191 = vdwg.mxu0
        %4192 = vmatprep.subr.mxu0 0.0
        %4193 = vmatpush1.msra.mxu0 %v4115
        %4194 = vmatprep.subr.mxu0 0.0
        %4195 = vmatpush1.msra.mxu0 %v4114
        %4196 = vmatprep.subr.mxu0 0.0
        %4197 = vmatpush1.msra.mxu0 %v4113
        %4198 = vmatprep.subr.mxu0 0.0
        %4199 = vmatpush1.msra.mxu0 %v4112
        %4200 = vmatprep.subr.mxu0 0.0
        %4201 = vmatpush1.msra.mxu0 %v4111
        %4202 = vmatprep.subr.mxu0 0.0
        %4203 = vmatpush1.msra.mxu0 %v4110
        %4204 = vmatprep.subr.mxu0 0.0
        %4205 = vmatpush1.msra.mxu0 %v4109
        %4206 = vmatprep.subr.mxu0 0.0
        %4207 = vmatpush1.msra.mxu0 %v4108
        %4208 = vmatprep.subr.mxu0 0.0
        %4209 = vmatpush1.msra.mxu0 %v4107
        %4210 = vmatprep.subr.mxu0 0.0
        %4211 = vmatpush1.msra.mxu0 %v4106
        %4212 = vmatprep.subr.mxu0 0.0
        %4213 = vmatpush1.msra.mxu0 %v4105
        %4214 = vmatprep.subr.mxu0 0.0
        %4215 = vmatpush1.msra.mxu0 %v4104
        %4216 = vmatprep.subr.mxu0 0.0
        %4217 = vmatpush1.msra.mxu0 %v4103
        %4218 = vmatprep.subr.mxu0 0.0
        %4219 = vmatpush1.msra.mxu0 %v4102
        %4220 = vmatprep.subr.mxu0 0.0
        %4221 = vmatpush1.msra.mxu0 %v4101
        %4222 = vmatprep.subr.mxu0 0.0
        %4223 = vmatpush1.msra.mxu0 %v4100
        %4224 = vmatprep.subr.mxu0 0.0
        %4225 = vmatpush2.msra.mxu0 0.0
        %4226 = vmatprep.subr.mxu0 0.0
        %4227 = vmatpush2.msra.mxu0 0.0
        %4228 = vmatprep.subr.mxu0 0.0
        %4229 = vmatpush2.msra.mxu0 0.0
        %4230 = vmatprep.subr.mxu0 0.0
        %4231 = vmatpush2.msra.mxu0 0.0
        %4232 = vmatprep.subr.mxu0 0.0
        %4233 = vmatpush2.msra.mxu0 0.0
        %4234 = vmatprep.subr.mxu0 0.0
        %4235 = vmatpush2.msra.mxu0 0.0
        %4236 = vmatprep.subr.mxu0 0.0
        %4237 = vmatpush2.msra.mxu0 0.0
        %4238 = vmatprep.subr.mxu0 0.0
        %4239 = vmatpush2.msra.mxu0 0.0
        %4240 = vmatprep.subr.mxu0 0.0
        %4241 = vmatpush2.msra.mxu0 0.0
        %4242 = vmatprep.subr.mxu0 0.0
        %4243 = vmatpush2.msra.mxu0 0.0
        %4244 = vmatprep.subr.mxu0 0.0
        %4245 = vmatpush2.msra.mxu0 0.0
        %4246 = vmatprep.subr.mxu0 0.0
        %4247 = vmatpush2.msra.mxu0 0.0
        %4248 = vmatprep.subr.mxu0 0.0
        %4249 = vmatpush2.msra.mxu0 0.0
        %4250 = vmatprep.subr.mxu0 0.0
        %4251 = vmatpush2.msra.mxu0 0.0
        %4252 = vmatprep.subr.mxu0 0.0
        %4253 = vmatpush2.msra.mxu0 0.0
        %4254 = vmatprep.subr.mxu0 0.0
        %4255 = vmatpush2.msra.mxu0 0.0
        %4256 = vmatprep.mubr.f32.mxu0 0.0
        %4257 = vmatmul.mubr.f32.gmra.mxu0 %v4118
        %v4258 = vpop.f32.mrf.mxu0
        %v4259 = vadd.f32 %v4189, %v4258
        %v4260 = vpop.f32.mrf.mxu0
        %4261 = vdwg.mxu0
        %v4262 = vadd.f32 %v4066, %v4259
        %s4263 = scalar_lea.vmem %s6, 1536
        %v4264 = vld [vmem:[%s4263] sm:$0xff]
        %v4265 = vld [vmem:[%s4263 + $0x8] sm:$0xff]
        %v4266 = vld [vmem:[%s4263 + $0x10] sm:$0xff]
        %v4267 = vld [vmem:[%s4263 + $0x18] sm:$0xff]
        %v4268 = vld [vmem:[%s4263 + $0x20] sm:$0xff]
        %v4269 = vld [vmem:[%s4263 + $0x28] sm:$0xff]
        %v4270 = vld [vmem:[%s4263 + $0x30] sm:$0xff]
        %v4271 = vld [vmem:[%s4263 + $0x38] sm:$0xff]
        %v4272 = vld [vmem:[%s4263 + $0x40] sm:$0xff]
        %v4273 = vld [vmem:[%s4263 + $0x48] sm:$0xff]
        %v4274 = vld [vmem:[%s4263 + $0x50] sm:$0xff]
        %v4275 = vld [vmem:[%s4263 + $0x58] sm:$0xff]
        %v4276 = vld [vmem:[%s4263 + $0x60] sm:$0xff]
        %v4277 = vld [vmem:[%s4263 + $0x68] sm:$0xff]
        %v4278 = vld [vmem:[%s4263 + $0x70] sm:$0xff]
        %v4279 = vld [vmem:[%s4263 + $0x78] sm:$0xff]
        %v4280 = vld [vmem:[%s4263 + $0x80] sm:$0xff]
        %v4281 = vld [vmem:[%s4263 + $0x88] sm:$0xff]
        %v4282 = vld [vmem:[%s4263 + $0x90] sm:$0xff]
        %v4283 = vld [vmem:[%s4263 + $0x98] sm:$0xff]
        %v4284 = vld [vmem:[%s4263 + $0xa0] sm:$0xff]
        %v4285 = vld [vmem:[%s4263 + $0xa8] sm:$0xff]
        %v4286 = vld [vmem:[%s4263 + $0xb0] sm:$0xff]
        %v4287 = vld [vmem:[%s4263 + $0xb8] sm:$0xff]
        %v4288 = vld [vmem:[%s4263 + $0xc0] sm:$0xff]
        %v4289 = vld [vmem:[%s4263 + $0xc8] sm:$0xff]
        %v4290 = vld [vmem:[%s4263 + $0xd0] sm:$0xff]
        %v4291 = vld [vmem:[%s4263 + $0xd8] sm:$0xff]
        %v4292 = vld [vmem:[%s4263 + $0xe0] sm:$0xff]
        %v4293 = vld [vmem:[%s4263 + $0xe8] sm:$0xff]
        %v4294 = vld [vmem:[%s4263 + $0xf0] sm:$0xff]
        %v4295 = vld [vmem:[%s4263 + $0xf8] sm:$0xff]
        %v4296 = vld [vmem:[%s4263 + $0x100] sm:$0xff]
        %v4297 = vld [vmem:[%s4263 + $0x108] sm:$0xff]
        %v4298 = vld [vmem:[%s4263 + $0x110] sm:$0xff]
        %v4299 = vld [vmem:[%s4263 + $0x118] sm:$0xff]
        %v4300 = vld [vmem:[%s4263 + $0x120] sm:$0xff]
        %v4301 = vld [vmem:[%s4263 + $0x128] sm:$0xff]
        %v4302 = vld [vmem:[%s4263 + $0x130] sm:$0xff]
        %v4303 = vld [vmem:[%s4263 + $0x138] sm:$0xff]
        %v4304 = vld [vmem:[%s4263 + $0x140] sm:$0xff]
        %v4305 = vld [vmem:[%s4263 + $0x148] sm:$0xff]
        %v4306 = vld [vmem:[%s4263 + $0x150] sm:$0xff]
        %v4307 = vld [vmem:[%s4263 + $0x158] sm:$0xff]
        %v4308 = vld [vmem:[%s4263 + $0x160] sm:$0xff]
        %v4309 = vld [vmem:[%s4263 + $0x168] sm:$0xff]
        %v4310 = vld [vmem:[%s4263 + $0x170] sm:$0xff]
        %v4311 = vld [vmem:[%s4263 + $0x178] sm:$0xff]
        %v4312 = vrot.slane %v3482, 4
        %v4313 = vrot.slane %v3483, 4
        %v4314 = vrot.slane %v3484, 4
        %4318 = vmatprep.subr.mxu0 0.0
        %4319 = vmatpush1.msra.mxu0 %v4279
        %4320 = vmatprep.subr.mxu0 0.0
        %4321 = vmatpush1.msra.mxu0 %v4278
        %4322 = vmatprep.subr.mxu0 0.0
        %4323 = vmatpush1.msra.mxu0 %v4277
        %4324 = vmatprep.subr.mxu0 0.0
        %4325 = vmatpush1.msra.mxu0 %v4276
        %4326 = vmatprep.subr.mxu0 0.0
        %4327 = vmatpush1.msra.mxu0 %v4275
        %4328 = vmatprep.subr.mxu0 0.0
        %4329 = vmatpush1.msra.mxu0 %v4274
        %4330 = vmatprep.subr.mxu0 0.0
        %4331 = vmatpush1.msra.mxu0 %v4273
        %4332 = vmatprep.subr.mxu0 0.0
        %4333 = vmatpush1.msra.mxu0 %v4272
        %4334 = vmatprep.subr.mxu0 0.0
        %4335 = vmatpush1.msra.mxu0 %v4271
        %4336 = vmatprep.subr.mxu0 0.0
        %4337 = vmatpush1.msra.mxu0 %v4270
        %4338 = vmatprep.subr.mxu0 0.0
        %4339 = vmatpush1.msra.mxu0 %v4269
        %4340 = vmatprep.subr.mxu0 0.0
        %4341 = vmatpush1.msra.mxu0 %v4268
        %4342 = vmatprep.subr.mxu0 0.0
        %4343 = vmatpush1.msra.mxu0 %v4267
        %4344 = vmatprep.subr.mxu0 0.0
        %4345 = vmatpush1.msra.mxu0 %v4266
        %4346 = vmatprep.subr.mxu0 0.0
        %4347 = vmatpush1.msra.mxu0 %v4265
        %4348 = vmatprep.subr.mxu0 0.0
        %4349 = vmatpush1.msra.mxu0 %v4264
        %4350 = vmatprep.subr.mxu0 0.0
        %4351 = vmatpush2.msra.mxu0 %v4295
        %4352 = vmatprep.subr.mxu0 0.0
        %4353 = vmatpush2.msra.mxu0 %v4294
        %4354 = vmatprep.subr.mxu0 0.0
        %4355 = vmatpush2.msra.mxu0 %v4293
        %4356 = vmatprep.subr.mxu0 0.0
        %4357 = vmatpush2.msra.mxu0 %v4292
        %4358 = vmatprep.subr.mxu0 0.0
        %4359 = vmatpush2.msra.mxu0 %v4291
        %4360 = vmatprep.subr.mxu0 0.0
        %4361 = vmatpush2.msra.mxu0 %v4290
        %4362 = vmatprep.subr.mxu0 0.0
        %4363 = vmatpush2.msra.mxu0 %v4289
        %4364 = vmatprep.subr.mxu0 0.0
        %4365 = vmatpush2.msra.mxu0 %v4288
        %4366 = vmatprep.subr.mxu0 0.0
        %4367 = vmatpush2.msra.mxu0 %v4287
        %4368 = vmatprep.subr.mxu0 0.0
        %4369 = vmatpush2.msra.mxu0 %v4286
        %4370 = vmatprep.subr.mxu0 0.0
        %4371 = vmatpush2.msra.mxu0 %v4285
        %4372 = vmatprep.subr.mxu0 0.0
        %4373 = vmatpush2.msra.mxu0 %v4284
        %4374 = vmatprep.subr.mxu0 0.0
        %4375 = vmatpush2.msra.mxu0 %v4283
        %4376 = vmatprep.subr.mxu0 0.0
        %4377 = vmatpush2.msra.mxu0 %v4282
        %4378 = vmatprep.subr.mxu0 0.0
        %4379 = vmatpush2.msra.mxu0 %v4281
        %4380 = vmatprep.subr.mxu0 0.0
        %4381 = vmatpush2.msra.mxu0 %v4280
        %4382 = vmatprep.mubr.f32.mxu0 %v4313
        %4383 = vmatmul.mubr.f32.gmra.mxu0 %v4312
        %v4384 = vpop.f32.mrf.mxu0
        %v4385 = vadd.f32 0.0, %v4384
        %v4386 = vpop.f32.mrf.mxu0
        %4387 = vdwg.mxu0
        %4388 = vmatprep.subr.mxu0 0.0
        %4389 = vmatpush1.msra.mxu0 %v4311
        %4390 = vmatprep.subr.mxu0 0.0
        %4391 = vmatpush1.msra.mxu0 %v4310
        %4392 = vmatprep.subr.mxu0 0.0
        %4393 = vmatpush1.msra.mxu0 %v4309
        %4394 = vmatprep.subr.mxu0 0.0
        %4395 = vmatpush1.msra.mxu0 %v4308
        %4396 = vmatprep.subr.mxu0 0.0
        %4397 = vmatpush1.msra.mxu0 %v4307
        %4398 = vmatprep.subr.mxu0 0.0
        %4399 = vmatpush1.msra.mxu0 %v4306
        %4400 = vmatprep.subr.mxu0 0.0
        %4401 = vmatpush1.msra.mxu0 %v4305
        %4402 = vmatprep.subr.mxu0 0.0
        %4403 = vmatpush1.msra.mxu0 %v4304
        %4404 = vmatprep.subr.mxu0 0.0
        %4405 = vmatpush1.msra.mxu0 %v4303
        %4406 = vmatprep.subr.mxu0 0.0
        %4407 = vmatpush1.msra.mxu0 %v4302
        %4408 = vmatprep.subr.mxu0 0.0
        %4409 = vmatpush1.msra.mxu0 %v4301
        %4410 = vmatprep.subr.mxu0 0.0
        %4411 = vmatpush1.msra.mxu0 %v4300
        %4412 = vmatprep.subr.mxu0 0.0
        %4413 = vmatpush1.msra.mxu0 %v4299
        %4414 = vmatprep.subr.mxu0 0.0
        %4415 = vmatpush1.msra.mxu0 %v4298
        %4416 = vmatprep.subr.mxu0 0.0
        %4417 = vmatpush1.msra.mxu0 %v4297
        %4418 = vmatprep.subr.mxu0 0.0
        %4419 = vmatpush1.msra.mxu0 %v4296
        %4420 = vmatprep.subr.mxu0 0.0
        %4421 = vmatpush2.msra.mxu0 0.0
        %4422 = vmatprep.subr.mxu0 0.0
        %4423 = vmatpush2.msra.mxu0 0.0
        %4424 = vmatprep.subr.mxu0 0.0
        %4425 = vmatpush2.msra.mxu0 0.0
        %4426 = vmatprep.subr.mxu0 0.0
        %4427 = vmatpush2.msra.mxu0 0.0
        %4428 = vmatprep.subr.mxu0 0.0
        %4429 = vmatpush2.msra.mxu0 0.0
        %4430 = vmatprep.subr.mxu0 0.0
        %4431 = vmatpush2.msra.mxu0 0.0
        %4432 = vmatprep.subr.mxu0 0.0
        %4433 = vmatpush2.msra.mxu0 0.0
        %4434 = vmatprep.subr.mxu0 0.0
        %4435 = vmatpush2.msra.mxu0 0.0
        %4436 = vmatprep.subr.mxu0 0.0
        %4437 = vmatpush2.msra.mxu0 0.0
        %4438 = vmatprep.subr.mxu0 0.0
        %4439 = vmatpush2.msra.mxu0 0.0
        %4440 = vmatprep.subr.mxu0 0.0
        %4441 = vmatpush2.msra.mxu0 0.0
        %4442 = vmatprep.subr.mxu0 0.0
        %4443 = vmatpush2.msra.mxu0 0.0
        %4444 = vmatprep.subr.mxu0 0.0
        %4445 = vmatpush2.msra.mxu0 0.0
        %4446 = vmatprep.subr.mxu0 0.0
        %4447 = vmatpush2.msra.mxu0 0.0
        %4448 = vmatprep.subr.mxu0 0.0
        %4449 = vmatpush2.msra.mxu0 0.0
        %4450 = vmatprep.subr.mxu0 0.0
        %4451 = vmatpush2.msra.mxu0 0.0
        %4452 = vmatprep.mubr.f32.mxu0 0.0
        %4453 = vmatmul.mubr.f32.gmra.mxu0 %v4314
        %v4454 = vpop.f32.mrf.mxu0
        %v4455 = vadd.f32 %v4385, %v4454
        %v4456 = vpop.f32.mrf.mxu0
        %4457 = vdwg.mxu0
        %v4458 = vadd.f32 %v4262, %v4455
        %s4459 = scalar_lea.vmem %s6, 1920
        %v4460 = vld [vmem:[%s4459] sm:$0xff]
        %v4461 = vld [vmem:[%s4459 + $0x8] sm:$0xff]
        %v4462 = vld [vmem:[%s4459 + $0x10] sm:$0xff]
        %v4463 = vld [vmem:[%s4459 + $0x18] sm:$0xff]
        %v4464 = vld [vmem:[%s4459 + $0x20] sm:$0xff]
        %v4465 = vld [vmem:[%s4459 + $0x28] sm:$0xff]
        %v4466 = vld [vmem:[%s4459 + $0x30] sm:$0xff]
        %v4467 = vld [vmem:[%s4459 + $0x38] sm:$0xff]
        %v4468 = vld [vmem:[%s4459 + $0x40] sm:$0xff]
        %v4469 = vld [vmem:[%s4459 + $0x48] sm:$0xff]
        %v4470 = vld [vmem:[%s4459 + $0x50] sm:$0xff]
        %v4471 = vld [vmem:[%s4459 + $0x58] sm:$0xff]
        %v4472 = vld [vmem:[%s4459 + $0x60] sm:$0xff]
        %v4473 = vld [vmem:[%s4459 + $0x68] sm:$0xff]
        %v4474 = vld [vmem:[%s4459 + $0x70] sm:$0xff]
        %v4475 = vld [vmem:[%s4459 + $0x78] sm:$0xff]
        %v4476 = vld [vmem:[%s4459 + $0x80] sm:$0xff]
        %v4477 = vld [vmem:[%s4459 + $0x88] sm:$0xff]
        %v4478 = vld [vmem:[%s4459 + $0x90] sm:$0xff]
        %v4479 = vld [vmem:[%s4459 + $0x98] sm:$0xff]
        %v4480 = vld [vmem:[%s4459 + $0xa0] sm:$0xff]
        %v4481 = vld [vmem:[%s4459 + $0xa8] sm:$0xff]
        %v4482 = vld [vmem:[%s4459 + $0xb0] sm:$0xff]
        %v4483 = vld [vmem:[%s4459 + $0xb8] sm:$0xff]
        %v4484 = vld [vmem:[%s4459 + $0xc0] sm:$0xff]
        %v4485 = vld [vmem:[%s4459 + $0xc8] sm:$0xff]
        %v4486 = vld [vmem:[%s4459 + $0xd0] sm:$0xff]
        %v4487 = vld [vmem:[%s4459 + $0xd8] sm:$0xff]
        %v4488 = vld [vmem:[%s4459 + $0xe0] sm:$0xff]
        %v4489 = vld [vmem:[%s4459 + $0xe8] sm:$0xff]
        %v4490 = vld [vmem:[%s4459 + $0xf0] sm:$0xff]
        %v4491 = vld [vmem:[%s4459 + $0xf8] sm:$0xff]
        %v4492 = vld [vmem:[%s4459 + $0x100] sm:$0xff]
        %v4493 = vld [vmem:[%s4459 + $0x108] sm:$0xff]
        %v4494 = vld [vmem:[%s4459 + $0x110] sm:$0xff]
        %v4495 = vld [vmem:[%s4459 + $0x118] sm:$0xff]
        %v4496 = vld [vmem:[%s4459 + $0x120] sm:$0xff]
        %v4497 = vld [vmem:[%s4459 + $0x128] sm:$0xff]
        %v4498 = vld [vmem:[%s4459 + $0x130] sm:$0xff]
        %v4499 = vld [vmem:[%s4459 + $0x138] sm:$0xff]
        %v4500 = vld [vmem:[%s4459 + $0x140] sm:$0xff]
        %v4501 = vld [vmem:[%s4459 + $0x148] sm:$0xff]
        %v4502 = vld [vmem:[%s4459 + $0x150] sm:$0xff]
        %v4503 = vld [vmem:[%s4459 + $0x158] sm:$0xff]
        %v4504 = vld [vmem:[%s4459 + $0x160] sm:$0xff]
        %v4505 = vld [vmem:[%s4459 + $0x168] sm:$0xff]
        %v4506 = vld [vmem:[%s4459 + $0x170] sm:$0xff]
        %v4507 = vld [vmem:[%s4459 + $0x178] sm:$0xff]
        %v4508 = vrot.slane %v3482, 5
        %v4509 = vrot.slane %v3483, 5
        %v4510 = vrot.slane %v3484, 5
        %4514 = vmatprep.subr.mxu0 0.0
        %4515 = vmatpush1.msra.mxu0 %v4475
        %4516 = vmatprep.subr.mxu0 0.0
        %4517 = vmatpush1.msra.mxu0 %v4474
        %4518 = vmatprep.subr.mxu0 0.0
        %4519 = vmatpush1.msra.mxu0 %v4473
        %4520 = vmatprep.subr.mxu0 0.0
        %4521 = vmatpush1.msra.mxu0 %v4472
        %4522 = vmatprep.subr.mxu0 0.0
        %4523 = vmatpush1.msra.mxu0 %v4471
        %4524 = vmatprep.subr.mxu0 0.0
        %4525 = vmatpush1.msra.mxu0 %v4470
        %4526 = vmatprep.subr.mxu0 0.0
        %4527 = vmatpush1.msra.mxu0 %v4469
        %4528 = vmatprep.subr.mxu0 0.0
        %4529 = vmatpush1.msra.mxu0 %v4468
        %4530 = vmatprep.subr.mxu0 0.0
        %4531 = vmatpush1.msra.mxu0 %v4467
        %4532 = vmatprep.subr.mxu0 0.0
        %4533 = vmatpush1.msra.mxu0 %v4466
        %4534 = vmatprep.subr.mxu0 0.0
        %4535 = vmatpush1.msra.mxu0 %v4465
        %4536 = vmatprep.subr.mxu0 0.0
        %4537 = vmatpush1.msra.mxu0 %v4464
        %4538 = vmatprep.subr.mxu0 0.0
        %4539 = vmatpush1.msra.mxu0 %v4463
        %4540 = vmatprep.subr.mxu0 0.0
        %4541 = vmatpush1.msra.mxu0 %v4462
        %4542 = vmatprep.subr.mxu0 0.0
        %4543 = vmatpush1.msra.mxu0 %v4461
        %4544 = vmatprep.subr.mxu0 0.0
        %4545 = vmatpush1.msra.mxu0 %v4460
        %4546 = vmatprep.subr.mxu0 0.0
        %4547 = vmatpush2.msra.mxu0 %v4491
        %4548 = vmatprep.subr.mxu0 0.0
        %4549 = vmatpush2.msra.mxu0 %v4490
        %4550 = vmatprep.subr.mxu0 0.0
        %4551 = vmatpush2.msra.mxu0 %v4489
        %4552 = vmatprep.subr.mxu0 0.0
        %4553 = vmatpush2.msra.mxu0 %v4488
        %4554 = vmatprep.subr.mxu0 0.0
        %4555 = vmatpush2.msra.mxu0 %v4487
        %4556 = vmatprep.subr.mxu0 0.0
        %4557 = vmatpush2.msra.mxu0 %v4486
        %4558 = vmatprep.subr.mxu0 0.0
        %4559 = vmatpush2.msra.mxu0 %v4485
        %4560 = vmatprep.subr.mxu0 0.0
        %4561 = vmatpush2.msra.mxu0 %v4484
        %4562 = vmatprep.subr.mxu0 0.0
        %4563 = vmatpush2.msra.mxu0 %v4483
        %4564 = vmatprep.subr.mxu0 0.0
        %4565 = vmatpush2.msra.mxu0 %v4482
        %4566 = vmatprep.subr.mxu0 0.0
        %4567 = vmatpush2.msra.mxu0 %v4481
        %4568 = vmatprep.subr.mxu0 0.0
        %4569 = vmatpush2.msra.mxu0 %v4480
        %4570 = vmatprep.subr.mxu0 0.0
        %4571 = vmatpush2.msra.mxu0 %v4479
        %4572 = vmatprep.subr.mxu0 0.0
        %4573 = vmatpush2.msra.mxu0 %v4478
        %4574 = vmatprep.subr.mxu0 0.0
        %4575 = vmatpush2.msra.mxu0 %v4477
        %4576 = vmatprep.subr.mxu0 0.0
        %4577 = vmatpush2.msra.mxu0 %v4476
        %4578 = vmatprep.mubr.f32.mxu0 %v4509
        %4579 = vmatmul.mubr.f32.gmra.mxu0 %v4508
        %v4580 = vpop.f32.mrf.mxu0
        %v4581 = vadd.f32 0.0, %v4580
        %v4582 = vpop.f32.mrf.mxu0
        %4583 = vdwg.mxu0
        %4584 = vmatprep.subr.mxu0 0.0
        %4585 = vmatpush1.msra.mxu0 %v4507
        %4586 = vmatprep.subr.mxu0 0.0
        %4587 = vmatpush1.msra.mxu0 %v4506
        %4588 = vmatprep.subr.mxu0 0.0
        %4589 = vmatpush1.msra.mxu0 %v4505
        %4590 = vmatprep.subr.mxu0 0.0
        %4591 = vmatpush1.msra.mxu0 %v4504
        %4592 = vmatprep.subr.mxu0 0.0
        %4593 = vmatpush1.msra.mxu0 %v4503
        %4594 = vmatprep.subr.mxu0 0.0
        %4595 = vmatpush1.msra.mxu0 %v4502
        %4596 = vmatprep.subr.mxu0 0.0
        %4597 = vmatpush1.msra.mxu0 %v4501
        %4598 = vmatprep.subr.mxu0 0.0
        %4599 = vmatpush1.msra.mxu0 %v4500
        %4600 = vmatprep.subr.mxu0 0.0
        %4601 = vmatpush1.msra.mxu0 %v4499
        %4602 = vmatprep.subr.mxu0 0.0
        %4603 = vmatpush1.msra.mxu0 %v4498
        %4604 = vmatprep.subr.mxu0 0.0
        %4605 = vmatpush1.msra.mxu0 %v4497
        %4606 = vmatprep.subr.mxu0 0.0
        %4607 = vmatpush1.msra.mxu0 %v4496
        %4608 = vmatprep.subr.mxu0 0.0
        %4609 = vmatpush1.msra.mxu0 %v4495
        %4610 = vmatprep.subr.mxu0 0.0
        %4611 = vmatpush1.msra.mxu0 %v4494
        %4612 = vmatprep.subr.mxu0 0.0
        %4613 = vmatpush1.msra.mxu0 %v4493
        %4614 = vmatprep.subr.mxu0 0.0
        %4615 = vmatpush1.msra.mxu0 %v4492
        %4616 = vmatprep.subr.mxu0 0.0
        %4617 = vmatpush2.msra.mxu0 0.0
        %4618 = vmatprep.subr.mxu0 0.0
        %4619 = vmatpush2.msra.mxu0 0.0
        %4620 = vmatprep.subr.mxu0 0.0
        %4621 = vmatpush2.msra.mxu0 0.0
        %4622 = vmatprep.subr.mxu0 0.0
        %4623 = vmatpush2.msra.mxu0 0.0
        %4624 = vmatprep.subr.mxu0 0.0
        %4625 = vmatpush2.msra.mxu0 0.0
        %4626 = vmatprep.subr.mxu0 0.0
        %4627 = vmatpush2.msra.mxu0 0.0
        %4628 = vmatprep.subr.mxu0 0.0
        %4629 = vmatpush2.msra.mxu0 0.0
        %4630 = vmatprep.subr.mxu0 0.0
        %4631 = vmatpush2.msra.mxu0 0.0
        %4632 = vmatprep.subr.mxu0 0.0
        %4633 = vmatpush2.msra.mxu0 0.0
        %4634 = vmatprep.subr.mxu0 0.0
        %4635 = vmatpush2.msra.mxu0 0.0
        %4636 = vmatprep.subr.mxu0 0.0
        %4637 = vmatpush2.msra.mxu0 0.0
        %4638 = vmatprep.subr.mxu0 0.0
        %4639 = vmatpush2.msra.mxu0 0.0
        %4640 = vmatprep.subr.mxu0 0.0
        %4641 = vmatpush2.msra.mxu0 0.0
        %4642 = vmatprep.subr.mxu0 0.0
        %4643 = vmatpush2.msra.mxu0 0.0
        %4644 = vmatprep.subr.mxu0 0.0
        %4645 = vmatpush2.msra.mxu0 0.0
        %4646 = vmatprep.subr.mxu0 0.0
        %4647 = vmatpush2.msra.mxu0 0.0
        %4648 = vmatprep.mubr.f32.mxu0 0.0
        %4649 = vmatmul.mubr.f32.gmra.mxu0 %v4510
        %v4650 = vpop.f32.mrf.mxu0
        %v4651 = vadd.f32 %v4581, %v4650
        %v4652 = vpop.f32.mrf.mxu0
        %4653 = vdwg.mxu0
        %v4654 = vadd.f32 %v4458, %v4651
        %s4655 = scalar_lea.vmem %s6, 2304
        %v4656 = vld [vmem:[%s4655] sm:$0xff]
        %v4657 = vld [vmem:[%s4655 + $0x8] sm:$0xff]
        %v4658 = vld [vmem:[%s4655 + $0x10] sm:$0xff]
        %v4659 = vld [vmem:[%s4655 + $0x18] sm:$0xff]
        %v4660 = vld [vmem:[%s4655 + $0x20] sm:$0xff]
        %v4661 = vld [vmem:[%s4655 + $0x28] sm:$0xff]
        %v4662 = vld [vmem:[%s4655 + $0x30] sm:$0xff]
        %v4663 = vld [vmem:[%s4655 + $0x38] sm:$0xff]
        %v4664 = vld [vmem:[%s4655 + $0x40] sm:$0xff]
        %v4665 = vld [vmem:[%s4655 + $0x48] sm:$0xff]
        %v4666 = vld [vmem:[%s4655 + $0x50] sm:$0xff]
        %v4667 = vld [vmem:[%s4655 + $0x58] sm:$0xff]
        %v4668 = vld [vmem:[%s4655 + $0x60] sm:$0xff]
        %v4669 = vld [vmem:[%s4655 + $0x68] sm:$0xff]
        %v4670 = vld [vmem:[%s4655 + $0x70] sm:$0xff]
        %v4671 = vld [vmem:[%s4655 + $0x78] sm:$0xff]
        %v4672 = vld [vmem:[%s4655 + $0x80] sm:$0xff]
        %v4673 = vld [vmem:[%s4655 + $0x88] sm:$0xff]
        %v4674 = vld [vmem:[%s4655 + $0x90] sm:$0xff]
        %v4675 = vld [vmem:[%s4655 + $0x98] sm:$0xff]
        %v4676 = vld [vmem:[%s4655 + $0xa0] sm:$0xff]
        %v4677 = vld [vmem:[%s4655 + $0xa8] sm:$0xff]
        %v4678 = vld [vmem:[%s4655 + $0xb0] sm:$0xff]
        %v4679 = vld [vmem:[%s4655 + $0xb8] sm:$0xff]
        %v4680 = vld [vmem:[%s4655 + $0xc0] sm:$0xff]
        %v4681 = vld [vmem:[%s4655 + $0xc8] sm:$0xff]
        %v4682 = vld [vmem:[%s4655 + $0xd0] sm:$0xff]
        %v4683 = vld [vmem:[%s4655 + $0xd8] sm:$0xff]
        %v4684 = vld [vmem:[%s4655 + $0xe0] sm:$0xff]
        %v4685 = vld [vmem:[%s4655 + $0xe8] sm:$0xff]
        %v4686 = vld [vmem:[%s4655 + $0xf0] sm:$0xff]
        %v4687 = vld [vmem:[%s4655 + $0xf8] sm:$0xff]
        %v4688 = vld [vmem:[%s4655 + $0x100] sm:$0xff]
        %v4689 = vld [vmem:[%s4655 + $0x108] sm:$0xff]
        %v4690 = vld [vmem:[%s4655 + $0x110] sm:$0xff]
        %v4691 = vld [vmem:[%s4655 + $0x118] sm:$0xff]
        %v4692 = vld [vmem:[%s4655 + $0x120] sm:$0xff]
        %v4693 = vld [vmem:[%s4655 + $0x128] sm:$0xff]
        %v4694 = vld [vmem:[%s4655 + $0x130] sm:$0xff]
        %v4695 = vld [vmem:[%s4655 + $0x138] sm:$0xff]
        %v4696 = vld [vmem:[%s4655 + $0x140] sm:$0xff]
        %v4697 = vld [vmem:[%s4655 + $0x148] sm:$0xff]
        %v4698 = vld [vmem:[%s4655 + $0x150] sm:$0xff]
        %v4699 = vld [vmem:[%s4655 + $0x158] sm:$0xff]
        %v4700 = vld [vmem:[%s4655 + $0x160] sm:$0xff]
        %v4701 = vld [vmem:[%s4655 + $0x168] sm:$0xff]
        %v4702 = vld [vmem:[%s4655 + $0x170] sm:$0xff]
        %v4703 = vld [vmem:[%s4655 + $0x178] sm:$0xff]
        %v4704 = vrot.slane %v3482, 6
        %v4705 = vrot.slane %v3483, 6
        %v4706 = vrot.slane %v3484, 6
        %4710 = vmatprep.subr.mxu0 0.0
        %4711 = vmatpush1.msra.mxu0 %v4671
        %4712 = vmatprep.subr.mxu0 0.0
        %4713 = vmatpush1.msra.mxu0 %v4670
        %4714 = vmatprep.subr.mxu0 0.0
        %4715 = vmatpush1.msra.mxu0 %v4669
        %4716 = vmatprep.subr.mxu0 0.0
        %4717 = vmatpush1.msra.mxu0 %v4668
        %4718 = vmatprep.subr.mxu0 0.0
        %4719 = vmatpush1.msra.mxu0 %v4667
        %4720 = vmatprep.subr.mxu0 0.0
        %4721 = vmatpush1.msra.mxu0 %v4666
        %4722 = vmatprep.subr.mxu0 0.0
        %4723 = vmatpush1.msra.mxu0 %v4665
        %4724 = vmatprep.subr.mxu0 0.0
        %4725 = vmatpush1.msra.mxu0 %v4664
        %4726 = vmatprep.subr.mxu0 0.0
        %4727 = vmatpush1.msra.mxu0 %v4663
        %4728 = vmatprep.subr.mxu0 0.0
        %4729 = vmatpush1.msra.mxu0 %v4662
        %4730 = vmatprep.subr.mxu0 0.0
        %4731 = vmatpush1.msra.mxu0 %v4661
        %4732 = vmatprep.subr.mxu0 0.0
        %4733 = vmatpush1.msra.mxu0 %v4660
        %4734 = vmatprep.subr.mxu0 0.0
        %4735 = vmatpush1.msra.mxu0 %v4659
        %4736 = vmatprep.subr.mxu0 0.0
        %4737 = vmatpush1.msra.mxu0 %v4658
        %4738 = vmatprep.subr.mxu0 0.0
        %4739 = vmatpush1.msra.mxu0 %v4657
        %4740 = vmatprep.subr.mxu0 0.0
        %4741 = vmatpush1.msra.mxu0 %v4656
        %4742 = vmatprep.subr.mxu0 0.0
        %4743 = vmatpush2.msra.mxu0 %v4687
        %4744 = vmatprep.subr.mxu0 0.0
        %4745 = vmatpush2.msra.mxu0 %v4686
        %4746 = vmatprep.subr.mxu0 0.0
        %4747 = vmatpush2.msra.mxu0 %v4685
        %4748 = vmatprep.subr.mxu0 0.0
        %4749 = vmatpush2.msra.mxu0 %v4684
        %4750 = vmatprep.subr.mxu0 0.0
        %4751 = vmatpush2.msra.mxu0 %v4683
        %4752 = vmatprep.subr.mxu0 0.0
        %4753 = vmatpush2.msra.mxu0 %v4682
        %4754 = vmatprep.subr.mxu0 0.0
        %4755 = vmatpush2.msra.mxu0 %v4681
        %4756 = vmatprep.subr.mxu0 0.0
        %4757 = vmatpush2.msra.mxu0 %v4680
        %4758 = vmatprep.subr.mxu0 0.0
        %4759 = vmatpush2.msra.mxu0 %v4679
        %4760 = vmatprep.subr.mxu0 0.0
        %4761 = vmatpush2.msra.mxu0 %v4678
        %4762 = vmatprep.subr.mxu0 0.0
        %4763 = vmatpush2.msra.mxu0 %v4677
        %4764 = vmatprep.subr.mxu0 0.0
        %4765 = vmatpush2.msra.mxu0 %v4676
        %4766 = vmatprep.subr.mxu0 0.0
        %4767 = vmatpush2.msra.mxu0 %v4675
        %4768 = vmatprep.subr.mxu0 0.0
        %4769 = vmatpush2.msra.mxu0 %v4674
        %4770 = vmatprep.subr.mxu0 0.0
        %4771 = vmatpush2.msra.mxu0 %v4673
        %4772 = vmatprep.subr.mxu0 0.0
        %4773 = vmatpush2.msra.mxu0 %v4672
        %4774 = vmatprep.mubr.f32.mxu0 %v4705
        %4775 = vmatmul.mubr.f32.gmra.mxu0 %v4704
        %v4776 = vpop.f32.mrf.mxu0
        %v4777 = vadd.f32 0.0, %v4776
        %v4778 = vpop.f32.mrf.mxu0
        %4779 = vdwg.mxu0
        %4780 = vmatprep.subr.mxu0 0.0
        %4781 = vmatpush1.msra.mxu0 %v4703
        %4782 = vmatprep.subr.mxu0 0.0
        %4783 = vmatpush1.msra.mxu0 %v4702
        %4784 = vmatprep.subr.mxu0 0.0
        %4785 = vmatpush1.msra.mxu0 %v4701
        %4786 = vmatprep.subr.mxu0 0.0
        %4787 = vmatpush1.msra.mxu0 %v4700
        %4788 = vmatprep.subr.mxu0 0.0
        %4789 = vmatpush1.msra.mxu0 %v4699
        %4790 = vmatprep.subr.mxu0 0.0
        %4791 = vmatpush1.msra.mxu0 %v4698
        %4792 = vmatprep.subr.mxu0 0.0
        %4793 = vmatpush1.msra.mxu0 %v4697
        %4794 = vmatprep.subr.mxu0 0.0
        %4795 = vmatpush1.msra.mxu0 %v4696
        %4796 = vmatprep.subr.mxu0 0.0
        %4797 = vmatpush1.msra.mxu0 %v4695
        %4798 = vmatprep.subr.mxu0 0.0
        %4799 = vmatpush1.msra.mxu0 %v4694
        %4800 = vmatprep.subr.mxu0 0.0
        %4801 = vmatpush1.msra.mxu0 %v4693
        %4802 = vmatprep.subr.mxu0 0.0
        %4803 = vmatpush1.msra.mxu0 %v4692
        %4804 = vmatprep.subr.mxu0 0.0
        %4805 = vmatpush1.msra.mxu0 %v4691
        %4806 = vmatprep.subr.mxu0 0.0
        %4807 = vmatpush1.msra.mxu0 %v4690
        %4808 = vmatprep.subr.mxu0 0.0
        %4809 = vmatpush1.msra.mxu0 %v4689
        %4810 = vmatprep.subr.mxu0 0.0
        %4811 = vmatpush1.msra.mxu0 %v4688
        %4812 = vmatprep.subr.mxu0 0.0
        %4813 = vmatpush2.msra.mxu0 0.0
        %4814 = vmatprep.subr.mxu0 0.0
        %4815 = vmatpush2.msra.mxu0 0.0
        %4816 = vmatprep.subr.mxu0 0.0
        %4817 = vmatpush2.msra.mxu0 0.0
        %4818 = vmatprep.subr.mxu0 0.0
        %4819 = vmatpush2.msra.mxu0 0.0
        %4820 = vmatprep.subr.mxu0 0.0
        %4821 = vmatpush2.msra.mxu0 0.0
        %4822 = vmatprep.subr.mxu0 0.0
        %4823 = vmatpush2.msra.mxu0 0.0
        %4824 = vmatprep.subr.mxu0 0.0
        %4825 = vmatpush2.msra.mxu0 0.0
        %4826 = vmatprep.subr.mxu0 0.0
        %4827 = vmatpush2.msra.mxu0 0.0
        %4828 = vmatprep.subr.mxu0 0.0
        %4829 = vmatpush2.msra.mxu0 0.0
        %4830 = vmatprep.subr.mxu0 0.0
        %4831 = vmatpush2.msra.mxu0 0.0
        %4832 = vmatprep.subr.mxu0 0.0
        %4833 = vmatpush2.msra.mxu0 0.0
        %4834 = vmatprep.subr.mxu0 0.0
        %4835 = vmatpush2.msra.mxu0 0.0
        %4836 = vmatprep.subr.mxu0 0.0
        %4837 = vmatpush2.msra.mxu0 0.0
        %4838 = vmatprep.subr.mxu0 0.0
        %4839 = vmatpush2.msra.mxu0 0.0
        %4840 = vmatprep.subr.mxu0 0.0
        %4841 = vmatpush2.msra.mxu0 0.0
        %4842 = vmatprep.subr.mxu0 0.0
        %4843 = vmatpush2.msra.mxu0 0.0
        %4844 = vmatprep.mubr.f32.mxu0 0.0
        %4845 = vmatmul.mubr.f32.gmra.mxu0 %v4706
        %v4846 = vpop.f32.mrf.mxu0
        %v4847 = vadd.f32 %v4777, %v4846
        %v4848 = vpop.f32.mrf.mxu0
        %4849 = vdwg.mxu0
        %v4850 = vadd.f32 %v4654, %v4847
        %s4851 = scalar_lea.vmem %s6, 2688
        %v4852 = vld [vmem:[%s4851] sm:$0xff]
        %v4853 = vld [vmem:[%s4851 + $0x8] sm:$0xff]
        %v4854 = vld [vmem:[%s4851 + $0x10] sm:$0xff]
        %v4855 = vld [vmem:[%s4851 + $0x18] sm:$0xff]
        %v4856 = vld [vmem:[%s4851 + $0x20] sm:$0xff]
        %v4857 = vld [vmem:[%s4851 + $0x28] sm:$0xff]
        %v4858 = vld [vmem:[%s4851 + $0x30] sm:$0xff]
        %v4859 = vld [vmem:[%s4851 + $0x38] sm:$0xff]
        %v4860 = vld [vmem:[%s4851 + $0x40] sm:$0xff]
        %v4861 = vld [vmem:[%s4851 + $0x48] sm:$0xff]
        %v4862 = vld [vmem:[%s4851 + $0x50] sm:$0xff]
        %v4863 = vld [vmem:[%s4851 + $0x58] sm:$0xff]
        %v4864 = vld [vmem:[%s4851 + $0x60] sm:$0xff]
        %v4865 = vld [vmem:[%s4851 + $0x68] sm:$0xff]
        %v4866 = vld [vmem:[%s4851 + $0x70] sm:$0xff]
        %v4867 = vld [vmem:[%s4851 + $0x78] sm:$0xff]
        %v4868 = vld [vmem:[%s4851 + $0x80] sm:$0xff]
        %v4869 = vld [vmem:[%s4851 + $0x88] sm:$0xff]
        %v4870 = vld [vmem:[%s4851 + $0x90] sm:$0xff]
        %v4871 = vld [vmem:[%s4851 + $0x98] sm:$0xff]
        %v4872 = vld [vmem:[%s4851 + $0xa0] sm:$0xff]
        %v4873 = vld [vmem:[%s4851 + $0xa8] sm:$0xff]
        %v4874 = vld [vmem:[%s4851 + $0xb0] sm:$0xff]
        %v4875 = vld [vmem:[%s4851 + $0xb8] sm:$0xff]
        %v4876 = vld [vmem:[%s4851 + $0xc0] sm:$0xff]
        %v4877 = vld [vmem:[%s4851 + $0xc8] sm:$0xff]
        %v4878 = vld [vmem:[%s4851 + $0xd0] sm:$0xff]
        %v4879 = vld [vmem:[%s4851 + $0xd8] sm:$0xff]
        %v4880 = vld [vmem:[%s4851 + $0xe0] sm:$0xff]
        %v4881 = vld [vmem:[%s4851 + $0xe8] sm:$0xff]
        %v4882 = vld [vmem:[%s4851 + $0xf0] sm:$0xff]
        %v4883 = vld [vmem:[%s4851 + $0xf8] sm:$0xff]
        %v4884 = vld [vmem:[%s4851 + $0x100] sm:$0xff]
        %v4885 = vld [vmem:[%s4851 + $0x108] sm:$0xff]
        %v4886 = vld [vmem:[%s4851 + $0x110] sm:$0xff]
        %v4887 = vld [vmem:[%s4851 + $0x118] sm:$0xff]
        %v4888 = vld [vmem:[%s4851 + $0x120] sm:$0xff]
        %v4889 = vld [vmem:[%s4851 + $0x128] sm:$0xff]
        %v4890 = vld [vmem:[%s4851 + $0x130] sm:$0xff]
        %v4891 = vld [vmem:[%s4851 + $0x138] sm:$0xff]
        %v4892 = vld [vmem:[%s4851 + $0x140] sm:$0xff]
        %v4893 = vld [vmem:[%s4851 + $0x148] sm:$0xff]
        %v4894 = vld [vmem:[%s4851 + $0x150] sm:$0xff]
        %v4895 = vld [vmem:[%s4851 + $0x158] sm:$0xff]
        %v4896 = vld [vmem:[%s4851 + $0x160] sm:$0xff]
        %v4897 = vld [vmem:[%s4851 + $0x168] sm:$0xff]
        %v4898 = vld [vmem:[%s4851 + $0x170] sm:$0xff]
        %v4899 = vld [vmem:[%s4851 + $0x178] sm:$0xff]
        %v4900 = vrot.slane %v3482, 7
        %v4901 = vrot.slane %v3483, 7
        %v4902 = vrot.slane %v3484, 7
        %4906 = vmatprep.subr.mxu0 0.0
        %4907 = vmatpush1.msra.mxu0 %v4867
        %4908 = vmatprep.subr.mxu0 0.0
        %4909 = vmatpush1.msra.mxu0 %v4866
        %4910 = vmatprep.subr.mxu0 0.0
        %4911 = vmatpush1.msra.mxu0 %v4865
        %4912 = vmatprep.subr.mxu0 0.0
        %4913 = vmatpush1.msra.mxu0 %v4864
        %4914 = vmatprep.subr.mxu0 0.0
        %4915 = vmatpush1.msra.mxu0 %v4863
        %4916 = vmatprep.subr.mxu0 0.0
        %4917 = vmatpush1.msra.mxu0 %v4862
        %4918 = vmatprep.subr.mxu0 0.0
        %4919 = vmatpush1.msra.mxu0 %v4861
        %4920 = vmatprep.subr.mxu0 0.0
        %4921 = vmatpush1.msra.mxu0 %v4860
        %4922 = vmatprep.subr.mxu0 0.0
        %4923 = vmatpush1.msra.mxu0 %v4859
        %4924 = vmatprep.subr.mxu0 0.0
        %4925 = vmatpush1.msra.mxu0 %v4858
        %4926 = vmatprep.subr.mxu0 0.0
        %4927 = vmatpush1.msra.mxu0 %v4857
        %4928 = vmatprep.subr.mxu0 0.0
        %4929 = vmatpush1.msra.mxu0 %v4856
        %4930 = vmatprep.subr.mxu0 0.0
        %4931 = vmatpush1.msra.mxu0 %v4855
        %4932 = vmatprep.subr.mxu0 0.0
        %4933 = vmatpush1.msra.mxu0 %v4854
        %4934 = vmatprep.subr.mxu0 0.0
        %4935 = vmatpush1.msra.mxu0 %v4853
        %4936 = vmatprep.subr.mxu0 0.0
        %4937 = vmatpush1.msra.mxu0 %v4852
        %4938 = vmatprep.subr.mxu0 0.0
        %4939 = vmatpush2.msra.mxu0 %v4883
        %4940 = vmatprep.subr.mxu0 0.0
        %4941 = vmatpush2.msra.mxu0 %v4882
        %4942 = vmatprep.subr.mxu0 0.0
        %4943 = vmatpush2.msra.mxu0 %v4881
        %4944 = vmatprep.subr.mxu0 0.0
        %4945 = vmatpush2.msra.mxu0 %v4880
        %4946 = vmatprep.subr.mxu0 0.0
        %4947 = vmatpush2.msra.mxu0 %v4879
        %4948 = vmatprep.subr.mxu0 0.0
        %4949 = vmatpush2.msra.mxu0 %v4878
        %4950 = vmatprep.subr.mxu0 0.0
        %4951 = vmatpush2.msra.mxu0 %v4877
        %4952 = vmatprep.subr.mxu0 0.0
        %4953 = vmatpush2.msra.mxu0 %v4876
        %4954 = vmatprep.subr.mxu0 0.0
        %4955 = vmatpush2.msra.mxu0 %v4875
        %4956 = vmatprep.subr.mxu0 0.0
        %4957 = vmatpush2.msra.mxu0 %v4874
        %4958 = vmatprep.subr.mxu0 0.0
        %4959 = vmatpush2.msra.mxu0 %v4873
        %4960 = vmatprep.subr.mxu0 0.0
        %4961 = vmatpush2.msra.mxu0 %v4872
        %4962 = vmatprep.subr.mxu0 0.0
        %4963 = vmatpush2.msra.mxu0 %v4871
        %4964 = vmatprep.subr.mxu0 0.0
        %4965 = vmatpush2.msra.mxu0 %v4870
        %4966 = vmatprep.subr.mxu0 0.0
        %4967 = vmatpush2.msra.mxu0 %v4869
        %4968 = vmatprep.subr.mxu0 0.0
        %4969 = vmatpush2.msra.mxu0 %v4868
        %4970 = vmatprep.mubr.f32.mxu0 %v4901
        %4971 = vmatmul.mubr.f32.gmra.mxu0 %v4900
        %v4972 = vpop.f32.mrf.mxu0
        %v4973 = vadd.f32 0.0, %v4972
        %v4974 = vpop.f32.mrf.mxu0
        %4975 = vdwg.mxu0
        %4976 = vmatprep.subr.mxu0 0.0
        %4977 = vmatpush1.msra.mxu0 %v4899
        %4978 = vmatprep.subr.mxu0 0.0
        %4979 = vmatpush1.msra.mxu0 %v4898
        %4980 = vmatprep.subr.mxu0 0.0
        %4981 = vmatpush1.msra.mxu0 %v4897
        %4982 = vmatprep.subr.mxu0 0.0
        %4983 = vmatpush1.msra.mxu0 %v4896
        %4984 = vmatprep.subr.mxu0 0.0
        %4985 = vmatpush1.msra.mxu0 %v4895
        %4986 = vmatprep.subr.mxu0 0.0
        %4987 = vmatpush1.msra.mxu0 %v4894
        %4988 = vmatprep.subr.mxu0 0.0
        %4989 = vmatpush1.msra.mxu0 %v4893
        %4990 = vmatprep.subr.mxu0 0.0
        %4991 = vmatpush1.msra.mxu0 %v4892
        %4992 = vmatprep.subr.mxu0 0.0
        %4993 = vmatpush1.msra.mxu0 %v4891
        %4994 = vmatprep.subr.mxu0 0.0
        %4995 = vmatpush1.msra.mxu0 %v4890
        %4996 = vmatprep.subr.mxu0 0.0
        %4997 = vmatpush1.msra.mxu0 %v4889
        %4998 = vmatprep.subr.mxu0 0.0
        %4999 = vmatpush1.msra.mxu0 %v4888
        %5000 = vmatprep.subr.mxu0 0.0
        %5001 = vmatpush1.msra.mxu0 %v4887
        %5002 = vmatprep.subr.mxu0 0.0
        %5003 = vmatpush1.msra.mxu0 %v4886
        %5004 = vmatprep.subr.mxu0 0.0
        %5005 = vmatpush1.msra.mxu0 %v4885
        %5006 = vmatprep.subr.mxu0 0.0
        %5007 = vmatpush1.msra.mxu0 %v4884
        %5008 = vmatprep.subr.mxu0 0.0
        %5009 = vmatpush2.msra.mxu0 0.0
        %5010 = vmatprep.subr.mxu0 0.0
        %5011 = vmatpush2.msra.mxu0 0.0
        %5012 = vmatprep.subr.mxu0 0.0
        %5013 = vmatpush2.msra.mxu0 0.0
        %5014 = vmatprep.subr.mxu0 0.0
        %5015 = vmatpush2.msra.mxu0 0.0
        %5016 = vmatprep.subr.mxu0 0.0
        %5017 = vmatpush2.msra.mxu0 0.0
        %5018 = vmatprep.subr.mxu0 0.0
        %5019 = vmatpush2.msra.mxu0 0.0
        %5020 = vmatprep.subr.mxu0 0.0
        %5021 = vmatpush2.msra.mxu0 0.0
        %5022 = vmatprep.subr.mxu0 0.0
        %5023 = vmatpush2.msra.mxu0 0.0
        %5024 = vmatprep.subr.mxu0 0.0
        %5025 = vmatpush2.msra.mxu0 0.0
        %5026 = vmatprep.subr.mxu0 0.0
        %5027 = vmatpush2.msra.mxu0 0.0
        %5028 = vmatprep.subr.mxu0 0.0
        %5029 = vmatpush2.msra.mxu0 0.0
        %5030 = vmatprep.subr.mxu0 0.0
        %5031 = vmatpush2.msra.mxu0 0.0
        %5032 = vmatprep.subr.mxu0 0.0
        %5033 = vmatpush2.msra.mxu0 0.0
        %5034 = vmatprep.subr.mxu0 0.0
        %5035 = vmatpush2.msra.mxu0 0.0
        %5036 = vmatprep.subr.mxu0 0.0
        %5037 = vmatpush2.msra.mxu0 0.0
        %5038 = vmatprep.subr.mxu0 0.0
        %5039 = vmatpush2.msra.mxu0 0.0
        %5040 = vmatprep.mubr.f32.mxu0 0.0
        %5041 = vmatmul.mubr.f32.gmra.mxu0 %v4902
        %v5042 = vpop.f32.mrf.mxu0
        %v5043 = vadd.f32 %v4973, %v5042
        %v5044 = vpop.f32.mrf.mxu0
        %5045 = vdwg.mxu0
        %v5046 = vadd.f32 %v4850, %v5043
        %v5047 = vld [vmem:[%s7] sm:$0x1]
        %v5048 = vadd.f32 %v5046, %v5047
        %v5049 = vmax.f32 %v5048, 0.0
        %v5050 = vld [vmem:[%s8] sm:$0xff]
        %v5051 = vld [vmem:[%s8 + $0x8] sm:$0xff]
        %v5052 = vld [vmem:[%s8 + $0x10] sm:$0xff]
        %v5053 = vld [vmem:[%s8 + $0x18] sm:$0xff]
        %v5054 = vld [vmem:[%s9] sm:$0x1]
        %vm5055 = vcmask 261120
        %v5057 = vsel %vm5055, %v5049, 0
        %5059 = vmatprep.subr.mxu0 0.0
        %5060 = vmatpush1.msra.mxu0 0.0
        %5061 = vmatprep.subr.mxu0 0.0
        %5062 = vmatpush1.msra.mxu0 0.0
        %5063 = vmatprep.subr.mxu0 0.0
        %5064 = vmatpush1.msra.mxu0 0.0
        %5065 = vmatprep.subr.mxu0 0.0
        %5066 = vmatpush1.msra.mxu0 0.0
        %5067 = vmatprep.subr.mxu0 0.0
        %5068 = vmatpush1.msra.mxu0 0.0
        %5069 = vmatprep.subr.mxu0 0.0
        %5070 = vmatpush1.msra.mxu0 0.0
        %5071 = vmatprep.subr.mxu0 0.0
        %5072 = vmatpush1.msra.mxu0 0.0
        %5073 = vmatprep.subr.mxu0 0.0
        %5074 = vmatpush1.msra.mxu0 0.0
        %5075 = vmatprep.subr.mxu0 0.0
        %5076 = vmatpush1.msra.mxu0 0.0
        %5077 = vmatprep.subr.mxu0 0.0
        %5078 = vmatpush1.msra.mxu0 0.0
        %5079 = vmatprep.subr.mxu0 0.0
        %5080 = vmatpush1.msra.mxu0 0.0
        %5081 = vmatprep.subr.mxu0 0.0
        %5082 = vmatpush1.msra.mxu0 0.0
        %5083 = vmatprep.subr.mxu0 0.0
        %5084 = vmatpush1.msra.mxu0 %v5053
        %5085 = vmatprep.subr.mxu0 0.0
        %5086 = vmatpush1.msra.mxu0 %v5052
        %5087 = vmatprep.subr.mxu0 0.0
        %5088 = vmatpush1.msra.mxu0 %v5051
        %5089 = vmatprep.subr.mxu0 0.0
        %5090 = vmatpush1.msra.mxu0 %v5050
        %5091 = vmatprep.subr.mxu0 0.0
        %5092 = vmatpush2.msra.mxu0 0.0
        %5093 = vmatprep.subr.mxu0 0.0
        %5094 = vmatpush2.msra.mxu0 0.0
        %5095 = vmatprep.subr.mxu0 0.0
        %5096 = vmatpush2.msra.mxu0 0.0
        %5097 = vmatprep.subr.mxu0 0.0
        %5098 = vmatpush2.msra.mxu0 0.0
        %5099 = vmatprep.subr.mxu0 0.0
        %5100 = vmatpush2.msra.mxu0 0.0
        %5101 = vmatprep.subr.mxu0 0.0
        %5102 = vmatpush2.msra.mxu0 0.0
        %5103 = vmatprep.subr.mxu0 0.0
        %5104 = vmatpush2.msra.mxu0 0.0
        %5105 = vmatprep.subr.mxu0 0.0
        %5106 = vmatpush2.msra.mxu0 0.0
        %5107 = vmatprep.subr.mxu0 0.0
        %5108 = vmatpush2.msra.mxu0 0.0
        %5109 = vmatprep.subr.mxu0 0.0
        %5110 = vmatpush2.msra.mxu0 0.0
        %5111 = vmatprep.subr.mxu0 0.0
        %5112 = vmatpush2.msra.mxu0 0.0
        %5113 = vmatprep.subr.mxu0 0.0
        %5114 = vmatpush2.msra.mxu0 0.0
        %5115 = vmatprep.subr.mxu0 0.0
        %5116 = vmatpush2.msra.mxu0 0.0
        %5117 = vmatprep.subr.mxu0 0.0
        %5118 = vmatpush2.msra.mxu0 0.0
        %5119 = vmatprep.subr.mxu0 0.0
        %5120 = vmatpush2.msra.mxu0 0.0
        %5121 = vmatprep.subr.mxu0 0.0
        %5122 = vmatpush2.msra.mxu0 0.0
        %5123 = vmatprep.mubr.f32.mxu0 0.0
        %5124 = vmatmul.mubr.f32.gmra.mxu0 %v5057
        %v5125 = vpop.f32.mrf.mxu0
        %v5126 = vadd.f32 %v5054, %v5125
        %v5127 = vpop.f32.mrf.mxu0
        %5128 = vdwg.mxu0
        %vm5129 = vcmask 73728
        %5130 = vst.msk [vmem:[%s351] sm:$0x1] %vm5129, %v5126
        %s5131 = sand.u32 %s247, 1
        %s5132 = scalar_lea.sflag [#allocation4], %s5131
        %s5133 = sand.u32 %s247, 1
        %s5134 = scalar_lea.vmem [#allocation3], %s5133
        // Predicated region
        $region61: #{onnx_converter_forward.1} parent=59 // pred_check
          %p5135 = pneg %p257
        $region62: #{onnx_converter_forward.1} parent=59 // pred_check_branch
          %5137 = sbr.rel (%p5135) target = $region64
        $region63: #{onnx_converter_forward.1} parent=59 // pred_region
          %s5139 = ssub.s32 16, 16
          %5140 = vsyncadd %s5132, %s5139
          %s5141 = smul.addr %s24, 16
          %s5142 = scalar_lea.hbm %s10, %s5141
          %s5144 = sshll.u32 %s5134, 4
          %s5145 = int_to_ptr.vmem [resolvable:$true] %s5144
          %5147 = dma.vmem_to_hbm [thread:$0]  %s5145, 16, %s5142, %s5132
        $region64: #{onnx_converter_forward.1} parent=59 // pred_fallthru
          _
      $region60: #{onnx_converter_forward.1} parent=5 // pred_fallthru
        _
      %p5148 = scmp.le.s32.totalorder 2, %s19
      // Predicated region
      $region65: #{onnx_converter_forward.1} parent=5 // pred_check
        %p5149 = pneg %p5148
      $region66: #{onnx_converter_forward.1} parent=5 // pred_check_branch
        %5151 = sbr.rel (%p5149) target = $region68
      $region67: #{onnx_converter_forward.1} parent=5 // pred_region
        %s5152 = ssub.s32 %s19, 2
        // Predicated region
        $region69: #{onnx_converter_forward.1} parent=67 // pred_check
          %p5153 = pneg %p263
        $region70: #{onnx_converter_forward.1} parent=67 // pred_check_branch
          %5155 = sbr.rel (%p5153) target = $region72
        $region71: #{onnx_converter_forward.1} parent=67 // pred_region
          %s5156 = sand.u32 %s248, 1
          %s5157 = scalar_lea.sflag [#allocation4], %s5156
          %s5158 = sand.u32 %s248, 1
          %s5159 = scalar_lea.vmem [#allocation3], %s5158
          %5160 = dma.done %s5157, 16
        $region72: #{onnx_converter_forward.1} parent=67 // pred_fallthru
          _
      $region68: #{onnx_converter_forward.1} parent=5 // pred_fallthru
        _
    $region6: #{onnx_converter_forward.1} parent=1 // loop_footer
      %s23 = sadd.s32 1, %s19
    $region7: #{onnx_converter_forward.1} parent=1 // loop_footer_branch
      %18 = sbr.rel target = $region3
    $region8: #{onnx_converter_forward.1} parent=1 // loop_exit
      _
    %5161 = vsyncpa [#allocation4], 1
    %s5162 = scalar_lea.sflag [#allocation4], 1
    %5163 = vsyncpa %s5162, 1

</llo_original>
